<compile_context>
chip_gen: v5e
topology: v5e:2x2
jax: 0.10.0
libtpu: 0.0.40
codegen_flags: <defaults>
</compile_context>

<pallas_src>
import numpy as np

import jax
import jax.numpy as jnp
from jax import lax
from jax.experimental import pallas as pl
from jax.experimental.pallas import tpu as pltpu

# ----------------------------- configuration --------------------------------
BATCH = 2
IN_CH = 3          # input_channels
IMG = 16           # img_size
DOWNS = 2          # downsamplings (== upsamplings in the decoder)
DC = 4             # down_channels (encoder start_channels)
UC = 4             # up_channels   (decoder end_channels)
LATENT = DC * IMG ** 2 // 2 ** (DOWNS + 1)        # = 128 (encoder flat size / 2)
HID = UC * IMG ** 2 // 2 ** DOWNS                 # = 256 (decoder linear out)

_BN_EPS = 1e-5


# --------------------- host-built constant gather operators -------------------
def _conv_sel_ps(h, w, k, s, p):
    """Per-sample Conv2d gather: sel[iy*w+ix, t*OO+oo] = 1 if pixel (iy,ix) is
    the tap-t source for output pixel oo (zero-padding handled by all-zero cols)."""
    oh = (h + 2 * p - k) // s + 1
    ow = (w + 2 * p - k) // s + 1
    oo = oh * ow
    sel = np.zeros((h * w, k * k * oo), np.float32)
    for kh in range(k):
        for kw in range(k):
            t = kh * k + kw
            for oy in range(oh):
                iy = oy * s + kh - p
                if iy < 0 or iy >= h:
                    continue
                for ox in range(ow):
                    ix = ox * s + kw - p
                    if ix < 0 or ix >= w:
                        continue
                    sel[iy * w + ix, t * oo + oy * ow + ox] = 1.0
    return sel, oh, ow


def _convT_sel_ps(h, w, k, s, p):
    """Per-sample ConvTranspose2d gather (oy = iy*s - p + kh), no zero-dilation."""
    oh = (h - 1) * s - 2 * p + k
    ow = (w - 1) * s - 2 * p + k
    oo = oh * ow
    sel = np.zeros((h * w, k * k * oo), np.float32)
    for kh in range(k):
        for kw in range(k):
            t = kh * k + kw
            for oy in range(oh):
                ty = oy + p - kh
                if ty < 0 or ty % s != 0 or ty // s >= h:
                    continue
                iy = ty // s
                for ox in range(ow):
                    tx = ox + p - kw
                    if tx < 0 or tx % s != 0 or tx // s >= w:
                        continue
                    ix = tx // s
                    sel[iy * w + ix, t * oo + oy * ow + ox] = 1.0
    return sel, oh, ow


def _pack_conv_weight(w_oihw, n):
    """Conv2d (Co,Ci,k,k) -> block-diag-over-batch, tap-stacked (n*Co, k^2*n*Ci)."""
    co, ci, k, _ = w_oihw.shape
    big = np.zeros((n * co, k * k * n * ci), np.float32)
    for t in range(k * k):
        kh, kw = t // k, t % k
        for b in range(n):
            big[b * co:(b + 1) * co,
                t * n * ci + b * ci: t * n * ci + (b + 1) * ci] = w_oihw[:, :, kh, kw]
    return big


def _pack_convT_weight(w_iohw, n):
    """ConvTranspose2d (Ci,Co,k,k) -> block-diag-over-batch (n*Co, k^2*n*Ci)."""
    ci, co, k, _ = w_iohw.shape
    big = np.zeros((n * co, k * k * n * ci), np.float32)
    for t in range(k * k):
        kh, kw = t // k, t % k
        for b in range(n):
            big[b * co:(b + 1) * co,
                t * n * ci + b * ci: t * n * ci + (b + 1) * ci] = w_iohw[:, :, kh, kw].T
    return big


# ------------------------------- fused kernel --------------------------------
def _vae_kernel(
    x_ref, eps_ref,
    sel1_ref, sel2_ref, selt1_ref, selt2_ref,
    w1_ref, w2_ref, wt1_ref, wt2_ref,
    wlin_ref, blin_ref, w0_ref, wout_ref, pvec_ref,
    y_ref, kld_ref,
):
    f32, bf16 = jnp.float32, jnp.bfloat16
    N = BATCH

    def rep(col):
        # (C, 1) per-channel column -> (N*C, 1), matching rows n*C + c.
        return jnp.concatenate([col] * N, axis=0)

    def conv1x1(w, x, b_col, cin):
        # 1x1 conv as f32 VPU broadcast-FMA, block-diagonal over the batch rows.
        outs = []
        for n in range(N):
            xs = x[n * cin:(n + 1) * cin, :]
            y = w[:, 0:1] * xs[0:1, :]
            for c in range(1, cin):
                y = y + w[:, c:c + 1] * xs[c:c + 1, :]
            outs.append(y + b_col)
        return jnp.concatenate(outs, axis=0)

    def conv_block(h, sel_ref, wbig_ref, b_col, k2, oo):
        # Conv / ConvTranspose as exactly two MXU matmuls:
        #   1) wide gather:  (N*Cin, HW) @ (HW, k2*OO)          -> (N*Cin, k2*OO)
        #   2) fused weight: (N*Co, k2*N*Cin) @ (k2*N*Cin, OO)  -> (N*Co, OO)
        # Activation is cast to bf16 ONCE per layer (selectors are 0/1, so the
        # gather result stays bf16-exact).
        g = jnp.dot(h.astype(bf16), sel_ref[...], preferred_element_type=f32)
        gb = g.astype(bf16)
        gs = jnp.concatenate([gb[:, t * oo:(t + 1) * oo] for t in range(k2)], axis=0)
        out = jnp.dot(wbig_ref[...], gs, preferred_element_type=f32)
        return out + rep(b_col)

    def bn_relu(y, gamma, beta, C):
        # BatchNorm2d (training-mode batch stats) + ReLU.  One-pass statistics:
        # sum and sum-of-squares over the lane axis, reduced across the N
        # batch sublane blocks; var = E[x^2] - mean^2, clamped at 0.
        L = y.shape[1]
        s = jnp.sum(y, axis=1, keepdims=True)
        ss = jnp.sum(y * y, axis=1, keepdims=True)
        s_c, ss_c = s[0:C], ss[0:C]
        for n in range(1, N):
            s_c = s_c + s[n * C:(n + 1) * C]
            ss_c = ss_c + ss[n * C:(n + 1) * C]
        inv = 1.0 / float(N * L)
        mean = s_c * inv
        var = jnp.maximum(ss_c * inv - mean * mean, 0.0)
        scale = gamma * lax.rsqrt(var + _BN_EPS)
        shift = beta - mean * scale
        return jnp.maximum(y * rep(scale) + rep(shift), 0.0)

    pv = pvec_ref[...]                     # packed per-channel bias/BN params
    x = x_ref[0]                           # (N*IN_CH, IMG*IMG) = (6, 256)
    eps = eps_ref[0]                       # (N, LATENT)       = (2, 128)

    # ------------------------------ Encoder ----------------------------------
    h0 = jnp.maximum(conv1x1(w0_ref[...], x, pv[0:DC, 0:1], IN_CH), 0.0)      # (8, 256)
    h1 = bn_relu(conv_block(h0, sel1_ref, w1_ref, pv[0:DC * 2, 1:2], 9, 64),
                 pv[0:DC * 2, 2:3], pv[0:DC * 2, 3:4], DC * 2)                # (16, 64)
    h2 = bn_relu(conv_block(h1, sel2_ref, w2_ref, pv[0:DC * 4, 4:5], 9, 16),
                 pv[0:DC * 4, 5:6], pv[0:DC * 4, 6:7], DC * 4)                # (32, 16)

    # nn.Flatten + chunk:  flat[n, c*S + s] = h2[n*C + c, s];  mu = channels
    # 0..C/2-1, log_sigma = channels C/2..C-1  (small lane-slice concats).
    C2 = DC * 2 ** DOWNS                     # 16 bottleneck channels
    S2 = h2.shape[1]                         # 16 spatial positions per sample
    half = C2 // 2
    mu = jnp.concatenate(
        [jnp.concatenate([h2[n * C2 + c: n * C2 + c + 1, :] for c in range(half)],
                         axis=1) for n in range(N)], axis=0)                  # (2, 128)
    logs = jnp.concatenate(
        [jnp.concatenate([h2[n * C2 + c: n * C2 + c + 1, :] for c in range(half, C2)],
                         axis=1) for n in range(N)], axis=0)                  # (2, 128)
    sigma = jnp.exp(logs)
    z = mu + eps * sigma
    kld_ref[0] = 0.5 * (sigma * sigma + mu * mu - 2.0 * logs - 1.0)

    # ------------------------------ Decoder ----------------------------------
    lin = jnp.dot(z.astype(bf16), wlin_ref[...],
                  preferred_element_type=f32) + blin_ref[...]                 # (2, 256)
    gdec = jnp.concatenate(                                                   # unflatten
        [lin[n:n + 1, c * S2:(c + 1) * S2] for n in range(N) for c in range(C2)],
        axis=0)                                                               # (32, 16)
    d1 = bn_relu(conv_block(gdec, selt1_ref, wt1_ref, pv[0:UC * 2, 7:8], 16, 64),
                 pv[0:UC * 2, 8:9], pv[0:UC * 2, 9:10], UC * 2)               # (16, 64)
    d2 = bn_relu(conv_block(d1, selt2_ref, wt2_ref, pv[0:UC, 10:11], 16, 256),
                 pv[0:UC, 11:12], pv[0:UC, 12:13], UC)                        # (8, 256)
    y_ref[0] = jnp.tanh(conv1x1(wout_ref[...], d2, pv[0:IN_CH, 13:14], UC))   # (6, 256)


# ----------------------------- parameters -------------------------------------
def init_params(key):
    ks = jax.random.split(key, 8)

    def w(k, shape, scale=0.1):
        return jax.random.normal(k, shape, jnp.float32) * scale

    return {
        # ---- Encoder ----
        "e_conv0_w": w(ks[0], (DC, IN_CH, 1, 1)), "e_conv0_b": jnp.zeros((DC,)),
        "e_conv1_w": w(ks[1], (DC * 2, DC, 3, 3)), "e_conv1_b": jnp.zeros((DC * 2,)),
        "e_bn1_g": jnp.ones((DC * 2,)), "e_bn1_b": jnp.zeros((DC * 2,)),
        "e_conv2_w": w(ks[2], (DC * 4, DC * 2, 3, 3)), "e_conv2_b": jnp.zeros((DC * 4,)),
        "e_bn2_g": jnp.ones((DC * 4,)), "e_bn2_b": jnp.zeros((DC * 4,)),
        # ---- Decoder ----
        "d_lin_w": w(ks[3], (HID, LATENT)), "d_lin_b": jnp.zeros((HID,)),
        "d_ct1_w": w(ks[4], (UC * 4, UC * 2, 4, 4)), "d_ct1_b": jnp.zeros((UC * 2,)),
        "d_bn1_g": jnp.ones((UC * 2,)), "d_bn1_b": jnp.zeros((UC * 2,)),
        "d_ct2_w": w(ks[5], (UC * 2, UC, 4, 4)), "d_ct2_b": jnp.zeros((UC,)),
        "d_bn2_g": jnp.ones((UC,)), "d_bn2_b": jnp.zeros((UC,)),
        "d_out_w": w(ks[6], (IN_CH, UC, 1, 1)), "d_out_b": jnp.zeros((IN_CH,)),
    }


def prepare_operands(params):
    """One-time host prep: per-sample selectors, fused block-diag weights (bf16),
    and one packed f32 array holding every tiny per-channel vector."""
    sel1, oh1, ow1 = _conv_sel_ps(IMG, IMG, 3, 2, 1)          # (256,  576)
    sel2, oh2, ow2 = _conv_sel_ps(oh1, ow1, 3, 2, 1)          # ( 64,  144)
    selt1, th1, tw1 = _convT_sel_ps(oh2, ow2, 4, 2, 1)        # ( 16, 1024)
    selt2, th2, tw2 = _convT_sel_ps(th1, tw1, 4, 2, 1)        # ( 64, 4096)
    assert (th2, tw2) == (IMG, IMG)
    assert DC * 2 ** DOWNS == UC * 2 ** DOWNS                 # shared bottleneck layout

    w1big = _pack_conv_weight(np.asarray(params["e_conv1_w"]), BATCH)    # (16,  72)
    w2big = _pack_conv_weight(np.asarray(params["e_conv2_w"]), BATCH)    # (32, 144)
    wt1big = _pack_convT_weight(np.asarray(params["d_ct1_w"]), BATCH)    # (16, 512)
    wt2big = _pack_convT_weight(np.asarray(params["d_ct2_w"]), BATCH)    # ( 8, 256)

    pvec = np.zeros((16, 16), np.float32)

    def put(col, vals):
        v = np.asarray(vals).reshape(-1)
        pvec[:v.shape[0], col] = v

    put(0, params["e_conv0_b"]); put(1, params["e_conv1_b"])
    put(2, params["e_bn1_g"]); put(3, params["e_bn1_b"])
    put(4, params["e_conv2_b"]); put(5, params["e_bn2_g"]); put(6, params["e_bn2_b"])
    put(7, params["d_ct1_b"]); put(8, params["d_bn1_g"]); put(9, params["d_bn1_b"])
    put(10, params["d_ct2_b"]); put(11, params["d_bn2_g"]); put(12, params["d_bn2_b"])
    put(13, params["d_out_b"])

    bf16, f32 = jnp.bfloat16, jnp.float32
    return {
        "sel1": jnp.asarray(sel1, bf16), "sel2": jnp.asarray(sel2, bf16),
        "selt1": jnp.asarray(selt1, bf16), "selt2": jnp.asarray(selt2, bf16),
        "w1big": jnp.asarray(w1big, bf16), "w2big": jnp.asarray(w2big, bf16),
        "wt1big": jnp.asarray(wt1big, bf16), "wt2big": jnp.asarray(wt2big, bf16),
        "wlinT": jnp.asarray(params["d_lin_w"]).T.astype(bf16),
        "blin": jnp.asarray(params["d_lin_b"]).reshape(1, -1).astype(f32),
        "w0": jnp.asarray(params["e_conv0_w"]).reshape(DC, IN_CH).astype(f32),
        "wout": jnp.asarray(params["d_out_w"]).reshape(IN_CH, UC).astype(f32),
        "pvec": jnp.asarray(pvec, f32),
    }


# ----------------------------- VAE forward ------------------------------------
def vae_forward(ops, x, noise):
    """x: (F, BATCH, IN_CH, IMG, IMG); noise: (F, BATCH, LATENT).
    F independent forwards run in one pallas_call; constants are DMA'd once."""
    nf, n, c, h, w = x.shape
    hw = h * w
    # Row-major NCHW flatten == the kernel's (N*C, H*W) layout: free reshape,
    # no host transposes in or out.
    x_rows = x.reshape(nf, n * c, hw).astype(jnp.float32)
    noise = noise.astype(jnp.float32)

    operands = (
        x_rows, noise,
        ops["sel1"], ops["sel2"], ops["selt1"], ops["selt2"],
        ops["w1big"], ops["w2big"], ops["wt1big"], ops["wt2big"],
        ops["wlinT"], ops["blin"], ops["w0"], ops["wout"], ops["pvec"],
    )

    def idx_fwd(f):
        return (f, 0, 0)

    def const_spec(arr):
        zeros = (0,) * arr.ndim
        return pl.BlockSpec(arr.shape, lambda f, _z=zeros: _z)   # never re-fetched

    in_specs = [
        pl.BlockSpec((1, n * c, hw), idx_fwd),
        pl.BlockSpec((1, n, LATENT), idx_fwd),
    ] + [const_spec(a) for a in operands[2:]]

    y_rows, kld = pl.pallas_call(
        _vae_kernel,
        out_shape=(
            jax.ShapeDtypeStruct((nf, n * c, hw), jnp.float32),
            jax.ShapeDtypeStruct((nf, n, LATENT), jnp.float32),
        ),
        grid=(nf,),
        in_specs=in_specs,
        out_specs=(
            pl.BlockSpec((1, n * c, hw), idx_fwd),
            pl.BlockSpec((1, n, LATENT), idx_fwd),
        ),
        compiler_params=pltpu.CompilerParams(
            dimension_semantics=("parallel",),   # v7x: 2 TCs split the forwards
        ),
    )(*operands)

    x_pred = y_rows.reshape(nf, n, c, h, w)
    return x_pred, kld


# --------------------------- pure-JAX reference --------------------------------
def _reference_forward(params, x, noise):
    dn = ("NCHW", "OIHW", "NCHW")

    def conv(x, w, b, s, p):
        y = lax.conv_general_dilated(x, w, (s, s), [(p, p), (p, p)],
                                     dimension_numbers=dn)
        return y + b.reshape(1, -1, 1, 1)

    def convT(x, w, b, s, p):
        k = w.shape[-1]
        w2 = jnp.flip(w, (2, 3)).transpose(1, 0, 2, 3)
        y = lax.conv_general_dilated(x, w2, (1, 1), [(k - 1 - p, k - 1 - p)] * 2,
                                     lhs_dilation=(s, s), dimension_numbers=dn)
        return y + b.reshape(1, -1, 1, 1)

    def bn_relu(y, g, b):
        mean = y.mean(axis=(0, 2, 3), keepdims=True)
        var = ((y - mean) ** 2).mean(axis=(0, 2, 3), keepdims=True)
        yn = (y - mean) / jnp.sqrt(var + _BN_EPS)
        return jnp.maximum(yn * g.reshape(1, -1, 1, 1) + b.reshape(1, -1, 1, 1), 0.0)

    h = jnp.maximum(conv(x, params["e_conv0_w"], params["e_conv0_b"], 1, 0), 0.0)
    h = bn_relu(conv(h, params["e_conv1_w"], params["e_conv1_b"], 2, 1),
                params["e_bn1_g"], params["e_bn1_b"])
    h = bn_relu(conv(h, params["e_conv2_w"], params["e_conv2_b"], 2, 1),
                params["e_bn2_g"], params["e_bn2_b"])
    flat = h.reshape(h.shape[0], -1)
    mu, log_sigma = jnp.split(flat, 2, axis=-1)
    sigma = jnp.exp(log_sigma)
    z = mu + noise * sigma
    kld = 0.5 * (sigma ** 2 + mu ** 2 - jnp.log(sigma ** 2) - 1.0)
    g = z @ params["d_lin_w"].T + params["d_lin_b"]
    g = g.reshape(-1, UC * 2 ** DOWNS, IMG // 2 ** DOWNS, IMG // 2 ** DOWNS)
    g = bn_relu(convT(g, params["d_ct1_w"], params["d_ct1_b"], 2, 1),
                params["d_bn1_g"], params["d_bn1_b"])
    g = bn_relu(convT(g, params["d_ct2_w"], params["d_ct2_b"], 2, 1),
                params["d_bn2_g"], params["d_bn2_b"])
    x_pred = jnp.tanh(conv(g, params["d_out_w"], params["d_out_b"], 1, 0))
    return x_pred, kld


# ----------------------------- main --------------------------------------------
if __name__ == "__main__":
    key = jax.random.PRNGKey(0)
    k_param, k_x, k_eps = jax.random.split(key, 3)
    params = init_params(k_param)
    ops = prepare_operands(params)

    NUM_FWD = 4   # independent forwards processed by one pallas_call (grid axis)
    x = jax.random.normal(k_x, (NUM_FWD, BATCH, IN_CH, IMG, IMG), jnp.float32)
    # TODO(synk): torch.randn_like is replaced by an explicit JAX normal noise
    # input (same distribution, different RNG stream than PyTorch).
    noise = jax.random.normal(k_eps, (NUM_FWD, BATCH, LATENT), jnp.float32)

    fwd = jax.jit(vae_forward)
    x_pred, kld = fwd(ops, x, noise)
    jax.block_until_ready((x_pred, kld))

    assert x_pred.shape == (NUM_FWD, BATCH, IN_CH, IMG, IMG), x_pred.shape
    assert kld.shape == (NUM_FWD, BATCH, LATENT), kld.shape
    assert bool(jnp.all(jnp.isfinite(x_pred))) and bool(jnp.all(jnp.isfinite(kld)))

    # Cross-check every forward against a pure-JAX reference (loose tolerance:
    # the kernel runs its GEMMs with bf16 MXU operands / f32 accumulation).
    ref_fn = jax.jit(_reference_forward)
    for f in range(NUM_FWD):
        ref_x, ref_kld = ref_fn(params, x[f], noise[f])
        assert bool(jnp.allclose(x_pred[f], ref_x, rtol=0.1, atol=0.1)), f
        assert bool(jnp.allclose(kld[f], ref_kld, rtol=0.3, atol=0.3)), f

    print("KERNEL_OK")
</pallas_src>

<mosaic_0001>
module attributes {stable_mosaic.version = 11 : i64} {
  func.func @_vae_kernel(%arg0: i32, %arg1: memref<1x6x256xf32, #tpu.memory_space<vmem>>, %arg2: memref<1x2x128xf32, #tpu.memory_space<vmem>>, %arg3: memref<256x576xbf16, #tpu.memory_space<vmem>>, %arg4: memref<64x144xbf16, #tpu.memory_space<vmem>>, %arg5: memref<16x1024xbf16, #tpu.memory_space<vmem>>, %arg6: memref<64x4096xbf16, #tpu.memory_space<vmem>>, %arg7: memref<16x72xbf16, #tpu.memory_space<vmem>>, %arg8: memref<32x144xbf16, #tpu.memory_space<vmem>>, %arg9: memref<16x512xbf16, #tpu.memory_space<vmem>>, %arg10: memref<8x256xbf16, #tpu.memory_space<vmem>>, %arg11: memref<128x256xbf16, #tpu.memory_space<vmem>>, %arg12: memref<1x256xf32, #tpu.memory_space<vmem>>, %arg13: memref<4x3xf32, #tpu.memory_space<vmem>>, %arg14: memref<3x4xf32, #tpu.memory_space<vmem>>, %arg15: memref<16x16xf32, #tpu.memory_space<vmem>>, %arg16: memref<1x6x256xf32, #tpu.memory_space<vmem>>, %arg17: memref<1x2x128xf32, #tpu.memory_space<vmem>>) attributes {dimension_semantics = [#tpu.dimension_semantics<parallel>], iteration_bounds = array<i64: 4>, scalar_prefetch = 0 : i64, scratch_operands = 0 : i64, tpu.core_type = #tpu.core_type<tc>, window_params = [{transform_indices = @transform_0, window_bounds = array<i64: 1, 6, 256>}, {transform_indices = @transform_1, window_bounds = array<i64: 1, 2, 128>}, {pipeline_mode = #tpu.pipeline_mode<synchronous>, transform_indices = @transform_2, window_bounds = array<i64: 256, 576>}, {pipeline_mode = #tpu.pipeline_mode<synchronous>, transform_indices = @transform_3, window_bounds = array<i64: 64, 144>}, {pipeline_mode = #tpu.pipeline_mode<synchronous>, transform_indices = @transform_4, window_bounds = array<i64: 16, 1024>}, {pipeline_mode = #tpu.pipeline_mode<synchronous>, transform_indices = @transform_5, window_bounds = array<i64: 64, 4096>}, {pipeline_mode = #tpu.pipeline_mode<synchronous>, transform_indices = @transform_6, window_bounds = array<i64: 16, 72>}, {pipeline_mode = #tpu.pipeline_mode<synchronous>, transform_indices = @transform_7, window_bounds = array<i64: 32, 144>}, {pipeline_mode = #tpu.pipeline_mode<synchronous>, transform_indices = @transform_8, window_bounds = array<i64: 16, 512>}, {pipeline_mode = #tpu.pipeline_mode<synchronous>, transform_indices = @transform_9, window_bounds = array<i64: 8, 256>}, {pipeline_mode = #tpu.pipeline_mode<synchronous>, transform_indices = @transform_10, window_bounds = array<i64: 128, 256>}, {pipeline_mode = #tpu.pipeline_mode<synchronous>, transform_indices = @transform_11, window_bounds = array<i64: 1, 256>}, {pipeline_mode = #tpu.pipeline_mode<synchronous>, transform_indices = @transform_12, window_bounds = array<i64: 4, 3>}, {pipeline_mode = #tpu.pipeline_mode<synchronous>, transform_indices = @transform_13, window_bounds = array<i64: 3, 4>}, {pipeline_mode = #tpu.pipeline_mode<synchronous>, transform_indices = @transform_14, window_bounds = array<i64: 16, 16>}, {transform_indices = @transform_15, window_bounds = array<i64: 1, 6, 256>}, {transform_indices = @transform_16, window_bounds = array<i64: 1, 2, 128>}]} {
    %c0 = arith.constant 0 : index
    %c0_0 = arith.constant 0 : index
    %0 = vector.load %arg15[%c0, %c0_0] : memref<16x16xf32, #tpu.memory_space<vmem>>, vector<16x16xf32>
    %c0_1 = arith.constant 0 : index
    %c0_2 = arith.constant 0 : index
    %c0_3 = arith.constant 0 : index
    %1 = vector.load %arg1[%c0_1, %c0_2, %c0_3] : memref<1x6x256xf32, #tpu.memory_space<vmem>>, vector<1x6x256xf32>
    %2 = vector.shape_cast %1 : vector<1x6x256xf32> to vector<6x256xf32>
    %c0_4 = arith.constant 0 : index
    %c0_5 = arith.constant 0 : index
    %c0_6 = arith.constant 0 : index
    %3 = vector.load %arg2[%c0_4, %c0_5, %c0_6] : memref<1x2x128xf32, #tpu.memory_space<vmem>>, vector<1x2x128xf32>
    %4 = vector.shape_cast %3 : vector<1x2x128xf32> to vector<2x128xf32>
    %c0_7 = arith.constant 0 : index
    %c0_8 = arith.constant 0 : index
    %5 = vector.load %arg13[%c0_7, %c0_8] : memref<4x3xf32, #tpu.memory_space<vmem>>, vector<4x3xf32>
    %6 = vector.extract_strided_slice %0 {offsets = [0, 0], sizes = [4, 1], strides = [1, 1]} : vector<16x16xf32> to vector<4x1xf32>
    %7 = vector.extract_strided_slice %2 {offsets = [0, 0], sizes = [3, 256], strides = [1, 1]} : vector<6x256xf32> to vector<3x256xf32>
    %8 = vector.extract_strided_slice %5 {offsets = [0, 0], sizes = [4, 1], strides = [1, 1]} : vector<4x3xf32> to vector<4x1xf32>
    %9 = vector.extract_strided_slice %7 {offsets = [0, 0], sizes = [1, 256], strides = [1, 1]} : vector<3x256xf32> to vector<1x256xf32>
    %10 = vector.broadcast %8 : vector<4x1xf32> to vector<4x256xf32>
    %11 = vector.broadcast %9 : vector<1x256xf32> to vector<4x256xf32>
    %12 = arith.mulf %10, %11 : vector<4x256xf32>
    %13 = vector.extract_strided_slice %5 {offsets = [0, 1], sizes = [4, 1], strides = [1, 1]} : vector<4x3xf32> to vector<4x1xf32>
    %14 = vector.extract_strided_slice %7 {offsets = [1, 0], sizes = [1, 256], strides = [1, 1]} : vector<3x256xf32> to vector<1x256xf32>
    %15 = vector.broadcast %13 : vector<4x1xf32> to vector<4x256xf32>
    %16 = vector.broadcast %14 : vector<1x256xf32> to vector<4x256xf32>
    %17 = arith.mulf %15, %16 : vector<4x256xf32>
    %18 = arith.addf %12, %17 : vector<4x256xf32>
    %19 = vector.extract_strided_slice %5 {offsets = [0, 2], sizes = [4, 1], strides = [1, 1]} : vector<4x3xf32> to vector<4x1xf32>
    %20 = vector.extract_strided_slice %7 {offsets = [2, 0], sizes = [1, 256], strides = [1, 1]} : vector<3x256xf32> to vector<1x256xf32>
    %21 = vector.broadcast %19 : vector<4x1xf32> to vector<4x256xf32>
    %22 = vector.broadcast %20 : vector<1x256xf32> to vector<4x256xf32>
    %23 = arith.mulf %21, %22 : vector<4x256xf32>
    %24 = arith.addf %18, %23 : vector<4x256xf32>
    %25 = vector.broadcast %6 : vector<4x1xf32> to vector<4x256xf32>
    %26 = arith.addf %24, %25 : vector<4x256xf32>
    %27 = vector.extract_strided_slice %2 {offsets = [3, 0], sizes = [3, 256], strides = [1, 1]} : vector<6x256xf32> to vector<3x256xf32>
    %28 = vector.extract_strided_slice %5 {offsets = [0, 0], sizes = [4, 1], strides = [1, 1]} : vector<4x3xf32> to vector<4x1xf32>
    %29 = vector.extract_strided_slice %27 {offsets = [0, 0], sizes = [1, 256], strides = [1, 1]} : vector<3x256xf32> to vector<1x256xf32>
    %30 = vector.broadcast %28 : vector<4x1xf32> to vector<4x256xf32>
    %31 = vector.broadcast %29 : vector<1x256xf32> to vector<4x256xf32>
    %32 = arith.mulf %30, %31 : vector<4x256xf32>
    %33 = vector.extract_strided_slice %5 {offsets = [0, 1], sizes = [4, 1], strides = [1, 1]} : vector<4x3xf32> to vector<4x1xf32>
    %34 = vector.extract_strided_slice %27 {offsets = [1, 0], sizes = [1, 256], strides = [1, 1]} : vector<3x256xf32> to vector<1x256xf32>
    %35 = vector.broadcast %33 : vector<4x1xf32> to vector<4x256xf32>
    %36 = vector.broadcast %34 : vector<1x256xf32> to vector<4x256xf32>
    %37 = arith.mulf %35, %36 : vector<4x256xf32>
    %38 = arith.addf %32, %37 : vector<4x256xf32>
    %39 = vector.extract_strided_slice %5 {offsets = [0, 2], sizes = [4, 1], strides = [1, 1]} : vector<4x3xf32> to vector<4x1xf32>
    %40 = vector.extract_strided_slice %27 {offsets = [2, 0], sizes = [1, 256], strides = [1, 1]} : vector<3x256xf32> to vector<1x256xf32>
    %41 = vector.broadcast %39 : vector<4x1xf32> to vector<4x256xf32>
    %42 = vector.broadcast %40 : vector<1x256xf32> to vector<4x256xf32>
    %43 = arith.mulf %41, %42 : vector<4x256xf32>
    %44 = arith.addf %38, %43 : vector<4x256xf32>
    %45 = vector.broadcast %6 : vector<4x1xf32> to vector<4x256xf32>
    %46 = arith.addf %44, %45 : vector<4x256xf32>
    %47 = tpu.concatenate %26, %46 in 0 : vector<4x256xf32>, vector<4x256xf32> -> vector<8x256xf32>
    %cst = arith.constant 0.000000e+00 : f32
    %48 = vector.broadcast %cst : f32 to vector<8x256xf32>
    %49 = arith.maximumf %47, %48 : vector<8x256xf32>
    %50 = vector.extract_strided_slice %0 {offsets = [0, 1], sizes = [8, 1], strides = [1, 1]} : vector<16x16xf32> to vector<8x1xf32>
    %51 = arith.truncf %49 : vector<8x256xf32> to vector<8x256xbf16>
    %c0_9 = arith.constant 0 : index
    %c0_10 = arith.constant 0 : index
    %52 = vector.load %arg3[%c0_9, %c0_10] : memref<256x576xbf16, #tpu.memory_space<vmem>>, vector<256x576xbf16>
    %cst_11 = arith.constant dense<0.000000e+00> : vector<8x576xf32>
    %53 = tpu.matmul %51, %52, %cst_11 {dimension_numbers = #tpu.dot_dimension_numbers<[1], [0], [0], [1], [0, 0, 1, 1], [], []>} : vector<8x256xbf16>, vector<256x576xbf16>, vector<8x576xf32> -> vector<8x576xf32>
    %54 = arith.truncf %53 : vector<8x576xf32> to vector<8x576xbf16>
    %55 = vector.extract_strided_slice %54 {offsets = [0, 0], sizes = [8, 64], strides = [1, 1]} : vector<8x576xbf16> to vector<8x64xbf16>
    %56 = vector.extract_strided_slice %54 {offsets = [0, 64], sizes = [8, 64], strides = [1, 1]} : vector<8x576xbf16> to vector<8x64xbf16>
    %57 = vector.extract_strided_slice %54 {offsets = [0, 128], sizes = [8, 64], strides = [1, 1]} : vector<8x576xbf16> to vector<8x64xbf16>
    %58 = vector.extract_strided_slice %54 {offsets = [0, 192], sizes = [8, 64], strides = [1, 1]} : vector<8x576xbf16> to vector<8x64xbf16>
    %59 = vector.extract_strided_slice %54 {offsets = [0, 256], sizes = [8, 64], strides = [1, 1]} : vector<8x576xbf16> to vector<8x64xbf16>
    %60 = vector.extract_strided_slice %54 {offsets = [0, 320], sizes = [8, 64], strides = [1, 1]} : vector<8x576xbf16> to vector<8x64xbf16>
    %61 = vector.extract_strided_slice %54 {offsets = [0, 384], sizes = [8, 64], strides = [1, 1]} : vector<8x576xbf16> to vector<8x64xbf16>
    %62 = vector.extract_strided_slice %54 {offsets = [0, 448], sizes = [8, 64], strides = [1, 1]} : vector<8x576xbf16> to vector<8x64xbf16>
    %63 = vector.extract_strided_slice %54 {offsets = [0, 512], sizes = [8, 64], strides = [1, 1]} : vector<8x576xbf16> to vector<8x64xbf16>
    %64 = tpu.concatenate %55, %56, %57, %58, %59, %60, %61, %62, %63 in 0 : vector<8x64xbf16>, vector<8x64xbf16>, vector<8x64xbf16>, vector<8x64xbf16>, vector<8x64xbf16>, vector<8x64xbf16>, vector<8x64xbf16>, vector<8x64xbf16>, vector<8x64xbf16> -> vector<72x64xbf16>
    %c0_12 = arith.constant 0 : index
    %c0_13 = arith.constant 0 : index
    %65 = vector.load %arg7[%c0_12, %c0_13] : memref<16x72xbf16, #tpu.memory_space<vmem>>, vector<16x72xbf16>
    %cst_14 = arith.constant dense<0.000000e+00> : vector<16x64xf32>
    %66 = tpu.matmul %65, %64, %cst_14 {dimension_numbers = #tpu.dot_dimension_numbers<[1], [0], [0], [1], [0, 0, 1, 1], [], []>} : vector<16x72xbf16>, vector<72x64xbf16>, vector<16x64xf32> -> vector<16x64xf32>
    %67 = tpu.concatenate %50, %50 in 0 : vector<8x1xf32>, vector<8x1xf32> -> vector<16x1xf32>
    %68 = vector.broadcast %67 : vector<16x1xf32> to vector<16x64xf32>
    %69 = arith.addf %66, %68 : vector<16x64xf32>
    %70 = vector.extract_strided_slice %0 {offsets = [0, 2], sizes = [8, 1], strides = [1, 1]} : vector<16x16xf32> to vector<8x1xf32>
    %71 = vector.extract_strided_slice %0 {offsets = [0, 3], sizes = [8, 1], strides = [1, 1]} : vector<16x16xf32> to vector<8x1xf32>
    %cst_15 = arith.constant dense<0.000000e+00> : vector<16xf32>
    %72 = vector.multi_reduction <add>, %69, %cst_15 [1] : vector<16x64xf32> to vector<16xf32>
    %73 = vector.shape_cast %72 : vector<16xf32> to vector<16x1xf32>
    %74 = arith.mulf %69, %69 : vector<16x64xf32>
    %cst_16 = arith.constant dense<0.000000e+00> : vector<16xf32>
    %75 = vector.multi_reduction <add>, %74, %cst_16 [1] : vector<16x64xf32> to vector<16xf32>
    %76 = vector.shape_cast %75 : vector<16xf32> to vector<16x1xf32>
    %77 = vector.extract_strided_slice %73 {offsets = [0, 0], sizes = [8, 1], strides = [1, 1]} : vector<16x1xf32> to vector<8x1xf32>
    %78 = vector.extract_strided_slice %76 {offsets = [0, 0], sizes = [8, 1], strides = [1, 1]} : vector<16x1xf32> to vector<8x1xf32>
    %79 = vector.extract_strided_slice %73 {offsets = [8, 0], sizes = [8, 1], strides = [1, 1]} : vector<16x1xf32> to vector<8x1xf32>
    %80 = arith.addf %77, %79 : vector<8x1xf32>
    %81 = vector.extract_strided_slice %76 {offsets = [8, 0], sizes = [8, 1], strides = [1, 1]} : vector<16x1xf32> to vector<8x1xf32>
    %82 = arith.addf %78, %81 : vector<8x1xf32>
    %cst_17 = arith.constant 7.812500e-03 : f32
    %83 = vector.broadcast %cst_17 : f32 to vector<8x1xf32>
    %84 = arith.mulf %80, %83 : vector<8x1xf32>
    %cst_18 = arith.constant 7.812500e-03 : f32
    %85 = vector.broadcast %cst_18 : f32 to vector<8x1xf32>
    %86 = arith.mulf %82, %85 : vector<8x1xf32>
    %87 = arith.mulf %84, %84 : vector<8x1xf32>
    %88 = arith.subf %86, %87 : vector<8x1xf32>
    %cst_19 = arith.constant 0.000000e+00 : f32
    %89 = vector.broadcast %cst_19 : f32 to vector<8x1xf32>
    %90 = arith.maximumf %88, %89 : vector<8x1xf32>
    %cst_20 = arith.constant 9.99999974E-6 : f32
    %91 = vector.broadcast %cst_20 : f32 to vector<8x1xf32>
    %92 = arith.addf %90, %91 : vector<8x1xf32>
    %93 = math.rsqrt %92 : vector<8x1xf32>
    %94 = arith.mulf %70, %93 : vector<8x1xf32>
    %95 = arith.mulf %84, %94 : vector<8x1xf32>
    %96 = arith.subf %71, %95 : vector<8x1xf32>
    %97 = tpu.concatenate %94, %94 in 0 : vector<8x1xf32>, vector<8x1xf32> -> vector<16x1xf32>
    %98 = vector.broadcast %97 : vector<16x1xf32> to vector<16x64xf32>
    %99 = arith.mulf %69, %98 : vector<16x64xf32>
    %100 = tpu.concatenate %96, %96 in 0 : vector<8x1xf32>, vector<8x1xf32> -> vector<16x1xf32>
    %101 = vector.broadcast %100 : vector<16x1xf32> to vector<16x64xf32>
    %102 = arith.addf %99, %101 : vector<16x64xf32>
    %cst_21 = arith.constant 0.000000e+00 : f32
    %103 = vector.broadcast %cst_21 : f32 to vector<16x64xf32>
    %104 = arith.maximumf %102, %103 : vector<16x64xf32>
    %105 = vector.extract_strided_slice %0 {offsets = [0, 4], sizes = [16, 1], strides = [1, 1]} : vector<16x16xf32> to vector<16x1xf32>
    %106 = arith.truncf %104 : vector<16x64xf32> to vector<16x64xbf16>
    %c0_22 = arith.constant 0 : index
    %c0_23 = arith.constant 0 : index
    %107 = vector.load %arg4[%c0_22, %c0_23] : memref<64x144xbf16, #tpu.memory_space<vmem>>, vector<64x144xbf16>
    %cst_24 = arith.constant dense<0.000000e+00> : vector<16x144xf32>
    %108 = tpu.matmul %106, %107, %cst_24 {dimension_numbers = #tpu.dot_dimension_numbers<[1], [0], [0], [1], [0, 0, 1, 1], [], []>} : vector<16x64xbf16>, vector<64x144xbf16>, vector<16x144xf32> -> vector<16x144xf32>
    %109 = arith.truncf %108 : vector<16x144xf32> to vector<16x144xbf16>
    %110 = vector.extract_strided_slice %109 {offsets = [0, 0], sizes = [16, 16], strides = [1, 1]} : vector<16x144xbf16> to vector<16x16xbf16>
    %111 = vector.extract_strided_slice %109 {offsets = [0, 16], sizes = [16, 16], strides = [1, 1]} : vector<16x144xbf16> to vector<16x16xbf16>
    %112 = vector.extract_strided_slice %109 {offsets = [0, 32], sizes = [16, 16], strides = [1, 1]} : vector<16x144xbf16> to vector<16x16xbf16>
    %113 = vector.extract_strided_slice %109 {offsets = [0, 48], sizes = [16, 16], strides = [1, 1]} : vector<16x144xbf16> to vector<16x16xbf16>
    %114 = vector.extract_strided_slice %109 {offsets = [0, 64], sizes = [16, 16], strides = [1, 1]} : vector<16x144xbf16> to vector<16x16xbf16>
    %115 = vector.extract_strided_slice %109 {offsets = [0, 80], sizes = [16, 16], strides = [1, 1]} : vector<16x144xbf16> to vector<16x16xbf16>
    %116 = vector.extract_strided_slice %109 {offsets = [0, 96], sizes = [16, 16], strides = [1, 1]} : vector<16x144xbf16> to vector<16x16xbf16>
    %117 = vector.extract_strided_slice %109 {offsets = [0, 112], sizes = [16, 16], strides = [1, 1]} : vector<16x144xbf16> to vector<16x16xbf16>
    %118 = vector.extract_strided_slice %109 {offsets = [0, 128], sizes = [16, 16], strides = [1, 1]} : vector<16x144xbf16> to vector<16x16xbf16>
    %119 = tpu.concatenate %110, %111, %112, %113, %114, %115, %116, %117, %118 in 0 : vector<16x16xbf16>, vector<16x16xbf16>, vector<16x16xbf16>, vector<16x16xbf16>, vector<16x16xbf16>, vector<16x16xbf16>, vector<16x16xbf16>, vector<16x16xbf16>, vector<16x16xbf16> -> vector<144x16xbf16>
    %c0_25 = arith.constant 0 : index
    %c0_26 = arith.constant 0 : index
    %120 = vector.load %arg8[%c0_25, %c0_26] : memref<32x144xbf16, #tpu.memory_space<vmem>>, vector<32x144xbf16>
    %cst_27 = arith.constant dense<0.000000e+00> : vector<32x16xf32>
    %121 = tpu.matmul %120, %119, %cst_27 {dimension_numbers = #tpu.dot_dimension_numbers<[1], [0], [0], [1], [0, 0, 1, 1], [], []>} : vector<32x144xbf16>, vector<144x16xbf16>, vector<32x16xf32> -> vector<32x16xf32>
    %122 = tpu.concatenate %105, %105 in 0 : vector<16x1xf32>, vector<16x1xf32> -> vector<32x1xf32>
    %123 = vector.broadcast %122 : vector<32x1xf32> to vector<32x16xf32>
    %124 = arith.addf %121, %123 : vector<32x16xf32>
    %125 = vector.extract_strided_slice %0 {offsets = [0, 5], sizes = [16, 1], strides = [1, 1]} : vector<16x16xf32> to vector<16x1xf32>
    %126 = vector.extract_strided_slice %0 {offsets = [0, 6], sizes = [16, 1], strides = [1, 1]} : vector<16x16xf32> to vector<16x1xf32>
    %cst_28 = arith.constant dense<0.000000e+00> : vector<32xf32>
    %127 = vector.multi_reduction <add>, %124, %cst_28 [1] : vector<32x16xf32> to vector<32xf32>
    %128 = vector.shape_cast %127 : vector<32xf32> to vector<32x1xf32>
    %129 = arith.mulf %124, %124 : vector<32x16xf32>
    %cst_29 = arith.constant dense<0.000000e+00> : vector<32xf32>
    %130 = vector.multi_reduction <add>, %129, %cst_29 [1] : vector<32x16xf32> to vector<32xf32>
    %131 = vector.shape_cast %130 : vector<32xf32> to vector<32x1xf32>
    %132 = vector.extract_strided_slice %128 {offsets = [0, 0], sizes = [16, 1], strides = [1, 1]} : vector<32x1xf32> to vector<16x1xf32>
    %133 = vector.extract_strided_slice %131 {offsets = [0, 0], sizes = [16, 1], strides = [1, 1]} : vector<32x1xf32> to vector<16x1xf32>
    %134 = vector.extract_strided_slice %128 {offsets = [16, 0], sizes = [16, 1], strides = [1, 1]} : vector<32x1xf32> to vector<16x1xf32>
    %135 = arith.addf %132, %134 : vector<16x1xf32>
    %136 = vector.extract_strided_slice %131 {offsets = [16, 0], sizes = [16, 1], strides = [1, 1]} : vector<32x1xf32> to vector<16x1xf32>
    %137 = arith.addf %133, %136 : vector<16x1xf32>
    %cst_30 = arith.constant 3.125000e-02 : f32
    %138 = vector.broadcast %cst_30 : f32 to vector<16x1xf32>
    %139 = arith.mulf %135, %138 : vector<16x1xf32>
    %cst_31 = arith.constant 3.125000e-02 : f32
    %140 = vector.broadcast %cst_31 : f32 to vector<16x1xf32>
    %141 = arith.mulf %137, %140 : vector<16x1xf32>
    %142 = arith.mulf %139, %139 : vector<16x1xf32>
    %143 = arith.subf %141, %142 : vector<16x1xf32>
    %cst_32 = arith.constant 0.000000e+00 : f32
    %144 = vector.broadcast %cst_32 : f32 to vector<16x1xf32>
    %145 = arith.maximumf %143, %144 : vector<16x1xf32>
    %cst_33 = arith.constant 9.99999974E-6 : f32
    %146 = vector.broadcast %cst_33 : f32 to vector<16x1xf32>
    %147 = arith.addf %145, %146 : vector<16x1xf32>
    %148 = math.rsqrt %147 : vector<16x1xf32>
    %149 = arith.mulf %125, %148 : vector<16x1xf32>
    %150 = arith.mulf %139, %149 : vector<16x1xf32>
    %151 = arith.subf %126, %150 : vector<16x1xf32>
    %152 = tpu.concatenate %149, %149 in 0 : vector<16x1xf32>, vector<16x1xf32> -> vector<32x1xf32>
    %153 = vector.broadcast %152 : vector<32x1xf32> to vector<32x16xf32>
    %154 = arith.mulf %124, %153 : vector<32x16xf32>
    %155 = tpu.concatenate %151, %151 in 0 : vector<16x1xf32>, vector<16x1xf32> -> vector<32x1xf32>
    %156 = vector.broadcast %155 : vector<32x1xf32> to vector<32x16xf32>
    %157 = arith.addf %154, %156 : vector<32x16xf32>
    %cst_34 = arith.constant 0.000000e+00 : f32
    %158 = vector.broadcast %cst_34 : f32 to vector<32x16xf32>
    %159 = arith.maximumf %157, %158 : vector<32x16xf32>
    %160 = vector.extract_strided_slice %159 {offsets = [0, 0], sizes = [1, 16], strides = [1, 1]} : vector<32x16xf32> to vector<1x16xf32>
    %161 = vector.extract_strided_slice %159 {offsets = [1, 0], sizes = [1, 16], strides = [1, 1]} : vector<32x16xf32> to vector<1x16xf32>
    %162 = vector.extract_strided_slice %159 {offsets = [2, 0], sizes = [1, 16], strides = [1, 1]} : vector<32x16xf32> to vector<1x16xf32>
    %163 = vector.extract_strided_slice %159 {offsets = [3, 0], sizes = [1, 16], strides = [1, 1]} : vector<32x16xf32> to vector<1x16xf32>
    %164 = vector.extract_strided_slice %159 {offsets = [4, 0], sizes = [1, 16], strides = [1, 1]} : vector<32x16xf32> to vector<1x16xf32>
    %165 = vector.extract_strided_slice %159 {offsets = [5, 0], sizes = [1, 16], strides = [1, 1]} : vector<32x16xf32> to vector<1x16xf32>
    %166 = vector.extract_strided_slice %159 {offsets = [6, 0], sizes = [1, 16], strides = [1, 1]} : vector<32x16xf32> to vector<1x16xf32>
    %167 = vector.extract_strided_slice %159 {offsets = [7, 0], sizes = [1, 16], strides = [1, 1]} : vector<32x16xf32> to vector<1x16xf32>
    %168 = tpu.concatenate %160, %161, %162, %163, %164, %165, %166, %167 in 1 : vector<1x16xf32>, vector<1x16xf32>, vector<1x16xf32>, vector<1x16xf32>, vector<1x16xf32>, vector<1x16xf32>, vector<1x16xf32>, vector<1x16xf32> -> vector<1x128xf32>
    %169 = vector.extract_strided_slice %159 {offsets = [16, 0], sizes = [1, 16], strides = [1, 1]} : vector<32x16xf32> to vector<1x16xf32>
    %170 = vector.extract_strided_slice %159 {offsets = [17, 0], sizes = [1, 16], strides = [1, 1]} : vector<32x16xf32> to vector<1x16xf32>
    %171 = vector.extract_strided_slice %159 {offsets = [18, 0], sizes = [1, 16], strides = [1, 1]} : vector<32x16xf32> to vector<1x16xf32>
    %172 = vector.extract_strided_slice %159 {offsets = [19, 0], sizes = [1, 16], strides = [1, 1]} : vector<32x16xf32> to vector<1x16xf32>
    %173 = vector.extract_strided_slice %159 {offsets = [20, 0], sizes = [1, 16], strides = [1, 1]} : vector<32x16xf32> to vector<1x16xf32>
    %174 = vector.extract_strided_slice %159 {offsets = [21, 0], sizes = [1, 16], strides = [1, 1]} : vector<32x16xf32> to vector<1x16xf32>
    %175 = vector.extract_strided_slice %159 {offsets = [22, 0], sizes = [1, 16], strides = [1, 1]} : vector<32x16xf32> to vector<1x16xf32>
    %176 = vector.extract_strided_slice %159 {offsets = [23, 0], sizes = [1, 16], strides = [1, 1]} : vector<32x16xf32> to vector<1x16xf32>
    %177 = tpu.concatenate %169, %170, %171, %172, %173, %174, %175, %176 in 1 : vector<1x16xf32>, vector<1x16xf32>, vector<1x16xf32>, vector<1x16xf32>, vector<1x16xf32>, vector<1x16xf32>, vector<1x16xf32>, vector<1x16xf32> -> vector<1x128xf32>
    %178 = tpu.concatenate %168, %177 in 0 : vector<1x128xf32>, vector<1x128xf32> -> vector<2x128xf32>
    %179 = vector.extract_strided_slice %159 {offsets = [8, 0], sizes = [1, 16], strides = [1, 1]} : vector<32x16xf32> to vector<1x16xf32>
    %180 = vector.extract_strided_slice %159 {offsets = [9, 0], sizes = [1, 16], strides = [1, 1]} : vector<32x16xf32> to vector<1x16xf32>
    %181 = vector.extract_strided_slice %159 {offsets = [10, 0], sizes = [1, 16], strides = [1, 1]} : vector<32x16xf32> to vector<1x16xf32>
    %182 = vector.extract_strided_slice %159 {offsets = [11, 0], sizes = [1, 16], strides = [1, 1]} : vector<32x16xf32> to vector<1x16xf32>
    %183 = vector.extract_strided_slice %159 {offsets = [12, 0], sizes = [1, 16], strides = [1, 1]} : vector<32x16xf32> to vector<1x16xf32>
    %184 = vector.extract_strided_slice %159 {offsets = [13, 0], sizes = [1, 16], strides = [1, 1]} : vector<32x16xf32> to vector<1x16xf32>
    %185 = vector.extract_strided_slice %159 {offsets = [14, 0], sizes = [1, 16], strides = [1, 1]} : vector<32x16xf32> to vector<1x16xf32>
    %186 = vector.extract_strided_slice %159 {offsets = [15, 0], sizes = [1, 16], strides = [1, 1]} : vector<32x16xf32> to vector<1x16xf32>
    %187 = tpu.concatenate %179, %180, %181, %182, %183, %184, %185, %186 in 1 : vector<1x16xf32>, vector<1x16xf32>, vector<1x16xf32>, vector<1x16xf32>, vector<1x16xf32>, vector<1x16xf32>, vector<1x16xf32>, vector<1x16xf32> -> vector<1x128xf32>
    %188 = vector.extract_strided_slice %159 {offsets = [24, 0], sizes = [1, 16], strides = [1, 1]} : vector<32x16xf32> to vector<1x16xf32>
    %189 = vector.extract_strided_slice %159 {offsets = [25, 0], sizes = [1, 16], strides = [1, 1]} : vector<32x16xf32> to vector<1x16xf32>
    %190 = vector.extract_strided_slice %159 {offsets = [26, 0], sizes = [1, 16], strides = [1, 1]} : vector<32x16xf32> to vector<1x16xf32>
    %191 = vector.extract_strided_slice %159 {offsets = [27, 0], sizes = [1, 16], strides = [1, 1]} : vector<32x16xf32> to vector<1x16xf32>
    %192 = vector.extract_strided_slice %159 {offsets = [28, 0], sizes = [1, 16], strides = [1, 1]} : vector<32x16xf32> to vector<1x16xf32>
    %193 = vector.extract_strided_slice %159 {offsets = [29, 0], sizes = [1, 16], strides = [1, 1]} : vector<32x16xf32> to vector<1x16xf32>
    %194 = vector.extract_strided_slice %159 {offsets = [30, 0], sizes = [1, 16], strides = [1, 1]} : vector<32x16xf32> to vector<1x16xf32>
    %195 = vector.extract_strided_slice %159 {offsets = [31, 0], sizes = [1, 16], strides = [1, 1]} : vector<32x16xf32> to vector<1x16xf32>
    %196 = tpu.concatenate %188, %189, %190, %191, %192, %193, %194, %195 in 1 : vector<1x16xf32>, vector<1x16xf32>, vector<1x16xf32>, vector<1x16xf32>, vector<1x16xf32>, vector<1x16xf32>, vector<1x16xf32>, vector<1x16xf32> -> vector<1x128xf32>
    %197 = tpu.concatenate %187, %196 in 0 : vector<1x128xf32>, vector<1x128xf32> -> vector<2x128xf32>
    %198 = math.exp %197 : vector<2x128xf32>
    %199 = arith.mulf %4, %198 : vector<2x128xf32>
    %200 = arith.addf %178, %199 : vector<2x128xf32>
    %201 = arith.mulf %198, %198 : vector<2x128xf32>
    %202 = arith.mulf %178, %178 : vector<2x128xf32>
    %203 = arith.addf %201, %202 : vector<2x128xf32>
    %cst_35 = arith.constant 2.000000e+00 : f32
    %204 = vector.broadcast %cst_35 : f32 to vector<2x128xf32>
    %205 = arith.mulf %204, %197 : vector<2x128xf32>
    %206 = arith.subf %203, %205 : vector<2x128xf32>
    %cst_36 = arith.constant 1.000000e+00 : f32
    %207 = vector.broadcast %cst_36 : f32 to vector<2x128xf32>
    %208 = arith.subf %206, %207 : vector<2x128xf32>
    %cst_37 = arith.constant 5.000000e-01 : f32
    %209 = vector.broadcast %cst_37 : f32 to vector<2x128xf32>
    %210 = arith.mulf %209, %208 : vector<2x128xf32>
    %c0_38 = arith.constant 0 : index
    %c0_39 = arith.constant 0 : index
    %c0_40 = arith.constant 0 : index
    %211 = vector.load %arg17[%c0_38, %c0_39, %c0_40] : memref<1x2x128xf32, #tpu.memory_space<vmem>>, vector<1x2x128xf32>
    %212 = vector.shape_cast %211 : vector<1x2x128xf32> to vector<2x128xf32>
    %213 = vector.shape_cast %210 : vector<2x128xf32> to vector<1x2x128xf32>
    tpu.vector_store %arg17[%c0_38, %c0_39, %c0_40], %213 {strides = array<i32>} : memref<1x2x128xf32, #tpu.memory_space<vmem>>, vector<1x2x128xf32>,
    %214 = arith.truncf %200 : vector<2x128xf32> to vector<2x128xbf16>
    %c0_41 = arith.constant 0 : index
    %c0_42 = arith.constant 0 : index
    %215 = vector.load %arg11[%c0_41, %c0_42] : memref<128x256xbf16, #tpu.memory_space<vmem>>, vector<128x256xbf16>
    %cst_43 = arith.constant dense<0.000000e+00> : vector<2x256xf32>
    %216 = tpu.matmul %214, %215, %cst_43 {dimension_numbers = #tpu.dot_dimension_numbers<[1], [0], [0], [1], [0, 0, 1, 1], [], []>} : vector<2x128xbf16>, vector<128x256xbf16>, vector<2x256xf32> -> vector<2x256xf32>
    %c0_44 = arith.constant 0 : index
    %c0_45 = arith.constant 0 : index
    %217 = vector.load %arg12[%c0_44, %c0_45] : memref<1x256xf32, #tpu.memory_space<vmem>>, vector<1x256xf32>
    %218 = vector.broadcast %217 : vector<1x256xf32> to vector<2x256xf32>
    %219 = arith.addf %216, %218 : vector<2x256xf32>
    %220 = vector.extract_strided_slice %219 {offsets = [0, 0], sizes = [1, 16], strides = [1, 1]} : vector<2x256xf32> to vector<1x16xf32>
    %221 = vector.extract_strided_slice %219 {offsets = [0, 16], sizes = [1, 16], strides = [1, 1]} : vector<2x256xf32> to vector<1x16xf32>
    %222 = vector.extract_strided_slice %219 {offsets = [0, 32], sizes = [1, 16], strides = [1, 1]} : vector<2x256xf32> to vector<1x16xf32>
    %223 = vector.extract_strided_slice %219 {offsets = [0, 48], sizes = [1, 16], strides = [1, 1]} : vector<2x256xf32> to vector<1x16xf32>
    %224 = vector.extract_strided_slice %219 {offsets = [0, 64], sizes = [1, 16], strides = [1, 1]} : vector<2x256xf32> to vector<1x16xf32>
    %225 = vector.extract_strided_slice %219 {offsets = [0, 80], sizes = [1, 16], strides = [1, 1]} : vector<2x256xf32> to vector<1x16xf32>
    %226 = vector.extract_strided_slice %219 {offsets = [0, 96], sizes = [1, 16], strides = [1, 1]} : vector<2x256xf32> to vector<1x16xf32>
    %227 = vector.extract_strided_slice %219 {offsets = [0, 112], sizes = [1, 16], strides = [1, 1]} : vector<2x256xf32> to vector<1x16xf32>
    %228 = vector.extract_strided_slice %219 {offsets = [0, 128], sizes = [1, 16], strides = [1, 1]} : vector<2x256xf32> to vector<1x16xf32>
    %229 = vector.extract_strided_slice %219 {offsets = [0, 144], sizes = [1, 16], strides = [1, 1]} : vector<2x256xf32> to vector<1x16xf32>
    %230 = vector.extract_strided_slice %219 {offsets = [0, 160], sizes = [1, 16], strides = [1, 1]} : vector<2x256xf32> to vector<1x16xf32>
    %231 = vector.extract_strided_slice %219 {offsets = [0, 176], sizes = [1, 16], strides = [1, 1]} : vector<2x256xf32> to vector<1x16xf32>
    %232 = vector.extract_strided_slice %219 {offsets = [0, 192], sizes = [1, 16], strides = [1, 1]} : vector<2x256xf32> to vector<1x16xf32>
    %233 = vector.extract_strided_slice %219 {offsets = [0, 208], sizes = [1, 16], strides = [1, 1]} : vector<2x256xf32> to vector<1x16xf32>
    %234 = vector.extract_strided_slice %219 {offsets = [0, 224], sizes = [1, 16], strides = [1, 1]} : vector<2x256xf32> to vector<1x16xf32>
    %235 = vector.extract_strided_slice %219 {offsets = [0, 240], sizes = [1, 16], strides = [1, 1]} : vector<2x256xf32> to vector<1x16xf32>
    %236 = vector.extract_strided_slice %219 {offsets = [1, 0], sizes = [1, 16], strides = [1, 1]} : vector<2x256xf32> to vector<1x16xf32>
    %237 = vector.extract_strided_slice %219 {offsets = [1, 16], sizes = [1, 16], strides = [1, 1]} : vector<2x256xf32> to vector<1x16xf32>
    %238 = vector.extract_strided_slice %219 {offsets = [1, 32], sizes = [1, 16], strides = [1, 1]} : vector<2x256xf32> to vector<1x16xf32>
    %239 = vector.extract_strided_slice %219 {offsets = [1, 48], sizes = [1, 16], strides = [1, 1]} : vector<2x256xf32> to vector<1x16xf32>
    %240 = vector.extract_strided_slice %219 {offsets = [1, 64], sizes = [1, 16], strides = [1, 1]} : vector<2x256xf32> to vector<1x16xf32>
    %241 = vector.extract_strided_slice %219 {offsets = [1, 80], sizes = [1, 16], strides = [1, 1]} : vector<2x256xf32> to vector<1x16xf32>
    %242 = vector.extract_strided_slice %219 {offsets = [1, 96], sizes = [1, 16], strides = [1, 1]} : vector<2x256xf32> to vector<1x16xf32>
    %243 = vector.extract_strided_slice %219 {offsets = [1, 112], sizes = [1, 16], strides = [1, 1]} : vector<2x256xf32> to vector<1x16xf32>
    %244 = vector.extract_strided_slice %219 {offsets = [1, 128], sizes = [1, 16], strides = [1, 1]} : vector<2x256xf32> to vector<1x16xf32>
    %245 = vector.extract_strided_slice %219 {offsets = [1, 144], sizes = [1, 16], strides = [1, 1]} : vector<2x256xf32> to vector<1x16xf32>
    %246 = vector.extract_strided_slice %219 {offsets = [1, 160], sizes = [1, 16], strides = [1, 1]} : vector<2x256xf32> to vector<1x16xf32>
    %247 = vector.extract_strided_slice %219 {offsets = [1, 176], sizes = [1, 16], strides = [1, 1]} : vector<2x256xf32> to vector<1x16xf32>
    %248 = vector.extract_strided_slice %219 {offsets = [1, 192], sizes = [1, 16], strides = [1, 1]} : vector<2x256xf32> to vector<1x16xf32>
    %249 = vector.extract_strided_slice %219 {offsets = [1, 208], sizes = [1, 16], strides = [1, 1]} : vector<2x256xf32> to vector<1x16xf32>
    %250 = vector.extract_strided_slice %219 {offsets = [1, 224], sizes = [1, 16], strides = [1, 1]} : vector<2x256xf32> to vector<1x16xf32>
    %251 = vector.extract_strided_slice %219 {offsets = [1, 240], sizes = [1, 16], strides = [1, 1]} : vector<2x256xf32> to vector<1x16xf32>
    %252 = tpu.concatenate %220, %221, %222, %223, %224, %225, %226, %227, %228, %229, %230, %231, %232, %233, %234, %235 in 0 : vector<1x16xf32>, vector<1x16xf32>, vector<1x16xf32>, vector<1x16xf32>, vector<1x16xf32>, vector<1x16xf32>, vector<1x16xf32>, vector<1x16xf32>, vector<1x16xf32>, vector<1x16xf32>, vector<1x16xf32>, vector<1x16xf32>, vector<1x16xf32>, vector<1x16xf32>, vector<1x16xf32>, vector<1x16xf32> -> vector<16x16xf32>
    %253 = tpu.concatenate %236, %237, %238, %239, %240, %241, %242, %243, %244, %245, %246, %247, %248, %249, %250, %251 in 0 : vector<1x16xf32>, vector<1x16xf32>, vector<1x16xf32>, vector<1x16xf32>, vector<1x16xf32>, vector<1x16xf32>, vector<1x16xf32>, vector<1x16xf32>, vector<1x16xf32>, vector<1x16xf32>, vector<1x16xf32>, vector<1x16xf32>, vector<1x16xf32>, vector<1x16xf32>, vector<1x16xf32>, vector<1x16xf32> -> vector<16x16xf32>
    %254 = tpu.concatenate %252, %253 in 0 : vector<16x16xf32>, vector<16x16xf32> -> vector<32x16xf32>
    %255 = vector.extract_strided_slice %0 {offsets = [0, 7], sizes = [8, 1], strides = [1, 1]} : vector<16x16xf32> to vector<8x1xf32>
    %256 = arith.truncf %254 : vector<32x16xf32> to vector<32x16xbf16>
    %c0_46 = arith.constant 0 : index
    %c0_47 = arith.constant 0 : index
    %257 = vector.load %arg5[%c0_46, %c0_47] : memref<16x1024xbf16, #tpu.memory_space<vmem>>, vector<16x1024xbf16>
    %cst_48 = arith.constant dense<0.000000e+00> : vector<32x1024xf32>
    %258 = tpu.matmul %256, %257, %cst_48 {dimension_numbers = #tpu.dot_dimension_numbers<[1], [0], [0], [1], [0, 0, 1, 1], [], []>} : vector<32x16xbf16>, vector<16x1024xbf16>, vector<32x1024xf32> -> vector<32x1024xf32>
    %259 = arith.truncf %258 : vector<32x1024xf32> to vector<32x1024xbf16>
    %260 = vector.extract_strided_slice %259 {offsets = [0, 0], sizes = [32, 64], strides = [1, 1]} : vector<32x1024xbf16> to vector<32x64xbf16>
    %261 = vector.extract_strided_slice %259 {offsets = [0, 64], sizes = [32, 64], strides = [1, 1]} : vector<32x1024xbf16> to vector<32x64xbf16>
    %262 = vector.extract_strided_slice %259 {offsets = [0, 128], sizes = [32, 64], strides = [1, 1]} : vector<32x1024xbf16> to vector<32x64xbf16>
    %263 = vector.extract_strided_slice %259 {offsets = [0, 192], sizes = [32, 64], strides = [1, 1]} : vector<32x1024xbf16> to vector<32x64xbf16>
    %264 = vector.extract_strided_slice %259 {offsets = [0, 256], sizes = [32, 64], strides = [1, 1]} : vector<32x1024xbf16> to vector<32x64xbf16>
    %265 = vector.extract_strided_slice %259 {offsets = [0, 320], sizes = [32, 64], strides = [1, 1]} : vector<32x1024xbf16> to vector<32x64xbf16>
    %266 = vector.extract_strided_slice %259 {offsets = [0, 384], sizes = [32, 64], strides = [1, 1]} : vector<32x1024xbf16> to vector<32x64xbf16>
    %267 = vector.extract_strided_slice %259 {offsets = [0, 448], sizes = [32, 64], strides = [1, 1]} : vector<32x1024xbf16> to vector<32x64xbf16>
    %268 = vector.extract_strided_slice %259 {offsets = [0, 512], sizes = [32, 64], strides = [1, 1]} : vector<32x1024xbf16> to vector<32x64xbf16>
    %269 = vector.extract_strided_slice %259 {offsets = [0, 576], sizes = [32, 64], strides = [1, 1]} : vector<32x1024xbf16> to vector<32x64xbf16>
    %270 = vector.extract_strided_slice %259 {offsets = [0, 640], sizes = [32, 64], strides = [1, 1]} : vector<32x1024xbf16> to vector<32x64xbf16>
    %271 = vector.extract_strided_slice %259 {offsets = [0, 704], sizes = [32, 64], strides = [1, 1]} : vector<32x1024xbf16> to vector<32x64xbf16>
    %272 = vector.extract_strided_slice %259 {offsets = [0, 768], sizes = [32, 64], strides = [1, 1]} : vector<32x1024xbf16> to vector<32x64xbf16>
    %273 = vector.extract_strided_slice %259 {offsets = [0, 832], sizes = [32, 64], strides = [1, 1]} : vector<32x1024xbf16> to vector<32x64xbf16>
    %274 = vector.extract_strided_slice %259 {offsets = [0, 896], sizes = [32, 64], strides = [1, 1]} : vector<32x1024xbf16> to vector<32x64xbf16>
    %275 = vector.extract_strided_slice %259 {offsets = [0, 960], sizes = [32, 64], strides = [1, 1]} : vector<32x1024xbf16> to vector<32x64xbf16>
    %276 = tpu.concatenate %260, %261, %262, %263, %264, %265, %266, %267, %268, %269, %270, %271, %272, %273, %274, %275 in 0 : vector<32x64xbf16>, vector<32x64xbf16>, vector<32x64xbf16>, vector<32x64xbf16>, vector<32x64xbf16>, vector<32x64xbf16>, vector<32x64xbf16>, vector<32x64xbf16>, vector<32x64xbf16>, vector<32x64xbf16>, vector<32x64xbf16>, vector<32x64xbf16>, vector<32x64xbf16>, vector<32x64xbf16>, vector<32x64xbf16>, vector<32x64xbf16> -> vector<512x64xbf16>
    %c0_49 = arith.constant 0 : index
    %c0_50 = arith.constant 0 : index
    %277 = vector.load %arg9[%c0_49, %c0_50] : memref<16x512xbf16, #tpu.memory_space<vmem>>, vector<16x512xbf16>
    %cst_51 = arith.constant dense<0.000000e+00> : vector<16x64xf32>
    %278 = tpu.matmul %277, %276, %cst_51 {dimension_numbers = #tpu.dot_dimension_numbers<[1], [0], [0], [1], [0, 0, 1, 1], [], []>} : vector<16x512xbf16>, vector<512x64xbf16>, vector<16x64xf32> -> vector<16x64xf32>
    %279 = tpu.concatenate %255, %255 in 0 : vector<8x1xf32>, vector<8x1xf32> -> vector<16x1xf32>
    %280 = vector.broadcast %279 : vector<16x1xf32> to vector<16x64xf32>
    %281 = arith.addf %278, %280 : vector<16x64xf32>
    %282 = vector.extract_strided_slice %0 {offsets = [0, 8], sizes = [8, 1], strides = [1, 1]} : vector<16x16xf32> to vector<8x1xf32>
    %283 = vector.extract_strided_slice %0 {offsets = [0, 9], sizes = [8, 1], strides = [1, 1]} : vector<16x16xf32> to vector<8x1xf32>
    %cst_52 = arith.constant dense<0.000000e+00> : vector<16xf32>
    %284 = vector.multi_reduction <add>, %281, %cst_52 [1] : vector<16x64xf32> to vector<16xf32>
    %285 = vector.shape_cast %284 : vector<16xf32> to vector<16x1xf32>
    %286 = arith.mulf %281, %281 : vector<16x64xf32>
    %cst_53 = arith.constant dense<0.000000e+00> : vector<16xf32>
    %287 = vector.multi_reduction <add>, %286, %cst_53 [1] : vector<16x64xf32> to vector<16xf32>
    %288 = vector.shape_cast %287 : vector<16xf32> to vector<16x1xf32>
    %289 = vector.extract_strided_slice %285 {offsets = [0, 0], sizes = [8, 1], strides = [1, 1]} : vector<16x1xf32> to vector<8x1xf32>
    %290 = vector.extract_strided_slice %288 {offsets = [0, 0], sizes = [8, 1], strides = [1, 1]} : vector<16x1xf32> to vector<8x1xf32>
    %291 = vector.extract_strided_slice %285 {offsets = [8, 0], sizes = [8, 1], strides = [1, 1]} : vector<16x1xf32> to vector<8x1xf32>
    %292 = arith.addf %289, %291 : vector<8x1xf32>
    %293 = vector.extract_strided_slice %288 {offsets = [8, 0], sizes = [8, 1], strides = [1, 1]} : vector<16x1xf32> to vector<8x1xf32>
    %294 = arith.addf %290, %293 : vector<8x1xf32>
    %cst_54 = arith.constant 7.812500e-03 : f32
    %295 = vector.broadcast %cst_54 : f32 to vector<8x1xf32>
    %296 = arith.mulf %292, %295 : vector<8x1xf32>
    %cst_55 = arith.constant 7.812500e-03 : f32
    %297 = vector.broadcast %cst_55 : f32 to vector<8x1xf32>
    %298 = arith.mulf %294, %297 : vector<8x1xf32>
    %299 = arith.mulf %296, %296 : vector<8x1xf32>
    %300 = arith.subf %298, %299 : vector<8x1xf32>
    %cst_56 = arith.constant 0.000000e+00 : f32
    %301 = vector.broadcast %cst_56 : f32 to vector<8x1xf32>
    %302 = arith.maximumf %300, %301 : vector<8x1xf32>
    %cst_57 = arith.constant 9.99999974E-6 : f32
    %303 = vector.broadcast %cst_57 : f32 to vector<8x1xf32>
    %304 = arith.addf %302, %303 : vector<8x1xf32>
    %305 = math.rsqrt %304 : vector<8x1xf32>
    %306 = arith.mulf %282, %305 : vector<8x1xf32>
    %307 = arith.mulf %296, %306 : vector<8x1xf32>
    %308 = arith.subf %283, %307 : vector<8x1xf32>
    %309 = tpu.concatenate %306, %306 in 0 : vector<8x1xf32>, vector<8x1xf32> -> vector<16x1xf32>
    %310 = vector.broadcast %309 : vector<16x1xf32> to vector<16x64xf32>
    %311 = arith.mulf %281, %310 : vector<16x64xf32>
    %312 = tpu.concatenate %308, %308 in 0 : vector<8x1xf32>, vector<8x1xf32> -> vector<16x1xf32>
    %313 = vector.broadcast %312 : vector<16x1xf32> to vector<16x64xf32>
    %314 = arith.addf %311, %313 : vector<16x64xf32>
    %cst_58 = arith.constant 0.000000e+00 : f32
    %315 = vector.broadcast %cst_58 : f32 to vector<16x64xf32>
    %316 = arith.maximumf %314, %315 : vector<16x64xf32>
    %317 = vector.extract_strided_slice %0 {offsets = [0, 10], sizes = [4, 1], strides = [1, 1]} : vector<16x16xf32> to vector<4x1xf32>
    %318 = arith.truncf %316 : vector<16x64xf32> to vector<16x64xbf16>
    %c0_59 = arith.constant 0 : index
    %c0_60 = arith.constant 0 : index
    %319 = vector.load %arg6[%c0_59, %c0_60] : memref<64x4096xbf16, #tpu.memory_space<vmem>>, vector<64x4096xbf16>
    %cst_61 = arith.constant dense<0.000000e+00> : vector<16x4096xf32>
    %320 = tpu.matmul %318, %319, %cst_61 {dimension_numbers = #tpu.dot_dimension_numbers<[1], [0], [0], [1], [0, 0, 1, 1], [], []>} : vector<16x64xbf16>, vector<64x4096xbf16>, vector<16x4096xf32> -> vector<16x4096xf32>
    %321 = arith.truncf %320 : vector<16x4096xf32> to vector<16x4096xbf16>
    %322 = vector.extract_strided_slice %321 {offsets = [0, 0], sizes = [16, 256], strides = [1, 1]} : vector<16x4096xbf16> to vector<16x256xbf16>
    %323 = vector.extract_strided_slice %321 {offsets = [0, 256], sizes = [16, 256], strides = [1, 1]} : vector<16x4096xbf16> to vector<16x256xbf16>
    %324 = vector.extract_strided_slice %321 {offsets = [0, 512], sizes = [16, 256], strides = [1, 1]} : vector<16x4096xbf16> to vector<16x256xbf16>
    %325 = vector.extract_strided_slice %321 {offsets = [0, 768], sizes = [16, 256], strides = [1, 1]} : vector<16x4096xbf16> to vector<16x256xbf16>
    %326 = vector.extract_strided_slice %321 {offsets = [0, 1024], sizes = [16, 256], strides = [1, 1]} : vector<16x4096xbf16> to vector<16x256xbf16>
    %327 = vector.extract_strided_slice %321 {offsets = [0, 1280], sizes = [16, 256], strides = [1, 1]} : vector<16x4096xbf16> to vector<16x256xbf16>
    %328 = vector.extract_strided_slice %321 {offsets = [0, 1536], sizes = [16, 256], strides = [1, 1]} : vector<16x4096xbf16> to vector<16x256xbf16>
    %329 = vector.extract_strided_slice %321 {offsets = [0, 1792], sizes = [16, 256], strides = [1, 1]} : vector<16x4096xbf16> to vector<16x256xbf16>
    %330 = vector.extract_strided_slice %321 {offsets = [0, 2048], sizes = [16, 256], strides = [1, 1]} : vector<16x4096xbf16> to vector<16x256xbf16>
    %331 = vector.extract_strided_slice %321 {offsets = [0, 2304], sizes = [16, 256], strides = [1, 1]} : vector<16x4096xbf16> to vector<16x256xbf16>
    %332 = vector.extract_strided_slice %321 {offsets = [0, 2560], sizes = [16, 256], strides = [1, 1]} : vector<16x4096xbf16> to vector<16x256xbf16>
    %333 = vector.extract_strided_slice %321 {offsets = [0, 2816], sizes = [16, 256], strides = [1, 1]} : vector<16x4096xbf16> to vector<16x256xbf16>
    %334 = vector.extract_strided_slice %321 {offsets = [0, 3072], sizes = [16, 256], strides = [1, 1]} : vector<16x4096xbf16> to vector<16x256xbf16>
    %335 = vector.extract_strided_slice %321 {offsets = [0, 3328], sizes = [16, 256], strides = [1, 1]} : vector<16x4096xbf16> to vector<16x256xbf16>
    %336 = vector.extract_strided_slice %321 {offsets = [0, 3584], sizes = [16, 256], strides = [1, 1]} : vector<16x4096xbf16> to vector<16x256xbf16>
    %337 = vector.extract_strided_slice %321 {offsets = [0, 3840], sizes = [16, 256], strides = [1, 1]} : vector<16x4096xbf16> to vector<16x256xbf16>
    %338 = tpu.concatenate %322, %323, %324, %325, %326, %327, %328, %329, %330, %331, %332, %333, %334, %335, %336, %337 in 0 : vector<16x256xbf16>, vector<16x256xbf16>, vector<16x256xbf16>, vector<16x256xbf16>, vector<16x256xbf16>, vector<16x256xbf16>, vector<16x256xbf16>, vector<16x256xbf16>, vector<16x256xbf16>, vector<16x256xbf16>, vector<16x256xbf16>, vector<16x256xbf16>, vector<16x256xbf16>, vector<16x256xbf16>, vector<16x256xbf16>, vector<16x256xbf16> -> vector<256x256xbf16>
    %c0_62 = arith.constant 0 : index
    %c0_63 = arith.constant 0 : index
    %339 = vector.load %arg10[%c0_62, %c0_63] : memref<8x256xbf16, #tpu.memory_space<vmem>>, vector<8x256xbf16>
    %cst_64 = arith.constant dense<0.000000e+00> : vector<8x256xf32>
    %340 = tpu.matmul %339, %338, %cst_64 {dimension_numbers = #tpu.dot_dimension_numbers<[1], [0], [0], [1], [0, 0, 1, 1], [], []>} : vector<8x256xbf16>, vector<256x256xbf16>, vector<8x256xf32> -> vector<8x256xf32>
    %341 = tpu.concatenate %317, %317 in 0 : vector<4x1xf32>, vector<4x1xf32> -> vector<8x1xf32>
    %342 = vector.broadcast %341 : vector<8x1xf32> to vector<8x256xf32>
    %343 = arith.addf %340, %342 : vector<8x256xf32>
    %344 = vector.extract_strided_slice %0 {offsets = [0, 11], sizes = [4, 1], strides = [1, 1]} : vector<16x16xf32> to vector<4x1xf32>
    %345 = vector.extract_strided_slice %0 {offsets = [0, 12], sizes = [4, 1], strides = [1, 1]} : vector<16x16xf32> to vector<4x1xf32>
    %cst_65 = arith.constant dense<0.000000e+00> : vector<8xf32>
    %346 = vector.multi_reduction <add>, %343, %cst_65 [1] : vector<8x256xf32> to vector<8xf32>
    %347 = vector.shape_cast %346 : vector<8xf32> to vector<8x1xf32>
    %348 = arith.mulf %343, %343 : vector<8x256xf32>
    %cst_66 = arith.constant dense<0.000000e+00> : vector<8xf32>
    %349 = vector.multi_reduction <add>, %348, %cst_66 [1] : vector<8x256xf32> to vector<8xf32>
    %350 = vector.shape_cast %349 : vector<8xf32> to vector<8x1xf32>
    %351 = vector.extract_strided_slice %347 {offsets = [0, 0], sizes = [4, 1], strides = [1, 1]} : vector<8x1xf32> to vector<4x1xf32>
    %352 = vector.extract_strided_slice %350 {offsets = [0, 0], sizes = [4, 1], strides = [1, 1]} : vector<8x1xf32> to vector<4x1xf32>
    %353 = vector.extract_strided_slice %347 {offsets = [4, 0], sizes = [4, 1], strides = [1, 1]} : vector<8x1xf32> to vector<4x1xf32>
    %354 = arith.addf %351, %353 : vector<4x1xf32>
    %355 = vector.extract_strided_slice %350 {offsets = [4, 0], sizes = [4, 1], strides = [1, 1]} : vector<8x1xf32> to vector<4x1xf32>
    %356 = arith.addf %352, %355 : vector<4x1xf32>
    %cst_67 = arith.constant 0.001953125 : f32
    %357 = vector.broadcast %cst_67 : f32 to vector<4x1xf32>
    %358 = arith.mulf %354, %357 : vector<4x1xf32>
    %cst_68 = arith.constant 0.001953125 : f32
    %359 = vector.broadcast %cst_68 : f32 to vector<4x1xf32>
    %360 = arith.mulf %356, %359 : vector<4x1xf32>
    %361 = arith.mulf %358, %358 : vector<4x1xf32>
    %362 = arith.subf %360, %361 : vector<4x1xf32>
    %cst_69 = arith.constant 0.000000e+00 : f32
    %363 = vector.broadcast %cst_69 : f32 to vector<4x1xf32>
    %364 = arith.maximumf %362, %363 : vector<4x1xf32>
    %cst_70 = arith.constant 9.99999974E-6 : f32
    %365 = vector.broadcast %cst_70 : f32 to vector<4x1xf32>
    %366 = arith.addf %364, %365 : vector<4x1xf32>
    %367 = math.rsqrt %366 : vector<4x1xf32>
    %368 = arith.mulf %344, %367 : vector<4x1xf32>
    %369 = arith.mulf %358, %368 : vector<4x1xf32>
    %370 = arith.subf %345, %369 : vector<4x1xf32>
    %371 = tpu.concatenate %368, %368 in 0 : vector<4x1xf32>, vector<4x1xf32> -> vector<8x1xf32>
    %372 = vector.broadcast %371 : vector<8x1xf32> to vector<8x256xf32>
    %373 = arith.mulf %343, %372 : vector<8x256xf32>
    %374 = tpu.concatenate %370, %370 in 0 : vector<4x1xf32>, vector<4x1xf32> -> vector<8x1xf32>
    %375 = vector.broadcast %374 : vector<8x1xf32> to vector<8x256xf32>
    %376 = arith.addf %373, %375 : vector<8x256xf32>
    %cst_71 = arith.constant 0.000000e+00 : f32
    %377 = vector.broadcast %cst_71 : f32 to vector<8x256xf32>
    %378 = arith.maximumf %376, %377 : vector<8x256xf32>
    %c0_72 = arith.constant 0 : index
    %c0_73 = arith.constant 0 : index
    %379 = vector.load %arg14[%c0_72, %c0_73] : memref<3x4xf32, #tpu.memory_space<vmem>>, vector<3x4xf32>
    %380 = vector.extract_strided_slice %0 {offsets = [0, 13], sizes = [3, 1], strides = [1, 1]} : vector<16x16xf32> to vector<3x1xf32>
    %381 = vector.extract_strided_slice %378 {offsets = [0, 0], sizes = [4, 256], strides = [1, 1]} : vector<8x256xf32> to vector<4x256xf32>
    %382 = vector.extract_strided_slice %379 {offsets = [0, 0], sizes = [3, 1], strides = [1, 1]} : vector<3x4xf32> to vector<3x1xf32>
    %383 = vector.extract_strided_slice %381 {offsets = [0, 0], sizes = [1, 256], strides = [1, 1]} : vector<4x256xf32> to vector<1x256xf32>
    %384 = vector.broadcast %382 : vector<3x1xf32> to vector<3x256xf32>
    %385 = vector.broadcast %383 : vector<1x256xf32> to vector<3x256xf32>
    %386 = arith.mulf %384, %385 : vector<3x256xf32>
    %387 = vector.extract_strided_slice %379 {offsets = [0, 1], sizes = [3, 1], strides = [1, 1]} : vector<3x4xf32> to vector<3x1xf32>
    %388 = vector.extract_strided_slice %381 {offsets = [1, 0], sizes = [1, 256], strides = [1, 1]} : vector<4x256xf32> to vector<1x256xf32>
    %389 = vector.broadcast %387 : vector<3x1xf32> to vector<3x256xf32>
    %390 = vector.broadcast %388 : vector<1x256xf32> to vector<3x256xf32>
    %391 = arith.mulf %389, %390 : vector<3x256xf32>
    %392 = arith.addf %386, %391 : vector<3x256xf32>
    %393 = vector.extract_strided_slice %379 {offsets = [0, 2], sizes = [3, 1], strides = [1, 1]} : vector<3x4xf32> to vector<3x1xf32>
    %394 = vector.extract_strided_slice %381 {offsets = [2, 0], sizes = [1, 256], strides = [1, 1]} : vector<4x256xf32> to vector<1x256xf32>
    %395 = vector.broadcast %393 : vector<3x1xf32> to vector<3x256xf32>
    %396 = vector.broadcast %394 : vector<1x256xf32> to vector<3x256xf32>
    %397 = arith.mulf %395, %396 : vector<3x256xf32>
    %398 = arith.addf %392, %397 : vector<3x256xf32>
    %399 = vector.extract_strided_slice %379 {offsets = [0, 3], sizes = [3, 1], strides = [1, 1]} : vector<3x4xf32> to vector<3x1xf32>
    %400 = vector.extract_strided_slice %381 {offsets = [3, 0], sizes = [1, 256], strides = [1, 1]} : vector<4x256xf32> to vector<1x256xf32>
    %401 = vector.broadcast %399 : vector<3x1xf32> to vector<3x256xf32>
    %402 = vector.broadcast %400 : vector<1x256xf32> to vector<3x256xf32>
    %403 = arith.mulf %401, %402 : vector<3x256xf32>
    %404 = arith.addf %398, %403 : vector<3x256xf32>
    %405 = vector.broadcast %380 : vector<3x1xf32> to vector<3x256xf32>
    %406 = arith.addf %404, %405 : vector<3x256xf32>
    %407 = vector.extract_strided_slice %378 {offsets = [4, 0], sizes = [4, 256], strides = [1, 1]} : vector<8x256xf32> to vector<4x256xf32>
    %408 = vector.extract_strided_slice %379 {offsets = [0, 0], sizes = [3, 1], strides = [1, 1]} : vector<3x4xf32> to vector<3x1xf32>
    %409 = vector.extract_strided_slice %407 {offsets = [0, 0], sizes = [1, 256], strides = [1, 1]} : vector<4x256xf32> to vector<1x256xf32>
    %410 = vector.broadcast %408 : vector<3x1xf32> to vector<3x256xf32>
    %411 = vector.broadcast %409 : vector<1x256xf32> to vector<3x256xf32>
    %412 = arith.mulf %410, %411 : vector<3x256xf32>
    %413 = vector.extract_strided_slice %379 {offsets = [0, 1], sizes = [3, 1], strides = [1, 1]} : vector<3x4xf32> to vector<3x1xf32>
    %414 = vector.extract_strided_slice %407 {offsets = [1, 0], sizes = [1, 256], strides = [1, 1]} : vector<4x256xf32> to vector<1x256xf32>
    %415 = vector.broadcast %413 : vector<3x1xf32> to vector<3x256xf32>
    %416 = vector.broadcast %414 : vector<1x256xf32> to vector<3x256xf32>
    %417 = arith.mulf %415, %416 : vector<3x256xf32>
    %418 = arith.addf %412, %417 : vector<3x256xf32>
    %419 = vector.extract_strided_slice %379 {offsets = [0, 2], sizes = [3, 1], strides = [1, 1]} : vector<3x4xf32> to vector<3x1xf32>
    %420 = vector.extract_strided_slice %407 {offsets = [2, 0], sizes = [1, 256], strides = [1, 1]} : vector<4x256xf32> to vector<1x256xf32>
    %421 = vector.broadcast %419 : vector<3x1xf32> to vector<3x256xf32>
    %422 = vector.broadcast %420 : vector<1x256xf32> to vector<3x256xf32>
    %423 = arith.mulf %421, %422 : vector<3x256xf32>
    %424 = arith.addf %418, %423 : vector<3x256xf32>
    %425 = vector.extract_strided_slice %379 {offsets = [0, 3], sizes = [3, 1], strides = [1, 1]} : vector<3x4xf32> to vector<3x1xf32>
    %426 = vector.extract_strided_slice %407 {offsets = [3, 0], sizes = [1, 256], strides = [1, 1]} : vector<4x256xf32> to vector<1x256xf32>
    %427 = vector.broadcast %425 : vector<3x1xf32> to vector<3x256xf32>
    %428 = vector.broadcast %426 : vector<1x256xf32> to vector<3x256xf32>
    %429 = arith.mulf %427, %428 : vector<3x256xf32>
    %430 = arith.addf %424, %429 : vector<3x256xf32>
    %431 = vector.broadcast %380 : vector<3x1xf32> to vector<3x256xf32>
    %432 = arith.addf %430, %431 : vector<3x256xf32>
    %433 = tpu.concatenate %406, %432 in 0 : vector<3x256xf32>, vector<3x256xf32> -> vector<6x256xf32>
    %434 = math.tanh %433 : vector<6x256xf32>
    %c0_74 = arith.constant 0 : index
    %c0_75 = arith.constant 0 : index
    %c0_76 = arith.constant 0 : index
    %435 = vector.load %arg16[%c0_74, %c0_75, %c0_76] : memref<1x6x256xf32, #tpu.memory_space<vmem>>, vector<1x6x256xf32>
    %436 = vector.shape_cast %435 : vector<1x6x256xf32> to vector<6x256xf32>
    %437 = vector.shape_cast %434 : vector<6x256xf32> to vector<1x6x256xf32>
    tpu.vector_store %arg16[%c0_74, %c0_75, %c0_76], %437 {strides = array<i32>} : memref<1x6x256xf32, #tpu.memory_space<vmem>>, vector<1x6x256xf32>,
    return
  }
  func.func @transform_0(%arg0: i32) -> (i32, i32, i32) {
    %c0_i32 = arith.constant 0 : i32
    %c0_i32_0 = arith.constant 0 : i32
    %c0_i32_1 = arith.constant 0 : i32
    return %arg0, %c0_i32, %c0_i32_0 : i32, i32, i32
  }
  func.func @transform_1(%arg0: i32) -> (i32, i32, i32) {
    %c0_i32 = arith.constant 0 : i32
    %c0_i32_0 = arith.constant 0 : i32
    %c0_i32_1 = arith.constant 0 : i32
    return %arg0, %c0_i32, %c0_i32_0 : i32, i32, i32
  }
  func.func @transform_2(%arg0: i32) -> (i32, i32) {
    %c0_i32 = arith.constant 0 : i32
    %c0_i32_0 = arith.constant 0 : i32
    %c0_i32_1 = arith.constant 0 : i32
    return %c0_i32, %c0_i32_0 : i32, i32
  }
  func.func @transform_3(%arg0: i32) -> (i32, i32) {
    %c0_i32 = arith.constant 0 : i32
    %c0_i32_0 = arith.constant 0 : i32
    %c0_i32_1 = arith.constant 0 : i32
    return %c0_i32, %c0_i32_0 : i32, i32
  }
  func.func @transform_4(%arg0: i32) -> (i32, i32) {
    %c0_i32 = arith.constant 0 : i32
    %c0_i32_0 = arith.constant 0 : i32
    %c0_i32_1 = arith.constant 0 : i32
    return %c0_i32, %c0_i32_0 : i32, i32
  }
  func.func @transform_5(%arg0: i32) -> (i32, i32) {
    %c0_i32 = arith.constant 0 : i32
    %c0_i32_0 = arith.constant 0 : i32
    %c0_i32_1 = arith.constant 0 : i32
    return %c0_i32, %c0_i32_0 : i32, i32
  }
  func.func @transform_6(%arg0: i32) -> (i32, i32) {
    %c0_i32 = arith.constant 0 : i32
    %c0_i32_0 = arith.constant 0 : i32
    %c0_i32_1 = arith.constant 0 : i32
    return %c0_i32, %c0_i32_0 : i32, i32
  }
  func.func @transform_7(%arg0: i32) -> (i32, i32) {
    %c0_i32 = arith.constant 0 : i32
    %c0_i32_0 = arith.constant 0 : i32
    %c0_i32_1 = arith.constant 0 : i32
    return %c0_i32, %c0_i32_0 : i32, i32
  }
  func.func @transform_8(%arg0: i32) -> (i32, i32) {
    %c0_i32 = arith.constant 0 : i32
    %c0_i32_0 = arith.constant 0 : i32
    %c0_i32_1 = arith.constant 0 : i32
    return %c0_i32, %c0_i32_0 : i32, i32
  }
  func.func @transform_9(%arg0: i32) -> (i32, i32) {
    %c0_i32 = arith.constant 0 : i32
    %c0_i32_0 = arith.constant 0 : i32
    %c0_i32_1 = arith.constant 0 : i32
    return %c0_i32, %c0_i32_0 : i32, i32
  }
  func.func @transform_10(%arg0: i32) -> (i32, i32) {
    %c0_i32 = arith.constant 0 : i32
    %c0_i32_0 = arith.constant 0 : i32
    %c0_i32_1 = arith.constant 0 : i32
    return %c0_i32, %c0_i32_0 : i32, i32
  }
  func.func @transform_11(%arg0: i32) -> (i32, i32) {
    %c0_i32 = arith.constant 0 : i32
    %c0_i32_0 = arith.constant 0 : i32
    %c0_i32_1 = arith.constant 0 : i32
    return %c0_i32, %c0_i32_0 : i32, i32
  }
  func.func @transform_12(%arg0: i32) -> (i32, i32) {
    %c0_i32 = arith.constant 0 : i32
    %c0_i32_0 = arith.constant 0 : i32
    %c0_i32_1 = arith.constant 0 : i32
    return %c0_i32, %c0_i32_0 : i32, i32
  }
  func.func @transform_13(%arg0: i32) -> (i32, i32) {
    %c0_i32 = arith.constant 0 : i32
    %c0_i32_0 = arith.constant 0 : i32
    %c0_i32_1 = arith.constant 0 : i32
    return %c0_i32, %c0_i32_0 : i32, i32
  }
  func.func @transform_14(%arg0: i32) -> (i32, i32) {
    %c0_i32 = arith.constant 0 : i32
    %c0_i32_0 = arith.constant 0 : i32
    %c0_i32_1 = arith.constant 0 : i32
    return %c0_i32, %c0_i32_0 : i32, i32
  }
  func.func @transform_15(%arg0: i32) -> (i32, i32, i32) {
    %c0_i32 = arith.constant 0 : i32
    %c0_i32_0 = arith.constant 0 : i32
    %c0_i32_1 = arith.constant 0 : i32
    return %arg0, %c0_i32, %c0_i32_0 : i32, i32, i32
  }
  func.func @transform_16(%arg0: i32) -> (i32, i32, i32) {
    %c0_i32 = arith.constant 0 : i32
    %c0_i32_0 = arith.constant 0 : i32
    %c0_i32_1 = arith.constant 0 : i32
    return %arg0, %c0_i32, %c0_i32_0 : i32, i32, i32
  }
}

</mosaic_0001>

<llo_original>
// kernel: vae_forward.1
$region0: #{vae_forward.1}
  #allocation0 [shape = 'u32[]', space=smem, size = 0x4, offset = 0x4, fixed_abs, tag = 'smem constant byte address 0x4 - core index']
  #allocation1 [shape = 'u32[72,128]{1,0:T(1,128)}', space=vmem, size = 0x9000, scoped, tag = 'internal scratch']
  %s0 = inlined_call_operand.vmem [shape: f32[4,6,256], index: 0, kind: input, shape index: {}]
  %s1 = inlined_call_operand.vmem [shape: f32[4,2,128], index: 1, kind: input, shape index: {}]
  %s2 = inlined_call_operand.vmem [shape: bf16[256,576], index: 2, kind: input, shape index: {}]
  %s3 = inlined_call_operand.vmem [shape: bf16[64,144], index: 3, kind: input, shape index: {}]
  %s4 = inlined_call_operand.vmem [shape: bf16[16,1024], index: 4, kind: input, shape index: {}]
  %s5 = inlined_call_operand.vmem [shape: bf16[64,4096], index: 5, kind: input, shape index: {}]
  %s6 = inlined_call_operand.vmem [shape: bf16[16,72], index: 6, kind: input, shape index: {}]
  %s7 = inlined_call_operand.vmem [shape: bf16[32,144], index: 7, kind: input, shape index: {}]
  %s8 = inlined_call_operand.vmem [shape: bf16[16,512], index: 8, kind: input, shape index: {}]
  %s9 = inlined_call_operand.vmem [shape: bf16[8,256], index: 9, kind: input, shape index: {}]
  %s10 = inlined_call_operand.vmem [shape: bf16[128,256], index: 10, kind: input, shape index: {}]
  %s11 = inlined_call_operand.vmem [shape: f32[1,256], index: 11, kind: input, shape index: {}]
  %s12 = inlined_call_operand.vmem [shape: f32[4,3], index: 12, kind: input, shape index: {}]
  %s13 = inlined_call_operand.vmem [shape: f32[3,4], index: 13, kind: input, shape index: {}]
  %s14 = inlined_call_operand.vmem [shape: f32[16,16], index: 14, kind: input, shape index: {}]
  %s15 = inlined_call_operand.vmem [shape: f32[4,6,256], index: 15, kind: output, shape index: {0}]
  %s16 = inlined_call_operand.hbm [shape: f32[4,2,128], index: 16, kind: output, shape index: {1}]
  %17 = xla_tuple %s15, %s16
  %s18 = sld [smem:[#allocation0]]
  $region101: #{vae_forward.1} parent=0
    _
  %s20 = ssub.s32 1, %s18
  %s21 = scalar_select 0, %s20, %s18
  $region1: #{vae_forward.1} parent=0
    #allocation2 [shape = 'u8[2048]{0}', space=vmem, size = 0x800, scoped, tag = 'output window, operand 1']
    #allocation3 [shape = 's32[2]{0}', space=sflag, size = 0x8, scoped, tag = 'scoped memory for vae_forward.1']
    %22 = vsyncpa [#allocation3], 0
    %s23 = scalar_lea.sflag [#allocation3], 1
    %24 = vsyncpa %s23, 0
    loop: start=0, step=1, limit=6
    $region2: #{vae_forward.1} parent=1 // loop_pre_header
      _
    $region3: #{vae_forward.1} parent=1 // loop_header
      %s26 = sphi 0, %s30
      %p27 = scmp.ge.s32.totalorder %s26, 6
      %s36 = sphi 0, %s38
      %s39 = sphi 0, %s36
      %s40 = sphi 0, %s39
      %s56 = sphi 0, %s40
      %s62 = sphi 0, %s64
      %s65 = sphi 0, %s62
      %s66 = sphi 0, %s65
      %s82 = sphi 0, %s66
      %s86 = sphi 0, %s86
      %s88 = sphi 0, %s86
      %s89 = sphi 0, %s88
      %s103 = sphi 0, %s89
      %s107 = sphi 0, %s107
      %s109 = sphi 0, %s107
      %s110 = sphi 0, %s109
      %s124 = sphi 0, %s110
      %s128 = sphi 0, %s128
      %s130 = sphi 0, %s128
      %s131 = sphi 0, %s130
      %s145 = sphi 0, %s131
      %s149 = sphi 0, %s149
      %s151 = sphi 0, %s149
      %s152 = sphi 0, %s151
      %s166 = sphi 0, %s152
      %s170 = sphi 0, %s170
      %s172 = sphi 0, %s170
      %s173 = sphi 0, %s172
      %s187 = sphi 0, %s173
      %s191 = sphi 0, %s191
      %s193 = sphi 0, %s191
      %s194 = sphi 0, %s193
      %s208 = sphi 0, %s194
      %s212 = sphi 0, %s212
      %s214 = sphi 0, %s212
      %s215 = sphi 0, %s214
      %s229 = sphi 0, %s215
      %s233 = sphi 0, %s233
      %s235 = sphi 0, %s233
      %s236 = sphi 0, %s235
      %s250 = sphi 0, %s236
      %s254 = sphi 0, %s254
      %s256 = sphi 0, %s254
      %s257 = sphi 0, %s256
      %s271 = sphi 0, %s257
      %s275 = sphi 0, %s275
      %s277 = sphi 0, %s275
      %s278 = sphi 0, %s277
      %s292 = sphi 0, %s278
      %s296 = sphi 0, %s296
      %s298 = sphi 0, %s296
      %s299 = sphi 0, %s298
      %s313 = sphi 0, %s299
      %s317 = sphi 0, %s317
      %s319 = sphi 0, %s317
      %s320 = sphi 0, %s319
      %s334 = sphi 0, %s320
      %s338 = sphi 0, %s338
      %s340 = sphi 0, %s338
      %s341 = sphi 0, %s340
      %s355 = sphi 0, %s341
      %s361 = sphi 0, %s363
      %s364 = sphi 0, %s361
      %s365 = sphi 0, %s364
      %s381 = sphi 0, %s365
      %s387 = sphi 0, %s389
      %s390 = sphi 0, %s387
      %s391 = sphi 0, %s390
      %s407 = sphi 0, %s391
    $region4: #{vae_forward.1} parent=1 // loop_header_branch
      %29 = sbr.rel (%p27) target = $region8
    $region5: #{vae_forward.1} parent=1 // loop_body
      %s31 = ssub.s32 %s26, 1
      %s32 = ssub.s32 %s26, 2
      %s33 = sadd.s32 %s26, 1
      %s34 = ssub.s32 %s26, %s33
      %p35 = scmp.eq.s32.totalorder %s34, 0
      %s37 = sadd.s32 %s36, 1
      %s38 = scalar_select %p35, %s36, %s37
      %p41 = pneg %p35
      %p42 = scmp.eq.s32.totalorder %s26, 3
      %p43 = por %p41, %p42
      %p44 = scmp.ne.s32.totalorder %s36, %s39
      %p45 = scmp.eq.s32.totalorder %s26, 0
      %p46 = por %p44, %p45
      %p47 = scmp.ne.s32.totalorder %s36, %s39
      %p48 = scmp.eq.s32.totalorder %s31, 3
      %p49 = por %p47, %p48
      %p50 = scmp.ne.s32.totalorder %s39, %s40
      %p51 = scmp.eq.s32.totalorder %s31, 0
      %p52 = por %p50, %p51
      %p53 = scmp.ne.s32.totalorder %s39, %s40
      %p54 = scmp.eq.s32.totalorder %s32, 3
      %p55 = por %p53, %p54
      %p57 = scmp.ne.s32.totalorder %s40, %s56
      %p58 = scmp.eq.s32.totalorder %s32, 0
      %p59 = por %p57, %p58
      %s60 = ssub.s32 %s26, %s33
      %p61 = scmp.eq.s32.totalorder %s60, 0
      %s63 = sadd.s32 %s62, 1
      %s64 = scalar_select %p61, %s62, %s63
      %p67 = pneg %p61
      %p68 = scmp.eq.s32.totalorder %s26, 3
      %p69 = por %p67, %p68
      %p70 = scmp.ne.s32.totalorder %s62, %s65
      %p71 = scmp.eq.s32.totalorder %s26, 0
      %p72 = por %p70, %p71
      %p73 = scmp.ne.s32.totalorder %s62, %s65
      %p74 = scmp.eq.s32.totalorder %s31, 3
      %p75 = por %p73, %p74
      %p76 = scmp.ne.s32.totalorder %s65, %s66
      %p77 = scmp.eq.s32.totalorder %s31, 0
      %p78 = por %p76, %p77
      %p79 = scmp.ne.s32.totalorder %s65, %s66
      %p80 = scmp.eq.s32.totalorder %s32, 3
      %p81 = por %p79, %p80
      %p83 = scmp.ne.s32.totalorder %s66, %s82
      %p84 = scmp.eq.s32.totalorder %s32, 0
      %p85 = por %p83, %p84
      %s87 = sadd.s32 %s86, 1
      %p90 = scmp.eq.s32.totalorder %s26, 3
      %p91 = scmp.ne.s32.totalorder %s86, %s88
      %p92 = scmp.eq.s32.totalorder %s26, 0
      %p93 = por %p91, %p92
      %p94 = scmp.ne.s32.totalorder %s86, %s88
      %p95 = scmp.eq.s32.totalorder %s31, 3
      %p96 = por %p94, %p95
      %p97 = scmp.ne.s32.totalorder %s88, %s89
      %p98 = scmp.eq.s32.totalorder %s31, 0
      %p99 = por %p97, %p98
      %p100 = scmp.ne.s32.totalorder %s88, %s89
      %p101 = scmp.eq.s32.totalorder %s32, 3
      %p102 = por %p100, %p101
      %p104 = scmp.ne.s32.totalorder %s89, %s103
      %p105 = scmp.eq.s32.totalorder %s32, 0
      %p106 = por %p104, %p105
      %s108 = sadd.s32 %s107, 1
      %p111 = scmp.eq.s32.totalorder %s26, 3
      %p112 = scmp.ne.s32.totalorder %s107, %s109
      %p113 = scmp.eq.s32.totalorder %s26, 0
      %p114 = por %p112, %p113
      %p115 = scmp.ne.s32.totalorder %s107, %s109
      %p116 = scmp.eq.s32.totalorder %s31, 3
      %p117 = por %p115, %p116
      %p118 = scmp.ne.s32.totalorder %s109, %s110
      %p119 = scmp.eq.s32.totalorder %s31, 0
      %p120 = por %p118, %p119
      %p121 = scmp.ne.s32.totalorder %s109, %s110
      %p122 = scmp.eq.s32.totalorder %s32, 3
      %p123 = por %p121, %p122
      %p125 = scmp.ne.s32.totalorder %s110, %s124
      %p126 = scmp.eq.s32.totalorder %s32, 0
      %p127 = por %p125, %p126
      %s129 = sadd.s32 %s128, 1
      %p132 = scmp.eq.s32.totalorder %s26, 3
      %p133 = scmp.ne.s32.totalorder %s128, %s130
      %p134 = scmp.eq.s32.totalorder %s26, 0
      %p135 = por %p133, %p134
      %p136 = scmp.ne.s32.totalorder %s128, %s130
      %p137 = scmp.eq.s32.totalorder %s31, 3
      %p138 = por %p136, %p137
      %p139 = scmp.ne.s32.totalorder %s130, %s131
      %p140 = scmp.eq.s32.totalorder %s31, 0
      %p141 = por %p139, %p140
      %p142 = scmp.ne.s32.totalorder %s130, %s131
      %p143 = scmp.eq.s32.totalorder %s32, 3
      %p144 = por %p142, %p143
      %p146 = scmp.ne.s32.totalorder %s131, %s145
      %p147 = scmp.eq.s32.totalorder %s32, 0
      %p148 = por %p146, %p147
      %s150 = sadd.s32 %s149, 1
      %p153 = scmp.eq.s32.totalorder %s26, 3
      %p154 = scmp.ne.s32.totalorder %s149, %s151
      %p155 = scmp.eq.s32.totalorder %s26, 0
      %p156 = por %p154, %p155
      %p157 = scmp.ne.s32.totalorder %s149, %s151
      %p158 = scmp.eq.s32.totalorder %s31, 3
      %p159 = por %p157, %p158
      %p160 = scmp.ne.s32.totalorder %s151, %s152
      %p161 = scmp.eq.s32.totalorder %s31, 0
      %p162 = por %p160, %p161
      %p163 = scmp.ne.s32.totalorder %s151, %s152
      %p164 = scmp.eq.s32.totalorder %s32, 3
      %p165 = por %p163, %p164
      %p167 = scmp.ne.s32.totalorder %s152, %s166
      %p168 = scmp.eq.s32.totalorder %s32, 0
      %p169 = por %p167, %p168
      %s171 = sadd.s32 %s170, 1
      %p174 = scmp.eq.s32.totalorder %s26, 3
      %p175 = scmp.ne.s32.totalorder %s170, %s172
      %p176 = scmp.eq.s32.totalorder %s26, 0
      %p177 = por %p175, %p176
      %p178 = scmp.ne.s32.totalorder %s170, %s172
      %p179 = scmp.eq.s32.totalorder %s31, 3
      %p180 = por %p178, %p179
      %p181 = scmp.ne.s32.totalorder %s172, %s173
      %p182 = scmp.eq.s32.totalorder %s31, 0
      %p183 = por %p181, %p182
      %p184 = scmp.ne.s32.totalorder %s172, %s173
      %p185 = scmp.eq.s32.totalorder %s32, 3
      %p186 = por %p184, %p185
      %p188 = scmp.ne.s32.totalorder %s173, %s187
      %p189 = scmp.eq.s32.totalorder %s32, 0
      %p190 = por %p188, %p189
      %s192 = sadd.s32 %s191, 1
      %p195 = scmp.eq.s32.totalorder %s26, 3
      %p196 = scmp.ne.s32.totalorder %s191, %s193
      %p197 = scmp.eq.s32.totalorder %s26, 0
      %p198 = por %p196, %p197
      %p199 = scmp.ne.s32.totalorder %s191, %s193
      %p200 = scmp.eq.s32.totalorder %s31, 3
      %p201 = por %p199, %p200
      %p202 = scmp.ne.s32.totalorder %s193, %s194
      %p203 = scmp.eq.s32.totalorder %s31, 0
      %p204 = por %p202, %p203
      %p205 = scmp.ne.s32.totalorder %s193, %s194
      %p206 = scmp.eq.s32.totalorder %s32, 3
      %p207 = por %p205, %p206
      %p209 = scmp.ne.s32.totalorder %s194, %s208
      %p210 = scmp.eq.s32.totalorder %s32, 0
      %p211 = por %p209, %p210
      %s213 = sadd.s32 %s212, 1
      %p216 = scmp.eq.s32.totalorder %s26, 3
      %p217 = scmp.ne.s32.totalorder %s212, %s214
      %p218 = scmp.eq.s32.totalorder %s26, 0
      %p219 = por %p217, %p218
      %p220 = scmp.ne.s32.totalorder %s212, %s214
      %p221 = scmp.eq.s32.totalorder %s31, 3
      %p222 = por %p220, %p221
      %p223 = scmp.ne.s32.totalorder %s214, %s215
      %p224 = scmp.eq.s32.totalorder %s31, 0
      %p225 = por %p223, %p224
      %p226 = scmp.ne.s32.totalorder %s214, %s215
      %p227 = scmp.eq.s32.totalorder %s32, 3
      %p228 = por %p226, %p227
      %p230 = scmp.ne.s32.totalorder %s215, %s229
      %p231 = scmp.eq.s32.totalorder %s32, 0
      %p232 = por %p230, %p231
      %s234 = sadd.s32 %s233, 1
      %p237 = scmp.eq.s32.totalorder %s26, 3
      %p238 = scmp.ne.s32.totalorder %s233, %s235
      %p239 = scmp.eq.s32.totalorder %s26, 0
      %p240 = por %p238, %p239
      %p241 = scmp.ne.s32.totalorder %s233, %s235
      %p242 = scmp.eq.s32.totalorder %s31, 3
      %p243 = por %p241, %p242
      %p244 = scmp.ne.s32.totalorder %s235, %s236
      %p245 = scmp.eq.s32.totalorder %s31, 0
      %p246 = por %p244, %p245
      %p247 = scmp.ne.s32.totalorder %s235, %s236
      %p248 = scmp.eq.s32.totalorder %s32, 3
      %p249 = por %p247, %p248
      %p251 = scmp.ne.s32.totalorder %s236, %s250
      %p252 = scmp.eq.s32.totalorder %s32, 0
      %p253 = por %p251, %p252
      %s255 = sadd.s32 %s254, 1
      %p258 = scmp.eq.s32.totalorder %s26, 3
      %p259 = scmp.ne.s32.totalorder %s254, %s256
      %p260 = scmp.eq.s32.totalorder %s26, 0
      %p261 = por %p259, %p260
      %p262 = scmp.ne.s32.totalorder %s254, %s256
      %p263 = scmp.eq.s32.totalorder %s31, 3
      %p264 = por %p262, %p263
      %p265 = scmp.ne.s32.totalorder %s256, %s257
      %p266 = scmp.eq.s32.totalorder %s31, 0
      %p267 = por %p265, %p266
      %p268 = scmp.ne.s32.totalorder %s256, %s257
      %p269 = scmp.eq.s32.totalorder %s32, 3
      %p270 = por %p268, %p269
      %p272 = scmp.ne.s32.totalorder %s257, %s271
      %p273 = scmp.eq.s32.totalorder %s32, 0
      %p274 = por %p272, %p273
      %s276 = sadd.s32 %s275, 1
      %p279 = scmp.eq.s32.totalorder %s26, 3
      %p280 = scmp.ne.s32.totalorder %s275, %s277
      %p281 = scmp.eq.s32.totalorder %s26, 0
      %p282 = por %p280, %p281
      %p283 = scmp.ne.s32.totalorder %s275, %s277
      %p284 = scmp.eq.s32.totalorder %s31, 3
      %p285 = por %p283, %p284
      %p286 = scmp.ne.s32.totalorder %s277, %s278
      %p287 = scmp.eq.s32.totalorder %s31, 0
      %p288 = por %p286, %p287
      %p289 = scmp.ne.s32.totalorder %s277, %s278
      %p290 = scmp.eq.s32.totalorder %s32, 3
      %p291 = por %p289, %p290
      %p293 = scmp.ne.s32.totalorder %s278, %s292
      %p294 = scmp.eq.s32.totalorder %s32, 0
      %p295 = por %p293, %p294
      %s297 = sadd.s32 %s296, 1
      %p300 = scmp.eq.s32.totalorder %s26, 3
      %p301 = scmp.ne.s32.totalorder %s296, %s298
      %p302 = scmp.eq.s32.totalorder %s26, 0
      %p303 = por %p301, %p302
      %p304 = scmp.ne.s32.totalorder %s296, %s298
      %p305 = scmp.eq.s32.totalorder %s31, 3
      %p306 = por %p304, %p305
      %p307 = scmp.ne.s32.totalorder %s298, %s299
      %p308 = scmp.eq.s32.totalorder %s31, 0
      %p309 = por %p307, %p308
      %p310 = scmp.ne.s32.totalorder %s298, %s299
      %p311 = scmp.eq.s32.totalorder %s32, 3
      %p312 = por %p310, %p311
      %p314 = scmp.ne.s32.totalorder %s299, %s313
      %p315 = scmp.eq.s32.totalorder %s32, 0
      %p316 = por %p314, %p315
      %s318 = sadd.s32 %s317, 1
      %p321 = scmp.eq.s32.totalorder %s26, 3
      %p322 = scmp.ne.s32.totalorder %s317, %s319
      %p323 = scmp.eq.s32.totalorder %s26, 0
      %p324 = por %p322, %p323
      %p325 = scmp.ne.s32.totalorder %s317, %s319
      %p326 = scmp.eq.s32.totalorder %s31, 3
      %p327 = por %p325, %p326
      %p328 = scmp.ne.s32.totalorder %s319, %s320
      %p329 = scmp.eq.s32.totalorder %s31, 0
      %p330 = por %p328, %p329
      %p331 = scmp.ne.s32.totalorder %s319, %s320
      %p332 = scmp.eq.s32.totalorder %s32, 3
      %p333 = por %p331, %p332
      %p335 = scmp.ne.s32.totalorder %s320, %s334
      %p336 = scmp.eq.s32.totalorder %s32, 0
      %p337 = por %p335, %p336
      %s339 = sadd.s32 %s338, 1
      %p342 = scmp.eq.s32.totalorder %s26, 3
      %p343 = scmp.ne.s32.totalorder %s338, %s340
      %p344 = scmp.eq.s32.totalorder %s26, 0
      %p345 = por %p343, %p344
      %p346 = scmp.ne.s32.totalorder %s338, %s340
      %p347 = scmp.eq.s32.totalorder %s31, 3
      %p348 = por %p346, %p347
      %p349 = scmp.ne.s32.totalorder %s340, %s341
      %p350 = scmp.eq.s32.totalorder %s31, 0
      %p351 = por %p349, %p350
      %p352 = scmp.ne.s32.totalorder %s340, %s341
      %p353 = scmp.eq.s32.totalorder %s32, 3
      %p354 = por %p352, %p353
      %p356 = scmp.ne.s32.totalorder %s341, %s355
      %p357 = scmp.eq.s32.totalorder %s32, 0
      %p358 = por %p356, %p357
      %s359 = ssub.s32 %s26, %s33
      %p360 = scmp.eq.s32.totalorder %s359, 0
      %s362 = sadd.s32 %s361, 1
      %s363 = scalar_select %p360, %s361, %s362
      %p366 = pneg %p360
      %p367 = scmp.eq.s32.totalorder %s26, 3
      %p368 = por %p366, %p367
      %p369 = scmp.ne.s32.totalorder %s361, %s364
      %p370 = scmp.eq.s32.totalorder %s26, 0
      %p371 = por %p369, %p370
      %p372 = scmp.ne.s32.totalorder %s361, %s364
      %p373 = scmp.eq.s32.totalorder %s31, 3
      %p374 = por %p372, %p373
      %p375 = scmp.ne.s32.totalorder %s364, %s365
      %p376 = scmp.eq.s32.totalorder %s31, 0
      %p377 = por %p375, %p376
      %p378 = scmp.ne.s32.totalorder %s364, %s365
      %p379 = scmp.eq.s32.totalorder %s32, 3
      %p380 = por %p378, %p379
      %p382 = scmp.ne.s32.totalorder %s365, %s381
      %p383 = scmp.eq.s32.totalorder %s32, 0
      %p384 = por %p382, %p383
      %s385 = ssub.s32 %s26, %s33
      %p386 = scmp.eq.s32.totalorder %s385, 0
      %s388 = sadd.s32 %s387, 1
      %s389 = scalar_select %p386, %s387, %s388
      %p392 = pneg %p386
      %p393 = scmp.eq.s32.totalorder %s26, 3
      %p394 = por %p392, %p393
      %p395 = scmp.ne.s32.totalorder %s387, %s390
      %p396 = scmp.eq.s32.totalorder %s26, 0
      %p397 = por %p395, %p396
      %p398 = scmp.ne.s32.totalorder %s387, %s390
      %p399 = scmp.eq.s32.totalorder %s31, 3
      %p400 = por %p398, %p399
      %p401 = scmp.ne.s32.totalorder %s390, %s391
      %p402 = scmp.eq.s32.totalorder %s31, 0
      %p403 = por %p401, %p402
      %p404 = scmp.ne.s32.totalorder %s390, %s391
      %p405 = scmp.eq.s32.totalorder %s32, 3
      %p406 = por %p404, %p405
      %p408 = scmp.ne.s32.totalorder %s391, %s407
      %p409 = scmp.eq.s32.totalorder %s32, 0
      %p410 = por %p408, %p409
      %p411 = scmp.le.s32.totalorder 1, %s26
      %p412 = scmp.lt.s32.totalorder %s26, 5
      %p413 = pnand %p411, %p412
      %p414 = pneg %p413
      // Predicated region
      $region9: #{vae_forward.1} parent=5 // pred_check
        _
      $region10: #{vae_forward.1} parent=5 // pred_check_branch
        %416 = sbr.rel (%p413) target = $region12
      $region11: #{vae_forward.1} parent=5 // pred_region
        %s417 = ssub.s32 %s26, 1
        // Predicated region
        $region13: #{vae_forward.1} parent=11 // pred_check
          %p418 = pneg %p99
        $region14: #{vae_forward.1} parent=11 // pred_check_branch
          %420 = sbr.rel (%p418) target = $region16
        $region15: #{vae_forward.1} parent=11 // pred_region
          _
        $region16: #{vae_forward.1} parent=11 // pred_fallthru
          _
        // Predicated region
        $region17: #{vae_forward.1} parent=11 // pred_check
          %p421 = pneg %p120
        $region18: #{vae_forward.1} parent=11 // pred_check_branch
          %423 = sbr.rel (%p421) target = $region20
        $region19: #{vae_forward.1} parent=11 // pred_region
          _
        $region20: #{vae_forward.1} parent=11 // pred_fallthru
          _
        // Predicated region
        $region21: #{vae_forward.1} parent=11 // pred_check
          %p424 = pneg %p141
        $region22: #{vae_forward.1} parent=11 // pred_check_branch
          %426 = sbr.rel (%p424) target = $region24
        $region23: #{vae_forward.1} parent=11 // pred_region
          _
        $region24: #{vae_forward.1} parent=11 // pred_fallthru
          _
        // Predicated region
        $region25: #{vae_forward.1} parent=11 // pred_check
          %p427 = pneg %p162
        $region26: #{vae_forward.1} parent=11 // pred_check_branch
          %429 = sbr.rel (%p427) target = $region28
        $region27: #{vae_forward.1} parent=11 // pred_region
          _
        $region28: #{vae_forward.1} parent=11 // pred_fallthru
          _
        // Predicated region
        $region29: #{vae_forward.1} parent=11 // pred_check
          %p430 = pneg %p183
        $region30: #{vae_forward.1} parent=11 // pred_check_branch
          %432 = sbr.rel (%p430) target = $region32
        $region31: #{vae_forward.1} parent=11 // pred_region
          _
        $region32: #{vae_forward.1} parent=11 // pred_fallthru
          _
        // Predicated region
        $region33: #{vae_forward.1} parent=11 // pred_check
          %p433 = pneg %p204
        $region34: #{vae_forward.1} parent=11 // pred_check_branch
          %435 = sbr.rel (%p433) target = $region36
        $region35: #{vae_forward.1} parent=11 // pred_region
          _
        $region36: #{vae_forward.1} parent=11 // pred_fallthru
          _
        // Predicated region
        $region37: #{vae_forward.1} parent=11 // pred_check
          %p436 = pneg %p225
        $region38: #{vae_forward.1} parent=11 // pred_check_branch
          %438 = sbr.rel (%p436) target = $region40
        $region39: #{vae_forward.1} parent=11 // pred_region
          _
        $region40: #{vae_forward.1} parent=11 // pred_fallthru
          _
        // Predicated region
        $region41: #{vae_forward.1} parent=11 // pred_check
          %p439 = pneg %p246
        $region42: #{vae_forward.1} parent=11 // pred_check_branch
          %441 = sbr.rel (%p439) target = $region44
        $region43: #{vae_forward.1} parent=11 // pred_region
          _
        $region44: #{vae_forward.1} parent=11 // pred_fallthru
          _
        // Predicated region
        $region45: #{vae_forward.1} parent=11 // pred_check
          %p442 = pneg %p267
        $region46: #{vae_forward.1} parent=11 // pred_check_branch
          %444 = sbr.rel (%p442) target = $region48
        $region47: #{vae_forward.1} parent=11 // pred_region
          _
        $region48: #{vae_forward.1} parent=11 // pred_fallthru
          _
        // Predicated region
        $region49: #{vae_forward.1} parent=11 // pred_check
          %p445 = pneg %p288
        $region50: #{vae_forward.1} parent=11 // pred_check_branch
          %447 = sbr.rel (%p445) target = $region52
        $region51: #{vae_forward.1} parent=11 // pred_region
          _
        $region52: #{vae_forward.1} parent=11 // pred_fallthru
          _
        // Predicated region
        $region53: #{vae_forward.1} parent=11 // pred_check
          %p448 = pneg %p309
        $region54: #{vae_forward.1} parent=11 // pred_check_branch
          %450 = sbr.rel (%p448) target = $region56
        $region55: #{vae_forward.1} parent=11 // pred_region
          _
        $region56: #{vae_forward.1} parent=11 // pred_fallthru
          _
        // Predicated region
        $region57: #{vae_forward.1} parent=11 // pred_check
          %p451 = pneg %p330
        $region58: #{vae_forward.1} parent=11 // pred_check_branch
          %453 = sbr.rel (%p451) target = $region60
        $region59: #{vae_forward.1} parent=11 // pred_region
          _
        $region60: #{vae_forward.1} parent=11 // pred_fallthru
          _
        // Predicated region
        $region61: #{vae_forward.1} parent=11 // pred_check
          %p454 = pneg %p351
        $region62: #{vae_forward.1} parent=11 // pred_check_branch
          %456 = sbr.rel (%p454) target = $region64
        $region63: #{vae_forward.1} parent=11 // pred_region
          _
        $region64: #{vae_forward.1} parent=11 // pred_fallthru
          _
      $region12: #{vae_forward.1} parent=5 // pred_fallthru
        _
      %p457 = scmp.lt.s32.totalorder %s26, 4
      // Predicated region
      $region65: #{vae_forward.1} parent=5 // pred_check
        %p458 = pneg %p457
      $region66: #{vae_forward.1} parent=5 // pred_check_branch
        %460 = sbr.rel (%p458) target = $region68
      $region67: #{vae_forward.1} parent=5 // pred_region
        // Predicated region
        $region69: #{vae_forward.1} parent=67 // pred_check
          %p461 = pneg %p46
        $region70: #{vae_forward.1} parent=67 // pred_check_branch
          %463 = sbr.rel (%p461) target = $region72
        $region71: #{vae_forward.1} parent=67 // pred_region
          %p464 = scmp.lt.s32.totalorder %s26, 3
          %s465 = scalar_select %p464, %s26, 3
          %s466 = smul.addr %s465, 2
          %s467 = smul.addr %s466, 8
          %s468 = scalar_lea.vmem %s0, %s467
        $region72: #{vae_forward.1} parent=67 // pred_fallthru
          _
        // Predicated region
        $region73: #{vae_forward.1} parent=67 // pred_check
          %p469 = pneg %p72
        $region74: #{vae_forward.1} parent=67 // pred_check_branch
          %471 = sbr.rel (%p469) target = $region76
        $region75: #{vae_forward.1} parent=67 // pred_region
          %p472 = scmp.lt.s32.totalorder %s26, 3
          %s473 = scalar_select %p472, %s26, 3
          %s474 = smul.addr %s473, 2
          %s475 = scalar_lea.vmem %s1, %s474
        $region76: #{vae_forward.1} parent=67 // pred_fallthru
          _
      $region68: #{vae_forward.1} parent=5 // pred_fallthru
        _
      %p476 = scmp.le.s32.totalorder 1, %s26
      %p477 = scmp.lt.s32.totalorder %s26, 5
      %p478 = pnand %p476, %p477
      %p479 = pneg %p478
      // Predicated region
      $region77: #{vae_forward.1} parent=5 // pred_check
        _
      $region78: #{vae_forward.1} parent=5 // pred_check_branch
        %481 = sbr.rel (%p478) target = $region80
      $region79: #{vae_forward.1} parent=5 // pred_region
        %s482 = ssub.s32 %s26, 1
        %p483 = scmp.lt.s32.totalorder %s31, 3
        %s484 = scalar_select %p483, %s31, 3
        %s485 = smul.addr %s484, 2
        %s486 = smul.addr %s485, 8
        %s487 = scalar_lea.vmem %s0, %s486
        %p488 = pneg %p52
        %p489 = pneg %p49
        %p490 = scmp.lt.s32.totalorder %s31, 3
        %s491 = scalar_select %p490, %s31, 3
        %s492 = smul.addr %s491, 2
        %s493 = scalar_lea.vmem %s1, %s492
        %p494 = pneg %p78
        %p495 = pneg %p75
        %p496 = pneg %p99
        %p497 = pneg %p96
        %p498 = pneg %p120
        %p499 = pneg %p117
        %p500 = pneg %p141
        %p501 = pneg %p138
        %p502 = pneg %p162
        %p503 = pneg %p159
        %p504 = pneg %p183
        %p505 = pneg %p180
        %p506 = pneg %p204
        %p507 = pneg %p201
        %p508 = pneg %p225
        %p509 = pneg %p222
        %p510 = pneg %p246
        %p511 = pneg %p243
        %p512 = pneg %p267
        %p513 = pneg %p264
        %p514 = pneg %p288
        %p515 = pneg %p285
        %p516 = pneg %p309
        %p517 = pneg %p306
        %p518 = pneg %p330
        %p519 = pneg %p327
        %p520 = pneg %p351
        %p521 = pneg %p348
        %p522 = pneg %p377
        %p523 = pneg %p374
        %p524 = scmp.lt.s32.totalorder %s31, 3
        %s525 = scalar_select %p524, %s31, 3
        %s526 = smul.addr %s525, 2
        %s527 = smul.addr %s526, 8
        %s528 = scalar_lea.vmem %s15, %s527
        %p529 = pneg %p403
        %p530 = pneg %p400
        %s531 = sand.u32 %s390, 1
        %s532 = scalar_lea.sflag [#allocation3], %s531
        %s533 = sand.u32 %s390, 1
        %s534 = smul.addr %s533, 2
        %s535 = scalar_lea.vmem [#allocation2], %s534
        %p536 = scmp.lt.s32.totalorder %s31, 3
        %s537 = scalar_select %p536, %s31, 3
        %s538 = smul.addr %s537, 2
        %s539 = smul.addr %s538, 8
        %s540 = scalar_lea.vmem %s0, %s539
        %p541 = scmp.lt.s32.totalorder %s31, 3
        %s542 = scalar_select %p541, %s31, 3
        %s543 = smul.addr %s542, 2
        %s544 = scalar_lea.vmem %s1, %s543
        %p545 = scmp.lt.s32.totalorder %s31, 3
        %s546 = scalar_select %p545, %s31, 3
        %s547 = smul.addr %s546, 2
        %s548 = smul.addr %s547, 8
        %s549 = scalar_lea.vmem %s15, %s548
        %v551 = vld [vmem:[%s14] sm:$0xff]
        %v552 = vld [vmem:[%s14 + $0x8] sm:$0xff]
        %v553 = vld [vmem:[%s540] sm:$0x3f]
        %v554 = vld [vmem:[%s540 + $0x8] sm:$0x3f]
        %v555 = vld [vmem:[%s544] sm:$0x3]
        %v556 = vld [vmem:[%s12] sm:$0xf]
        %558 = vset.pattern.permute.xlu0 0
        %559 = vperm.xlu0 %558, %v556
        %v560 = vpop.permute.xlu0 %559
        %v562 = vperm.slane %v553, 0
        %v563 = vperm.slane %v554, 0
        %v564 = vmul.f32 %v560, %v562
        %v565 = vmul.f32 %v560, %v563
        %566 = vset.pattern.permute.xlu0 1
        %567 = vperm.xlu0 %566, %v556
        %v568 = vpop.permute.xlu0 %567
        %v570 = vperm.slane %v553, 1
        %v571 = vperm.slane %v554, 1
        %v572 = vmul.f32 %v568, %v570
        %v573 = vmul.f32 %v568, %v571
        %v574 = vadd.f32 %v564, %v572
        %v575 = vadd.f32 %v565, %v573
        %576 = vset.pattern.permute.xlu0 2
        %577 = vperm.xlu0 %576, %v556
        %v578 = vpop.permute.xlu0 %577
        %v580 = vperm.slane %v553, 2
        %v581 = vperm.slane %v554, 2
        %v582 = vmul.f32 %v578, %v580
        %v583 = vmul.f32 %v578, %v581
        %v584 = vadd.f32 %v574, %v582
        %v585 = vadd.f32 %v575, %v583
        %587 = vset.pattern.permute.xlu0 0
        %588 = vperm.xlu0 %587, %v551
        %v589 = vpop.permute.xlu0 %588
        %v591 = vadd.f32 %v584, %v589
        %v592 = vadd.f32 %v585, %v589
        %v593 = vperm.slane %v553, 3
        %v594 = vperm.slane %v554, 3
        %v595 = vmul.f32 %v560, %v593
        %v596 = vmul.f32 %v560, %v594
        %v597 = vperm.slane %v553, 4
        %v598 = vperm.slane %v554, 4
        %v599 = vmul.f32 %v568, %v597
        %v600 = vmul.f32 %v568, %v598
        %v601 = vadd.f32 %v595, %v599
        %v602 = vadd.f32 %v596, %v600
        %v603 = vperm.slane %v553, 5
        %v604 = vperm.slane %v554, 5
        %v605 = vmul.f32 %v578, %v603
        %v606 = vmul.f32 %v578, %v604
        %v607 = vadd.f32 %v601, %v605
        %v608 = vadd.f32 %v602, %v606
        %v609 = vadd.f32 %v607, %v589
        %v610 = vadd.f32 %v608, %v589
        %v613 = vrot.slane %v609, 4
        %v614 = vrot.slane %v610, 4
        %vm617 = vcmask 1043456
        %v618 = vsel %vm617, %v591, %v613
        %v619 = vsel %vm617, %v592, %v614
        %v620 = vmax.f32 %v618, 0.0
        %v621 = vmax.f32 %v619, 0.0
        %v622 = vpack.c.bf16 %v620, %v620
        %v623 = vpack.c.bf16 %v621, %v621
        %v624 = vld [vmem:[%s2] sm:$0xff]
        %v625 = vld [vmem:[%s2 + $0x8] sm:$0xff]
        %v626 = vld [vmem:[%s2 + $0x10] sm:$0xf]
        %v627 = vld [vmem:[%s2 + $0x14] sm:$0xff]
        %v628 = vld [vmem:[%s2 + $0x1c] sm:$0xff]
        %v629 = vld [vmem:[%s2 + $0x24] sm:$0xf]
        %v630 = vld [vmem:[%s2 + $0x28] sm:$0xff]
        %v631 = vld [vmem:[%s2 + $0x30] sm:$0xff]
        %v632 = vld [vmem:[%s2 + $0x38] sm:$0xf]
        %v633 = vld [vmem:[%s2 + $0x3c] sm:$0xff]
        %v634 = vld [vmem:[%s2 + $0x44] sm:$0xff]
        %v635 = vld [vmem:[%s2 + $0x4c] sm:$0xf]
        %v636 = vld [vmem:[%s2 + $0x50] sm:$0xff]
        %v637 = vld [vmem:[%s2 + $0x58] sm:$0xff]
        %v638 = vld [vmem:[%s2 + $0x60] sm:$0xf]
        %v639 = vld [vmem:[%s2 + $0x64] sm:$0xff]
        %v640 = vld [vmem:[%s2 + $0x6c] sm:$0xff]
        %v641 = vld [vmem:[%s2 + $0x74] sm:$0xf]
        %v642 = vld [vmem:[%s2 + $0x78] sm:$0xff]
        %v643 = vld [vmem:[%s2 + $0x80] sm:$0xff]
        %v644 = vld [vmem:[%s2 + $0x88] sm:$0xf]
        %v645 = vld [vmem:[%s2 + $0x8c] sm:$0xff]
        %v646 = vld [vmem:[%s2 + $0x94] sm:$0xff]
        %v647 = vld [vmem:[%s2 + $0x9c] sm:$0xf]
        %v648 = vld [vmem:[%s2 + $0xa0] sm:$0xff]
        %v649 = vld [vmem:[%s2 + $0xa8] sm:$0xff]
        %v650 = vld [vmem:[%s2 + $0xb0] sm:$0xf]
        %v651 = vld [vmem:[%s2 + $0xb4] sm:$0xff]
        %v652 = vld [vmem:[%s2 + $0xbc] sm:$0xff]
        %v653 = vld [vmem:[%s2 + $0xc4] sm:$0xf]
        %v654 = vld [vmem:[%s2 + $0xc8] sm:$0xff]
        %v655 = vld [vmem:[%s2 + $0xd0] sm:$0xff]
        %v656 = vld [vmem:[%s2 + $0xd8] sm:$0xf]
        %v657 = vld [vmem:[%s2 + $0xdc] sm:$0xff]
        %v658 = vld [vmem:[%s2 + $0xe4] sm:$0xff]
        %v659 = vld [vmem:[%s2 + $0xec] sm:$0xf]
        %v660 = vld [vmem:[%s2 + $0xf0] sm:$0xff]
        %v661 = vld [vmem:[%s2 + $0xf8] sm:$0xff]
        %v662 = vld [vmem:[%s2 + $0x100] sm:$0xf]
        %v663 = vld [vmem:[%s2 + $0x104] sm:$0xff]
        %v664 = vld [vmem:[%s2 + $0x10c] sm:$0xff]
        %v665 = vld [vmem:[%s2 + $0x114] sm:$0xf]
        %v666 = vld [vmem:[%s2 + $0x118] sm:$0xff]
        %v667 = vld [vmem:[%s2 + $0x120] sm:$0xff]
        %v668 = vld [vmem:[%s2 + $0x128] sm:$0xf]
        %v669 = vld [vmem:[%s2 + $0x12c] sm:$0xff]
        %v670 = vld [vmem:[%s2 + $0x134] sm:$0xff]
        %v671 = vld [vmem:[%s2 + $0x13c] sm:$0xf]
        %v672 = vld [vmem:[%s2 + $0x140] sm:$0xff]
        %v673 = vld [vmem:[%s2 + $0x148] sm:$0xff]
        %v674 = vld [vmem:[%s2 + $0x150] sm:$0xf]
        %v675 = vld [vmem:[%s2 + $0x154] sm:$0xff]
        %v676 = vld [vmem:[%s2 + $0x15c] sm:$0xff]
        %v677 = vld [vmem:[%s2 + $0x164] sm:$0xf]
        %v678 = vld [vmem:[%s2 + $0x168] sm:$0xff]
        %v679 = vld [vmem:[%s2 + $0x170] sm:$0xff]
        %v680 = vld [vmem:[%s2 + $0x178] sm:$0xf]
        %v681 = vld [vmem:[%s2 + $0x17c] sm:$0xff]
        %v682 = vld [vmem:[%s2 + $0x184] sm:$0xff]
        %v683 = vld [vmem:[%s2 + $0x18c] sm:$0xf]
        %v684 = vld [vmem:[%s2 + $0x190] sm:$0xff]
        %v685 = vld [vmem:[%s2 + $0x198] sm:$0xff]
        %v686 = vld [vmem:[%s2 + $0x1a0] sm:$0xf]
        %v687 = vld [vmem:[%s2 + $0x1a4] sm:$0xff]
        %v688 = vld [vmem:[%s2 + $0x1ac] sm:$0xff]
        %v689 = vld [vmem:[%s2 + $0x1b4] sm:$0xf]
        %v690 = vld [vmem:[%s2 + $0x1b8] sm:$0xff]
        %v691 = vld [vmem:[%s2 + $0x1c0] sm:$0xff]
        %v692 = vld [vmem:[%s2 + $0x1c8] sm:$0xf]
        %v693 = vld [vmem:[%s2 + $0x1cc] sm:$0xff]
        %v694 = vld [vmem:[%s2 + $0x1d4] sm:$0xff]
        %v695 = vld [vmem:[%s2 + $0x1dc] sm:$0xf]
        %v696 = vld [vmem:[%s2 + $0x1e0] sm:$0xff]
        %v697 = vld [vmem:[%s2 + $0x1e8] sm:$0xff]
        %v698 = vld [vmem:[%s2 + $0x1f0] sm:$0xf]
        %v699 = vld [vmem:[%s2 + $0x1f4] sm:$0xff]
        %v700 = vld [vmem:[%s2 + $0x1fc] sm:$0xff]
        %v701 = vld [vmem:[%s2 + $0x204] sm:$0xf]
        %v702 = vld [vmem:[%s2 + $0x208] sm:$0xff]
        %v703 = vld [vmem:[%s2 + $0x210] sm:$0xff]
        %v704 = vld [vmem:[%s2 + $0x218] sm:$0xf]
        %v705 = vld [vmem:[%s2 + $0x21c] sm:$0xff]
        %v706 = vld [vmem:[%s2 + $0x224] sm:$0xff]
        %v707 = vld [vmem:[%s2 + $0x22c] sm:$0xf]
        %v708 = vld [vmem:[%s2 + $0x230] sm:$0xff]
        %v709 = vld [vmem:[%s2 + $0x238] sm:$0xff]
        %v710 = vld [vmem:[%s2 + $0x240] sm:$0xf]
        %v711 = vld [vmem:[%s2 + $0x244] sm:$0xff]
        %v712 = vld [vmem:[%s2 + $0x24c] sm:$0xff]
        %v713 = vld [vmem:[%s2 + $0x254] sm:$0xf]
        %v714 = vld [vmem:[%s2 + $0x258] sm:$0xff]
        %v715 = vld [vmem:[%s2 + $0x260] sm:$0xff]
        %v716 = vld [vmem:[%s2 + $0x268] sm:$0xf]
        %v717 = vld [vmem:[%s2 + $0x26c] sm:$0xff]
        %v718 = vld [vmem:[%s2 + $0x274] sm:$0xff]
        %v719 = vld [vmem:[%s2 + $0x27c] sm:$0xf]
        %v816 = vunpack.c.l.b16 %v624
        %v817 = vunpack.c.h.b16 %v624
        %v818 = vunpack.c.l.b16 %v625
        %v819 = vunpack.c.h.b16 %v625
        %v820 = vunpack.c.l.b16 %v626
        %v821 = vunpack.c.l.b16 %v627
        %v822 = vunpack.c.h.b16 %v627
        %v823 = vunpack.c.l.b16 %v628
        %v824 = vunpack.c.h.b16 %v628
        %v825 = vunpack.c.l.b16 %v629
        %v826 = vunpack.c.l.b16 %v630
        %v827 = vunpack.c.h.b16 %v630
        %v828 = vunpack.c.l.b16 %v631
        %v829 = vunpack.c.h.b16 %v631
        %v830 = vunpack.c.l.b16 %v632
        %v831 = vunpack.c.l.b16 %v633
        %v832 = vunpack.c.h.b16 %v633
        %v833 = vunpack.c.l.b16 %v634
        %v834 = vunpack.c.h.b16 %v634
        %v835 = vunpack.c.l.b16 %v635
        %v836 = vunpack.c.l.b16 %v636
        %v837 = vunpack.c.h.b16 %v636
        %v838 = vunpack.c.l.b16 %v637
        %v839 = vunpack.c.h.b16 %v637
        %v840 = vunpack.c.l.b16 %v638
        %v841 = vunpack.c.l.b16 %v639
        %v842 = vunpack.c.h.b16 %v639
        %v843 = vunpack.c.l.b16 %v640
        %v844 = vunpack.c.h.b16 %v640
        %v845 = vunpack.c.l.b16 %v641
        %v846 = vunpack.c.l.b16 %v642
        %v847 = vunpack.c.h.b16 %v642
        %v848 = vunpack.c.l.b16 %v643
        %v849 = vunpack.c.h.b16 %v643
        %v850 = vunpack.c.l.b16 %v644
        %v851 = vunpack.c.l.b16 %v645
        %v852 = vunpack.c.h.b16 %v645
        %v853 = vunpack.c.l.b16 %v646
        %v854 = vunpack.c.h.b16 %v646
        %v855 = vunpack.c.l.b16 %v647
        %v856 = vunpack.c.l.b16 %v648
        %v857 = vunpack.c.h.b16 %v648
        %v858 = vunpack.c.l.b16 %v649
        %v859 = vunpack.c.h.b16 %v649
        %v860 = vunpack.c.l.b16 %v650
        %v861 = vunpack.c.l.b16 %v651
        %v862 = vunpack.c.h.b16 %v651
        %v863 = vunpack.c.l.b16 %v652
        %v864 = vunpack.c.h.b16 %v652
        %v865 = vunpack.c.l.b16 %v653
        %v866 = vunpack.c.l.b16 %v654
        %v867 = vunpack.c.h.b16 %v654
        %v868 = vunpack.c.l.b16 %v655
        %v869 = vunpack.c.h.b16 %v655
        %v870 = vunpack.c.l.b16 %v656
        %v871 = vunpack.c.l.b16 %v657
        %v872 = vunpack.c.h.b16 %v657
        %v873 = vunpack.c.l.b16 %v658
        %v874 = vunpack.c.h.b16 %v658
        %v875 = vunpack.c.l.b16 %v659
        %v876 = vunpack.c.l.b16 %v660
        %v877 = vunpack.c.h.b16 %v660
        %v878 = vunpack.c.l.b16 %v661
        %v879 = vunpack.c.h.b16 %v661
        %v880 = vunpack.c.l.b16 %v662
        %v881 = vunpack.c.l.b16 %v663
        %v882 = vunpack.c.h.b16 %v663
        %v883 = vunpack.c.l.b16 %v664
        %v884 = vunpack.c.h.b16 %v664
        %v885 = vunpack.c.l.b16 %v665
        %v886 = vunpack.c.l.b16 %v666
        %v887 = vunpack.c.h.b16 %v666
        %v888 = vunpack.c.l.b16 %v667
        %v889 = vunpack.c.h.b16 %v667
        %v890 = vunpack.c.l.b16 %v668
        %v891 = vunpack.c.l.b16 %v669
        %v892 = vunpack.c.h.b16 %v669
        %v893 = vunpack.c.l.b16 %v670
        %v894 = vunpack.c.h.b16 %v670
        %v895 = vunpack.c.l.b16 %v671
        %v896 = vunpack.c.l.b16 %v672
        %v897 = vunpack.c.h.b16 %v672
        %v898 = vunpack.c.l.b16 %v673
        %v899 = vunpack.c.h.b16 %v673
        %v900 = vunpack.c.l.b16 %v674
        %v901 = vunpack.c.l.b16 %v675
        %v902 = vunpack.c.h.b16 %v675
        %v903 = vunpack.c.l.b16 %v676
        %v904 = vunpack.c.h.b16 %v676
        %v905 = vunpack.c.l.b16 %v677
        %v906 = vunpack.c.l.b16 %v678
        %v907 = vunpack.c.h.b16 %v678
        %v908 = vunpack.c.l.b16 %v679
        %v909 = vunpack.c.h.b16 %v679
        %v910 = vunpack.c.l.b16 %v680
        %v911 = vunpack.c.l.b16 %v681
        %v912 = vunpack.c.h.b16 %v681
        %v913 = vunpack.c.l.b16 %v682
        %v914 = vunpack.c.h.b16 %v682
        %v915 = vunpack.c.l.b16 %v683
        %v916 = vunpack.c.l.b16 %v684
        %v917 = vunpack.c.h.b16 %v684
        %v918 = vunpack.c.l.b16 %v685
        %v919 = vunpack.c.h.b16 %v685
        %v920 = vunpack.c.l.b16 %v686
        %v921 = vunpack.c.l.b16 %v687
        %v922 = vunpack.c.h.b16 %v687
        %v923 = vunpack.c.l.b16 %v688
        %v924 = vunpack.c.h.b16 %v688
        %v925 = vunpack.c.l.b16 %v689
        %v926 = vunpack.c.l.b16 %v690
        %v927 = vunpack.c.h.b16 %v690
        %v928 = vunpack.c.l.b16 %v691
        %v929 = vunpack.c.h.b16 %v691
        %v930 = vunpack.c.l.b16 %v692
        %v931 = vunpack.c.l.b16 %v693
        %v932 = vunpack.c.h.b16 %v693
        %v933 = vunpack.c.l.b16 %v694
        %v934 = vunpack.c.h.b16 %v694
        %v935 = vunpack.c.l.b16 %v695
        %v936 = vunpack.c.l.b16 %v696
        %v937 = vunpack.c.h.b16 %v696
        %v938 = vunpack.c.l.b16 %v697
        %v939 = vunpack.c.h.b16 %v697
        %v940 = vunpack.c.l.b16 %v698
        %v941 = vunpack.c.l.b16 %v699
        %v942 = vunpack.c.h.b16 %v699
        %v943 = vunpack.c.l.b16 %v700
        %v944 = vunpack.c.h.b16 %v700
        %v945 = vunpack.c.l.b16 %v701
        %v946 = vunpack.c.l.b16 %v702
        %v947 = vunpack.c.h.b16 %v702
        %v948 = vunpack.c.l.b16 %v703
        %v949 = vunpack.c.h.b16 %v703
        %v950 = vunpack.c.l.b16 %v704
        %v951 = vunpack.c.l.b16 %v705
        %v952 = vunpack.c.h.b16 %v705
        %v953 = vunpack.c.l.b16 %v706
        %v954 = vunpack.c.h.b16 %v706
        %v955 = vunpack.c.l.b16 %v707
        %v956 = vunpack.c.l.b16 %v708
        %v957 = vunpack.c.h.b16 %v708
        %v958 = vunpack.c.l.b16 %v709
        %v959 = vunpack.c.h.b16 %v709
        %v960 = vunpack.c.l.b16 %v710
        %v961 = vunpack.c.l.b16 %v711
        %v962 = vunpack.c.h.b16 %v711
        %v963 = vunpack.c.l.b16 %v712
        %v964 = vunpack.c.h.b16 %v712
        %v965 = vunpack.c.l.b16 %v713
        %v966 = vunpack.c.l.b16 %v714
        %v967 = vunpack.c.h.b16 %v714
        %v968 = vunpack.c.l.b16 %v715
        %v969 = vunpack.c.h.b16 %v715
        %v970 = vunpack.c.l.b16 %v716
        %v971 = vunpack.c.l.b16 %v717
        %v972 = vunpack.c.h.b16 %v717
        %v973 = vunpack.c.l.b16 %v718
        %v974 = vunpack.c.h.b16 %v718
        %v975 = vunpack.c.l.b16 %v719
        %v976 = vpack.c.b16 %v821, %v816
        %v977 = vpack.c.b16 %v822, %v817
        %v978 = vpack.c.b16 %v823, %v818
        %v979 = vpack.c.b16 %v824, %v819
        %v980 = vpack.c.b16 %v825, %v820
        %v981 = vpack.c.b16 %v831, %v826
        %v982 = vpack.c.b16 %v832, %v827
        %v983 = vpack.c.b16 %v833, %v828
        %v984 = vpack.c.b16 %v834, %v829
        %v985 = vpack.c.b16 %v835, %v830
        %v986 = vpack.c.b16 %v841, %v836
        %v987 = vpack.c.b16 %v842, %v837
        %v988 = vpack.c.b16 %v843, %v838
        %v989 = vpack.c.b16 %v844, %v839
        %v990 = vpack.c.b16 %v845, %v840
        %v991 = vpack.c.b16 %v851, %v846
        %v992 = vpack.c.b16 %v852, %v847
        %v993 = vpack.c.b16 %v853, %v848
        %v994 = vpack.c.b16 %v854, %v849
        %v995 = vpack.c.b16 %v855, %v850
        %v996 = vpack.c.b16 %v861, %v856
        %v997 = vpack.c.b16 %v862, %v857
        %v998 = vpack.c.b16 %v863, %v858
        %v999 = vpack.c.b16 %v864, %v859
        %v1000 = vpack.c.b16 %v865, %v860
        %v1001 = vpack.c.b16 %v871, %v866
        %v1002 = vpack.c.b16 %v872, %v867
        %v1003 = vpack.c.b16 %v873, %v868
        %v1004 = vpack.c.b16 %v874, %v869
        %v1005 = vpack.c.b16 %v875, %v870
        %v1006 = vpack.c.b16 %v881, %v876
        %v1007 = vpack.c.b16 %v882, %v877
        %v1008 = vpack.c.b16 %v883, %v878
        %v1009 = vpack.c.b16 %v884, %v879
        %v1010 = vpack.c.b16 %v885, %v880
        %v1011 = vpack.c.b16 %v891, %v886
        %v1012 = vpack.c.b16 %v892, %v887
        %v1013 = vpack.c.b16 %v893, %v888
        %v1014 = vpack.c.b16 %v894, %v889
        %v1015 = vpack.c.b16 %v895, %v890
        %v1016 = vpack.c.b16 %v901, %v896
        %v1017 = vpack.c.b16 %v902, %v897
        %v1018 = vpack.c.b16 %v903, %v898
        %v1019 = vpack.c.b16 %v904, %v899
        %v1020 = vpack.c.b16 %v905, %v900
        %v1021 = vpack.c.b16 %v911, %v906
        %v1022 = vpack.c.b16 %v912, %v907
        %v1023 = vpack.c.b16 %v913, %v908
        %v1024 = vpack.c.b16 %v914, %v909
        %v1025 = vpack.c.b16 %v915, %v910
        %v1026 = vpack.c.b16 %v921, %v916
        %v1027 = vpack.c.b16 %v922, %v917
        %v1028 = vpack.c.b16 %v923, %v918
        %v1029 = vpack.c.b16 %v924, %v919
        %v1030 = vpack.c.b16 %v925, %v920
        %v1031 = vpack.c.b16 %v931, %v926
        %v1032 = vpack.c.b16 %v932, %v927
        %v1033 = vpack.c.b16 %v933, %v928
        %v1034 = vpack.c.b16 %v934, %v929
        %v1035 = vpack.c.b16 %v935, %v930
        %v1036 = vpack.c.b16 %v941, %v936
        %v1037 = vpack.c.b16 %v942, %v937
        %v1038 = vpack.c.b16 %v943, %v938
        %v1039 = vpack.c.b16 %v944, %v939
        %v1040 = vpack.c.b16 %v945, %v940
        %v1041 = vpack.c.b16 %v951, %v946
        %v1042 = vpack.c.b16 %v952, %v947
        %v1043 = vpack.c.b16 %v953, %v948
        %v1044 = vpack.c.b16 %v954, %v949
        %v1045 = vpack.c.b16 %v955, %v950
        %v1046 = vpack.c.b16 %v961, %v956
        %v1047 = vpack.c.b16 %v962, %v957
        %v1048 = vpack.c.b16 %v963, %v958
        %v1049 = vpack.c.b16 %v964, %v959
        %v1050 = vpack.c.b16 %v965, %v960
        %v1051 = vpack.c.b16 %v971, %v966
        %v1052 = vpack.c.b16 %v972, %v967
        %v1053 = vpack.c.b16 %v973, %v968
        %v1054 = vpack.c.b16 %v974, %v969
        %v1055 = vpack.c.b16 %v975, %v970
        %1136 = vmatpush.bf16.msra.mxu0 %v1011
        %1137 = vmatpush.bf16.msra.mxu0 %v1006
        %1138 = vmatpush.bf16.msra.mxu0 %v1001
        %1139 = vmatpush.bf16.msra.mxu0 %v996
        %1140 = vmatpush.bf16.msra.mxu0 %v991
        %1141 = vmatpush.bf16.msra.mxu0 %v986
        %1142 = vmatpush.bf16.msra.mxu0 %v981
        %1143 = vmatpush.bf16.msra.mxu0 %v976
        %1144 = vmatmul.bf16.gmra.mxu0 %v622
        %v1145 = vpop.f32.mrf.mxu0
        %v1146 = vadd.f32 0.0, %v1145
        %v1147 = vpop.f32.mrf.mxu0
        %1148 = vdwg.mxu0
        %1149 = vmatpush.bf16.msra.mxu0 %v1051
        %1150 = vmatpush.bf16.msra.mxu0 %v1046
        %1151 = vmatpush.bf16.msra.mxu0 %v1041
        %1152 = vmatpush.bf16.msra.mxu0 %v1036
        %1153 = vmatpush.bf16.msra.mxu0 %v1031
        %1154 = vmatpush.bf16.msra.mxu0 %v1026
        %1155 = vmatpush.bf16.msra.mxu0 %v1021
        %1156 = vmatpush.bf16.msra.mxu0 %v1016
        %1157 = vmatmul.bf16.gmra.mxu0 %v623
        %v1158 = vpop.f32.mrf.mxu0
        %v1159 = vadd.f32 %v1146, %v1158
        %v1160 = vpop.f32.mrf.mxu0
        %1161 = vdwg.mxu0
        %1162 = vmatpush.bf16.msra.mxu0 %v1012
        %1163 = vmatpush.bf16.msra.mxu0 %v1007
        %1164 = vmatpush.bf16.msra.mxu0 %v1002
        %1165 = vmatpush.bf16.msra.mxu0 %v997
        %1166 = vmatpush.bf16.msra.mxu0 %v992
        %1167 = vmatpush.bf16.msra.mxu0 %v987
        %1168 = vmatpush.bf16.msra.mxu0 %v982
        %1169 = vmatpush.bf16.msra.mxu0 %v977
        %1170 = vmatmul.bf16.gmra.mxu0 %v622
        %v1171 = vpop.f32.mrf.mxu0
        %v1172 = vadd.f32 0.0, %v1171
        %v1173 = vpop.f32.mrf.mxu0
        %1174 = vdwg.mxu0
        %1175 = vmatpush.bf16.msra.mxu0 %v1052
        %1176 = vmatpush.bf16.msra.mxu0 %v1047
        %1177 = vmatpush.bf16.msra.mxu0 %v1042
        %1178 = vmatpush.bf16.msra.mxu0 %v1037
        %1179 = vmatpush.bf16.msra.mxu0 %v1032
        %1180 = vmatpush.bf16.msra.mxu0 %v1027
        %1181 = vmatpush.bf16.msra.mxu0 %v1022
        %1182 = vmatpush.bf16.msra.mxu0 %v1017
        %1183 = vmatmul.bf16.gmra.mxu0 %v623
        %v1184 = vpop.f32.mrf.mxu0
        %v1185 = vadd.f32 %v1172, %v1184
        %v1186 = vpop.f32.mrf.mxu0
        %1187 = vdwg.mxu0
        %1188 = vmatpush.bf16.msra.mxu0 %v1013
        %1189 = vmatpush.bf16.msra.mxu0 %v1008
        %1190 = vmatpush.bf16.msra.mxu0 %v1003
        %1191 = vmatpush.bf16.msra.mxu0 %v998
        %1192 = vmatpush.bf16.msra.mxu0 %v993
        %1193 = vmatpush.bf16.msra.mxu0 %v988
        %1194 = vmatpush.bf16.msra.mxu0 %v983
        %1195 = vmatpush.bf16.msra.mxu0 %v978
        %1196 = vmatmul.bf16.gmra.mxu0 %v622
        %v1197 = vpop.f32.mrf.mxu0
        %v1198 = vadd.f32 0.0, %v1197
        %v1199 = vpop.f32.mrf.mxu0
        %1200 = vdwg.mxu0
        %1201 = vmatpush.bf16.msra.mxu0 %v1053
        %1202 = vmatpush.bf16.msra.mxu0 %v1048
        %1203 = vmatpush.bf16.msra.mxu0 %v1043
        %1204 = vmatpush.bf16.msra.mxu0 %v1038
        %1205 = vmatpush.bf16.msra.mxu0 %v1033
        %1206 = vmatpush.bf16.msra.mxu0 %v1028
        %1207 = vmatpush.bf16.msra.mxu0 %v1023
        %1208 = vmatpush.bf16.msra.mxu0 %v1018
        %1209 = vmatmul.bf16.gmra.mxu0 %v623
        %v1210 = vpop.f32.mrf.mxu0
        %v1211 = vadd.f32 %v1198, %v1210
        %v1212 = vpop.f32.mrf.mxu0
        %1213 = vdwg.mxu0
        %1214 = vmatpush.bf16.msra.mxu0 %v1014
        %1215 = vmatpush.bf16.msra.mxu0 %v1009
        %1216 = vmatpush.bf16.msra.mxu0 %v1004
        %1217 = vmatpush.bf16.msra.mxu0 %v999
        %1218 = vmatpush.bf16.msra.mxu0 %v994
        %1219 = vmatpush.bf16.msra.mxu0 %v989
        %1220 = vmatpush.bf16.msra.mxu0 %v984
        %1221 = vmatpush.bf16.msra.mxu0 %v979
        %1222 = vmatmul.bf16.gmra.mxu0 %v622
        %v1223 = vpop.f32.mrf.mxu0
        %v1224 = vadd.f32 0.0, %v1223
        %v1225 = vpop.f32.mrf.mxu0
        %1226 = vdwg.mxu0
        %1227 = vmatpush.bf16.msra.mxu0 %v1054
        %1228 = vmatpush.bf16.msra.mxu0 %v1049
        %1229 = vmatpush.bf16.msra.mxu0 %v1044
        %1230 = vmatpush.bf16.msra.mxu0 %v1039
        %1231 = vmatpush.bf16.msra.mxu0 %v1034
        %1232 = vmatpush.bf16.msra.mxu0 %v1029
        %1233 = vmatpush.bf16.msra.mxu0 %v1024
        %1234 = vmatpush.bf16.msra.mxu0 %v1019
        %1235 = vmatmul.bf16.gmra.mxu0 %v623
        %v1236 = vpop.f32.mrf.mxu0
        %v1237 = vadd.f32 %v1224, %v1236
        %v1238 = vpop.f32.mrf.mxu0
        %1239 = vdwg.mxu0
        %1240 = vmatpush.bf16.msra.mxu0 %v1015
        %1241 = vmatpush.bf16.msra.mxu0 %v1010
        %1242 = vmatpush.bf16.msra.mxu0 %v1005
        %1243 = vmatpush.bf16.msra.mxu0 %v1000
        %1244 = vmatpush.bf16.msra.mxu0 %v995
        %1245 = vmatpush.bf16.msra.mxu0 %v990
        %1246 = vmatpush.bf16.msra.mxu0 %v985
        %1247 = vmatpush.bf16.msra.mxu0 %v980
        %1248 = vmatmul.bf16.gmra.mxu0 %v622
        %v1249 = vpop.f32.mrf.mxu0
        %v1250 = vadd.f32 0.0, %v1249
        %v1251 = vpop.f32.mrf.mxu0
        %1252 = vdwg.mxu0
        %1253 = vmatpush.bf16.msra.mxu0 %v1055
        %1254 = vmatpush.bf16.msra.mxu0 %v1050
        %1255 = vmatpush.bf16.msra.mxu0 %v1045
        %1256 = vmatpush.bf16.msra.mxu0 %v1040
        %1257 = vmatpush.bf16.msra.mxu0 %v1035
        %1258 = vmatpush.bf16.msra.mxu0 %v1030
        %1259 = vmatpush.bf16.msra.mxu0 %v1025
        %1260 = vmatpush.bf16.msra.mxu0 %v1020
        %1261 = vmatmul.bf16.gmra.mxu0 %v623
        %v1262 = vpop.f32.mrf.mxu0
        %v1263 = vadd.f32 %v1250, %v1262
        %v1264 = vpop.f32.mrf.mxu0
        %1265 = vdwg.mxu0
        %v1266 = vpack.c.bf16 %v1185, %v1159
        %v1267 = vpack.c.bf16 %v1237, %v1211
        %v1268 = vpack.c.bf16 %v1263, %v1263
        %v1270 = vunpack.c.l.b16 %v1266
        %v1271 = vpack.c.b16 %v1270, %v1270
        %1272 = vrot.lane.b32.xlu0 %v1271, 64
        %v1273 = vpop.permute.xlu0 %1272
        %v1274 = vunpack.c.h.b16 %v1266
        %v1275 = vpack.c.b16 %v1274, %v1274
        %1276 = vrot.lane.b32.xlu0 %v1275, 64
        %v1277 = vpop.permute.xlu0 %1276
        %v1279 = vunpack.c.l.b16 %v1267
        %v1280 = vpack.c.b16 %v1279, %v1279
        %1281 = vrot.lane.b32.xlu0 %v1280, 64
        %v1282 = vpop.permute.xlu0 %1281
        %v1283 = vunpack.c.h.b16 %v1267
        %v1284 = vpack.c.b16 %v1283, %v1283
        %1285 = vrot.lane.b32.xlu0 %v1284, 64
        %v1286 = vpop.permute.xlu0 %1285
        %v1289 = vsel %vm617, %v1266, %v1273
        %v1293 = vsel %vm617, %v1275, %v1277
        %v1297 = vsel %vm617, %v1267, %v1282
        %v1301 = vsel %vm617, %v1284, %v1286
        %v1303 = vld [vmem:[%s6] sm:$0xf]
        %v1304 = vld [vmem:[%s6 + $0x4] sm:$0xf]
        %1305 = vset.pattern.permute.xlu0 1
        %1306 = vperm.xlu0 %1305, %v551
        %v1307 = vpop.permute.xlu0 %1306
        %v1311 = vunpack.c.l.b16 %v1303
        %v1312 = vunpack.c.l.b16 %v1304
        %v1313 = vpack.c.b16 %v1312, %v1311
        %vm1314 = vcmask 588800
        %v1316 = vsel %vm1314, %v1313, 0
        %v1319 = vsel %vm617, %v1268, 0
        %1321 = vmatpush.bf16.msra.mxu0 0
        %1322 = vmatpush.bf16.msra.mxu0 0
        %1323 = vmatpush.bf16.msra.mxu0 0
        %1324 = vmatpush.bf16.msra.mxu0 %v1319
        %1325 = vmatpush.bf16.msra.mxu0 %v1301
        %1326 = vmatpush.bf16.msra.mxu0 %v1297
        %1327 = vmatpush.bf16.msra.mxu0 %v1293
        %1328 = vmatpush.bf16.msra.mxu0 %v1289
        %1329 = vmatmul.bf16.gmra.mxu0 %v1316
        %v1330 = vpop.f32.mrf.mxu0
        %v1331 = vadd.f32 %v1307, %v1330
        %v1332 = vpop.f32.mrf.mxu0
        %v1333 = vadd.f32 %v1307, %v1332
        %1334 = vdwg.mxu0
        %vm1335 = vcmask 523264
        %v1336 = vsel %vm1335, %v1331, 0.0
        %1337 = vadd.xlane.f32.xlu0 %v1336
        %v1338 = vpop.xlane.xlu0 %1337
        %v1339 = vsel %vm1335, %v1333, 0.0
        %1340 = vadd.xlane.f32.xlu0 %v1339
        %v1341 = vpop.xlane.xlu0 %1340
        %v1342 = vmul.f32 %v1331, %v1331
        %v1343 = vmul.f32 %v1333, %v1333
        %v1344 = vsel %vm1335, %v1342, 0.0
        %1345 = vadd.xlane.f32.xlu0 %v1344
        %v1346 = vpop.xlane.xlu0 %1345
        %v1347 = vsel %vm1335, %v1343, 0.0
        %1348 = vadd.xlane.f32.xlu0 %v1347
        %v1349 = vpop.xlane.xlu0 %1348
        %v1350 = vadd.f32 %v1338, %v1341
        %v1351 = vadd.f32 %v1346, %v1349
        %v1352 = vmul.f32 %v1350, 0.0078125
        %v1353 = vmul.f32 %v1351, 0.0078125
        %v1354 = vmul.f32 %v1352, %v1352
        %v1355 = vsub.f32 %v1353, %v1354
        %v1356 = vmax.f32 %v1355, 0.0
        %v1357 = vadd.f32 %v1356, 1e-05
        %v1358 = vrsqrt.pop %v1357
        %v1359 = vmul.f32 %v1358, %v1357
        %v1360 = vmul.f32 %v1359, %v1358
        %v1361 = vmul.f32 0.5, %v1360
        %v1362 = vsub.f32 1.5, %v1361
        %v1363 = vmul.f32 %v1358, %v1362
        %vm1364 = vweird.f32 %v1357
        %vm1365 = vweird.f32 %v1358
        %vm1366 = vmor %vm1364, %vm1365
        %v1367 = vsel %vm1366, %v1358, %v1363
        %v1368 = vmul.f32 %v551, %v1367
        %v1369 = vmul.f32 %v1352, %v1368
        %1371 = vrot.lane.b32.xlu0 %v1369, 1
        %v1372 = vpop.permute.xlu0 %1371
        %v1374 = vsub.f32 %v551, %v1372
        %1376 = vset.pattern.permute.xlu0 2
        %1377 = vperm.xlu0 %1376, %v1368
        %v1378 = vpop.permute.xlu0 %1377
        %v1380 = vmul.f32 %v1331, %v1378
        %v1381 = vmul.f32 %v1333, %v1378
        %1383 = vset.pattern.permute.xlu0 3
        %1384 = vperm.xlu0 %1383, %v1374
        %v1385 = vpop.permute.xlu0 %1384
        %v1387 = vadd.f32 %v1380, %v1385
        %v1388 = vadd.f32 %v1381, %v1385
        %v1389 = vmax.f32 %v1387, 0.0
        %v1390 = vmax.f32 %v1388, 0.0
        %v1391 = vpack.c.bf16 %v1390, %v1389
        %v1392 = vld [vmem:[%s3] sm:$0xff]
        %v1393 = vld [vmem:[%s3 + $0x8] sm:$0xff]
        %v1394 = vld [vmem:[%s3 + $0x10] sm:$0xff]
        %v1395 = vld [vmem:[%s3 + $0x18] sm:$0xff]
        %v1396 = vld [vmem:[%s3 + $0x20] sm:$0xff]
        %v1397 = vld [vmem:[%s3 + $0x28] sm:$0xff]
        %v1398 = vld [vmem:[%s3 + $0x30] sm:$0xff]
        %v1399 = vld [vmem:[%s3 + $0x38] sm:$0xff]
        %v1408 = vunpack.c.l.b16 %v1392
        %v1409 = vunpack.c.h.b16 %v1392
        %v1410 = vunpack.c.l.b16 %v1393
        %v1411 = vunpack.c.h.b16 %v1393
        %v1412 = vunpack.c.l.b16 %v1394
        %v1413 = vunpack.c.h.b16 %v1394
        %v1414 = vunpack.c.l.b16 %v1395
        %v1415 = vunpack.c.h.b16 %v1395
        %v1416 = vunpack.c.l.b16 %v1396
        %v1417 = vunpack.c.h.b16 %v1396
        %v1418 = vunpack.c.l.b16 %v1397
        %v1419 = vunpack.c.h.b16 %v1397
        %v1420 = vunpack.c.l.b16 %v1398
        %v1421 = vunpack.c.h.b16 %v1398
        %v1422 = vunpack.c.l.b16 %v1399
        %v1423 = vunpack.c.h.b16 %v1399
        %v1424 = vpack.c.b16 %v1410, %v1408
        %v1425 = vpack.c.b16 %v1411, %v1409
        %v1426 = vpack.c.b16 %v1414, %v1412
        %v1427 = vpack.c.b16 %v1415, %v1413
        %v1428 = vpack.c.b16 %v1418, %v1416
        %v1429 = vpack.c.b16 %v1419, %v1417
        %v1430 = vpack.c.b16 %v1422, %v1420
        %v1431 = vpack.c.b16 %v1423, %v1421
        %v1441 = vsel %vm1335, %v1391, 0
        %1443 = vmatpush.bf16.msra.mxu0 0
        %1444 = vmatpush.bf16.msra.mxu0 0
        %1445 = vmatpush.bf16.msra.mxu0 0
        %1446 = vmatpush.bf16.msra.mxu0 0
        %1447 = vmatpush.bf16.msra.mxu0 %v1430
        %1448 = vmatpush.bf16.msra.mxu0 %v1428
        %1449 = vmatpush.bf16.msra.mxu0 %v1426
        %1450 = vmatpush.bf16.msra.mxu0 %v1424
        %1451 = vmatmul.bf16.gmra.mxu0 %v1441
        %v1452 = vpop.f32.mrf.mxu0
        %v1453 = vadd.f32 0.0, %v1452
        %v1454 = vpop.f32.mrf.mxu0
        %v1455 = vadd.f32 0.0, %v1454
        %1456 = vdwg.mxu0
        %1457 = vmatpush.bf16.msra.mxu0 0
        %1458 = vmatpush.bf16.msra.mxu0 0
        %1459 = vmatpush.bf16.msra.mxu0 0
        %1460 = vmatpush.bf16.msra.mxu0 0
        %1461 = vmatpush.bf16.msra.mxu0 %v1431
        %1462 = vmatpush.bf16.msra.mxu0 %v1429
        %1463 = vmatpush.bf16.msra.mxu0 %v1427
        %1464 = vmatpush.bf16.msra.mxu0 %v1425
        %1465 = vmatmul.bf16.gmra.mxu0 %v1441
        %v1466 = vpop.f32.mrf.mxu0
        %v1467 = vadd.f32 0.0, %v1466
        %v1468 = vpop.f32.mrf.mxu0
        %v1469 = vadd.f32 0.0, %v1468
        %1470 = vdwg.mxu0
        %v1471 = vpack.c.bf16 %v1467, %v1453
        %v1472 = vpack.c.bf16 %v1469, %v1455
        %v1475 = vunpack.c.l.b16 %v1471
        %v1476 = vunpack.c.l.b16 %v1472
        %v1477 = vpack.c.b16 %v1476, %v1475
        %1479 = vrot.lane.b32.xlu0 %v1477, 112
        %v1480 = vpop.permute.xlu0 %1479
        %1482 = vrot.lane.b32.xlu0 %v1477, 96
        %v1483 = vpop.permute.xlu0 %1482
        %1485 = vrot.lane.b32.xlu0 %v1477, 80
        %v1486 = vpop.permute.xlu0 %1485
        %1488 = vrot.lane.b32.xlu0 %v1477, 64
        %v1489 = vpop.permute.xlu0 %1488
        %1491 = vrot.lane.b32.xlu0 %v1477, 48
        %v1492 = vpop.permute.xlu0 %1491
        %1494 = vrot.lane.b32.xlu0 %v1477, 32
        %v1495 = vpop.permute.xlu0 %1494
        %1497 = vrot.lane.b32.xlu0 %v1477, 16
        %v1498 = vpop.permute.xlu0 %1497
        %v1500 = vunpack.c.h.b16 %v1471
        %v1501 = vunpack.c.h.b16 %v1472
        %v1502 = vpack.c.b16 %v1501, %v1500
        %v1504 = vld [vmem:[%s7] sm:$0xff]
        %v1505 = vld [vmem:[%s7 + $0x8] sm:$0xff]
        %v1506 = vld [vmem:[%s7 + $0x10] sm:$0xff]
        %v1507 = vld [vmem:[%s7 + $0x18] sm:$0xff]
        %1508 = vset.pattern.permute.xlu0 4
        %1509 = vperm.xlu0 %1508, %v551
        %v1510 = vpop.permute.xlu0 %1509
        %1513 = vset.pattern.permute.xlu0 4
        %1514 = vperm.xlu0 %1513, %v552
        %v1515 = vpop.permute.xlu0 %1514
        %v1521 = vunpack.c.l.b16 %v1504
        %v1522 = vunpack.c.h.b16 %v1504
        %v1523 = vunpack.c.l.b16 %v1505
        %v1524 = vunpack.c.h.b16 %v1505
        %v1525 = vunpack.c.l.b16 %v1506
        %v1526 = vunpack.c.h.b16 %v1506
        %v1527 = vunpack.c.l.b16 %v1507
        %v1528 = vunpack.c.h.b16 %v1507
        %v1529 = vpack.c.b16 %v1523, %v1521
        %v1530 = vpack.c.b16 %v1524, %v1522
        %v1531 = vpack.c.b16 %v1527, %v1525
        %v1532 = vpack.c.b16 %v1528, %v1526
        %vm1535 = vcmask 130048
        %v1537 = vsel %vm1535, %v1530, 0
        %v1540 = vsel %vm1535, %v1532, 0
        %1542 = vmatpush.bf16.msra.mxu0 %v1498
        %1543 = vmatpush.bf16.msra.mxu0 %v1495
        %1544 = vmatpush.bf16.msra.mxu0 %v1492
        %1545 = vmatpush.bf16.msra.mxu0 %v1489
        %1546 = vmatpush.bf16.msra.mxu0 %v1486
        %1547 = vmatpush.bf16.msra.mxu0 %v1483
        %1548 = vmatpush.bf16.msra.mxu0 %v1480
        %1549 = vmatpush.bf16.msra.mxu0 %v1477
        %1550 = vmatmul.bf16.gmra.mxu0 %v1529
        %v1551 = vpop.f32.mrf.mxu0
        %v1552 = vadd.f32 %v1510, %v1551
        %v1553 = vpop.f32.mrf.mxu0
        %v1554 = vadd.f32 %v1515, %v1553
        %1555 = vmatmul.bf16.gmra.mxu0 %v1531
        %v1556 = vpop.f32.mrf.mxu0
        %v1557 = vadd.f32 %v1510, %v1556
        %v1558 = vpop.f32.mrf.mxu0
        %v1559 = vadd.f32 %v1515, %v1558
        %1560 = vdwg.mxu0
        %1561 = vmatpush.bf16.msra.mxu0 0
        %1562 = vmatpush.bf16.msra.mxu0 0
        %1563 = vmatpush.bf16.msra.mxu0 0
        %1564 = vmatpush.bf16.msra.mxu0 0
        %1565 = vmatpush.bf16.msra.mxu0 0
        %1566 = vmatpush.bf16.msra.mxu0 0
        %1567 = vmatpush.bf16.msra.mxu0 0
        %1568 = vmatpush.bf16.msra.mxu0 %v1502
        %1569 = vmatmul.bf16.gmra.mxu0 %v1537
        %v1570 = vpop.f32.mrf.mxu0
        %v1571 = vadd.f32 %v1552, %v1570
        %v1572 = vpop.f32.mrf.mxu0
        %v1573 = vadd.f32 %v1554, %v1572
        %1574 = vmatmul.bf16.gmra.mxu0 %v1540
        %v1575 = vpop.f32.mrf.mxu0
        %v1576 = vadd.f32 %v1557, %v1575
        %v1577 = vpop.f32.mrf.mxu0
        %v1578 = vadd.f32 %v1559, %v1577
        %1579 = vdwg.mxu0
        %v1580 = vsel %vm1535, %v1571, 0.0
        %1581 = vadd.xlane.f32.xlu0 %v1580
        %v1582 = vpop.xlane.xlu0 %1581
        %v1583 = vsel %vm1535, %v1573, 0.0
        %1584 = vadd.xlane.f32.xlu0 %v1583
        %v1585 = vpop.xlane.xlu0 %1584
        %v1586 = vsel %vm1535, %v1576, 0.0
        %1587 = vadd.xlane.f32.xlu0 %v1586
        %v1588 = vpop.xlane.xlu0 %1587
        %v1589 = vsel %vm1535, %v1578, 0.0
        %1590 = vadd.xlane.f32.xlu0 %v1589
        %v1591 = vpop.xlane.xlu0 %1590
        %v1592 = vmul.f32 %v1571, %v1571
        %v1593 = vmul.f32 %v1573, %v1573
        %v1594 = vmul.f32 %v1576, %v1576
        %v1595 = vmul.f32 %v1578, %v1578
        %v1596 = vsel %vm1535, %v1592, 0.0
        %1597 = vadd.xlane.f32.xlu0 %v1596
        %v1598 = vpop.xlane.xlu0 %1597
        %v1599 = vsel %vm1535, %v1593, 0.0
        %1600 = vadd.xlane.f32.xlu0 %v1599
        %v1601 = vpop.xlane.xlu0 %1600
        %v1602 = vsel %vm1535, %v1594, 0.0
        %1603 = vadd.xlane.f32.xlu0 %v1602
        %v1604 = vpop.xlane.xlu0 %1603
        %v1605 = vsel %vm1535, %v1595, 0.0
        %1606 = vadd.xlane.f32.xlu0 %v1605
        %v1607 = vpop.xlane.xlu0 %1606
        %v1608 = vadd.f32 %v1582, %v1588
        %v1609 = vadd.f32 %v1585, %v1591
        %v1610 = vadd.f32 %v1598, %v1604
        %v1611 = vadd.f32 %v1601, %v1607
        %v1612 = vmul.f32 %v1608, 0.03125
        %v1613 = vmul.f32 %v1609, 0.03125
        %v1614 = vmul.f32 %v1610, 0.03125
        %v1615 = vmul.f32 %v1611, 0.03125
        %v1616 = vmul.f32 %v1612, %v1612
        %v1617 = vmul.f32 %v1613, %v1613
        %v1618 = vsub.f32 %v1614, %v1616
        %v1619 = vsub.f32 %v1615, %v1617
        %v1620 = vmax.f32 %v1618, 0.0
        %v1621 = vmax.f32 %v1619, 0.0
        %v1622 = vadd.f32 %v1620, 1e-05
        %v1623 = vadd.f32 %v1621, 1e-05
        %v1624 = vrsqrt.pop %v1622
        %v1625 = vmul.f32 %v1624, %v1622
        %v1626 = vmul.f32 %v1625, %v1624
        %v1627 = vmul.f32 0.5, %v1626
        %v1628 = vsub.f32 1.5, %v1627
        %v1629 = vmul.f32 %v1624, %v1628
        %vm1630 = vweird.f32 %v1622
        %vm1631 = vweird.f32 %v1624
        %vm1632 = vmor %vm1630, %vm1631
        %v1633 = vsel %vm1632, %v1624, %v1629
        %v1634 = vrsqrt.pop %v1623
        %v1635 = vmul.f32 %v1634, %v1623
        %v1636 = vmul.f32 %v1635, %v1634
        %v1637 = vmul.f32 0.5, %v1636
        %v1638 = vsub.f32 1.5, %v1637
        %v1639 = vmul.f32 %v1634, %v1638
        %vm1640 = vweird.f32 %v1623
        %vm1641 = vweird.f32 %v1634
        %vm1642 = vmor %vm1640, %vm1641
        %v1643 = vsel %vm1642, %v1634, %v1639
        %v1644 = vmul.f32 %v551, %v1633
        %v1645 = vmul.f32 %v552, %v1643
        %v1646 = vmul.f32 %v1612, %v1644
        %v1647 = vmul.f32 %v1613, %v1645
        %1650 = vrot.lane.b32.xlu0 %v1646, 1
        %v1651 = vpop.permute.xlu0 %1650
        %1652 = vrot.lane.b32.xlu0 %v1647, 1
        %v1653 = vpop.permute.xlu0 %1652
        %v1656 = vsub.f32 %v551, %v1651
        %v1657 = vsub.f32 %v552, %v1653
        %1659 = vset.pattern.permute.xlu0 5
        %1660 = vperm.xlu0 %1659, %v1644
        %v1661 = vpop.permute.xlu0 %1660
        %1664 = vset.pattern.permute.xlu0 5
        %1665 = vperm.xlu0 %1664, %v1645
        %v1666 = vpop.permute.xlu0 %1665
        %v1668 = vmul.f32 %v1571, %v1661
        %v1669 = vmul.f32 %v1573, %v1666
        %v1670 = vmul.f32 %v1576, %v1661
        %v1671 = vmul.f32 %v1578, %v1666
        %1673 = vset.pattern.permute.xlu0 6
        %1674 = vperm.xlu0 %1673, %v1656
        %v1675 = vpop.permute.xlu0 %1674
        %1678 = vset.pattern.permute.xlu0 6
        %1679 = vperm.xlu0 %1678, %v1657
        %v1680 = vpop.permute.xlu0 %1679
        %v1682 = vadd.f32 %v1668, %v1675
        %v1683 = vadd.f32 %v1669, %v1680
        %v1684 = vadd.f32 %v1670, %v1675
        %v1685 = vadd.f32 %v1671, %v1680
        %v1686 = vmax.f32 %v1682, 0.0
        %v1687 = vmax.f32 %v1683, 0.0
        %v1688 = vmax.f32 %v1684, 0.0
        %v1689 = vmax.f32 %v1685, 0.0
        %v1691 = vrot.slane %v1686, 1
        %1692 = vrot.lane.b32.xlu0 %v1691, 16
        %v1693 = vpop.permute.xlu0 %1692
        %v1695 = vrot.slane %v1686, 2
        %1696 = vrot.lane.b32.xlu0 %v1695, 32
        %v1697 = vpop.permute.xlu0 %1696
        %v1699 = vrot.slane %v1686, 3
        %1700 = vrot.lane.b32.xlu0 %v1699, 48
        %v1701 = vpop.permute.xlu0 %1700
        %v1703 = vrot.slane %v1686, 4
        %1704 = vrot.lane.b32.xlu0 %v1703, 64
        %v1705 = vpop.permute.xlu0 %1704
        %v1707 = vrot.slane %v1686, 5
        %1708 = vrot.lane.b32.xlu0 %v1707, 80
        %v1709 = vpop.permute.xlu0 %1708
        %v1711 = vrot.slane %v1686, 6
        %1712 = vrot.lane.b32.xlu0 %v1711, 96
        %v1713 = vpop.permute.xlu0 %1712
        %v1715 = vrot.slane %v1686, 7
        %1716 = vrot.lane.b32.xlu0 %v1715, 112
        %v1717 = vpop.permute.xlu0 %1716
        %v1719 = vsel %vm1535, %v1686, %v1693
        %vm1720 = vcmask 261120
        %v1721 = vsel %vm1720, %v1719, %v1697
        %vm1722 = vcmask 392192
        %v1723 = vsel %vm1722, %v1721, %v1701
        %v1724 = vsel %vm1335, %v1723, %v1705
        %vm1725 = vcmask 654336
        %v1726 = vsel %vm1725, %v1724, %v1709
        %vm1727 = vcmask 785408
        %v1728 = vsel %vm1727, %v1726, %v1713
        %vm1729 = vcmask 916480
        %v1730 = vsel %vm1729, %v1728, %v1717
        %v1732 = vrot.slane %v1688, 1
        %1733 = vrot.lane.b32.xlu0 %v1732, 16
        %v1734 = vpop.permute.xlu0 %1733
        %v1736 = vrot.slane %v1688, 2
        %1737 = vrot.lane.b32.xlu0 %v1736, 32
        %v1738 = vpop.permute.xlu0 %1737
        %v1740 = vrot.slane %v1688, 3
        %1741 = vrot.lane.b32.xlu0 %v1740, 48
        %v1742 = vpop.permute.xlu0 %1741
        %v1744 = vrot.slane %v1688, 4
        %1745 = vrot.lane.b32.xlu0 %v1744, 64
        %v1746 = vpop.permute.xlu0 %1745
        %v1748 = vrot.slane %v1688, 5
        %1749 = vrot.lane.b32.xlu0 %v1748, 80
        %v1750 = vpop.permute.xlu0 %1749
        %v1752 = vrot.slane %v1688, 6
        %1753 = vrot.lane.b32.xlu0 %v1752, 96
        %v1754 = vpop.permute.xlu0 %1753
        %v1756 = vrot.slane %v1688, 7
        %1757 = vrot.lane.b32.xlu0 %v1756, 112
        %v1758 = vpop.permute.xlu0 %1757
        %v1760 = vsel %vm1535, %v1688, %v1734
        %v1761 = vsel %vm1720, %v1760, %v1738
        %v1762 = vsel %vm1722, %v1761, %v1742
        %v1763 = vsel %vm1335, %v1762, %v1746
        %v1764 = vsel %vm1725, %v1763, %v1750
        %v1765 = vsel %vm1727, %v1764, %v1754
        %v1766 = vsel %vm1729, %v1765, %v1758
        %v1768 = vrot.slane %v1766, 7
        %vm1770 = vcmask 1040384
        %v1771 = vsel %vm1770, %v1730, %v1768
        %v1773 = vrot.slane %v1687, 1
        %1774 = vrot.lane.b32.xlu0 %v1773, 16
        %v1775 = vpop.permute.xlu0 %1774
        %v1777 = vrot.slane %v1687, 2
        %1778 = vrot.lane.b32.xlu0 %v1777, 32
        %v1779 = vpop.permute.xlu0 %1778
        %v1781 = vrot.slane %v1687, 3
        %1782 = vrot.lane.b32.xlu0 %v1781, 48
        %v1783 = vpop.permute.xlu0 %1782
        %v1785 = vrot.slane %v1687, 4
        %1786 = vrot.lane.b32.xlu0 %v1785, 64
        %v1787 = vpop.permute.xlu0 %1786
        %v1789 = vrot.slane %v1687, 5
        %1790 = vrot.lane.b32.xlu0 %v1789, 80
        %v1791 = vpop.permute.xlu0 %1790
        %v1793 = vrot.slane %v1687, 6
        %1794 = vrot.lane.b32.xlu0 %v1793, 96
        %v1795 = vpop.permute.xlu0 %1794
        %v1797 = vrot.slane %v1687, 7
        %1798 = vrot.lane.b32.xlu0 %v1797, 112
        %v1799 = vpop.permute.xlu0 %1798
        %v1801 = vsel %vm1535, %v1687, %v1775
        %v1802 = vsel %vm1720, %v1801, %v1779
        %v1803 = vsel %vm1722, %v1802, %v1783
        %v1804 = vsel %vm1335, %v1803, %v1787
        %v1805 = vsel %vm1725, %v1804, %v1791
        %v1806 = vsel %vm1727, %v1805, %v1795
        %v1807 = vsel %vm1729, %v1806, %v1799
        %v1809 = vrot.slane %v1689, 1
        %1810 = vrot.lane.b32.xlu0 %v1809, 16
        %v1811 = vpop.permute.xlu0 %1810
        %v1813 = vrot.slane %v1689, 2
        %1814 = vrot.lane.b32.xlu0 %v1813, 32
        %v1815 = vpop.permute.xlu0 %1814
        %v1817 = vrot.slane %v1689, 3
        %1818 = vrot.lane.b32.xlu0 %v1817, 48
        %v1819 = vpop.permute.xlu0 %1818
        %v1821 = vrot.slane %v1689, 4
        %1822 = vrot.lane.b32.xlu0 %v1821, 64
        %v1823 = vpop.permute.xlu0 %1822
        %v1825 = vrot.slane %v1689, 5
        %1826 = vrot.lane.b32.xlu0 %v1825, 80
        %v1827 = vpop.permute.xlu0 %1826
        %v1829 = vrot.slane %v1689, 6
        %1830 = vrot.lane.b32.xlu0 %v1829, 96
        %v1831 = vpop.permute.xlu0 %1830
        %v1833 = vrot.slane %v1689, 7
        %1834 = vrot.lane.b32.xlu0 %v1833, 112
        %v1835 = vpop.permute.xlu0 %1834
        %v1837 = vsel %vm1535, %v1689, %v1811
        %v1838 = vsel %vm1720, %v1837, %v1815
        %v1839 = vsel %vm1722, %v1838, %v1819
        %v1840 = vsel %vm1335, %v1839, %v1823
        %v1841 = vsel %vm1725, %v1840, %v1827
        %v1842 = vsel %vm1727, %v1841, %v1831
        %v1843 = vsel %vm1729, %v1842, %v1835
        %v1845 = vrot.slane %v1843, 7
        %v1847 = vsel %vm1770, %v1807, %v1845
        %v1848 = vmul.f32 %v1847, 1.442695
        %v1849 = vpow.pop %v1848
        %v1850 = vmul.f32 %v555, %v1849
        %v1851 = vadd.f32 %v1771, %v1850
        %v1852 = vmul.f32 %v1849, %v1849
        %v1853 = vmul.f32 %v1771, %v1771
        %v1854 = vadd.f32 %v1852, %v1853
        %v1855 = vmul.f32 %v1847, 2.0
        %v1856 = vsub.f32 %v1854, %v1855
        %v1857 = vsub.f32 %v1856, 1.0
        %v1858 = vmul.f32 %v1857, 0.5
        %1859 = vst [vmem:[%s535] sm:$0x3] %v1858
        %v1860 = vpack.c.bf16 %v1851, %v1851
        %v1861 = vld [vmem:[%s10] sm:$0xff]
        %v1862 = vld [vmem:[%s10 + $0x8] sm:$0xff]
        %v1863 = vld [vmem:[%s10 + $0x10] sm:$0xff]
        %v1864 = vld [vmem:[%s10 + $0x18] sm:$0xff]
        %v1865 = vld [vmem:[%s10 + $0x20] sm:$0xff]
        %v1866 = vld [vmem:[%s10 + $0x28] sm:$0xff]
        %v1867 = vld [vmem:[%s10 + $0x30] sm:$0xff]
        %v1868 = vld [vmem:[%s10 + $0x38] sm:$0xff]
        %v1869 = vld [vmem:[%s10 + $0x40] sm:$0xff]
        %v1870 = vld [vmem:[%s10 + $0x48] sm:$0xff]
        %v1871 = vld [vmem:[%s10 + $0x50] sm:$0xff]
        %v1872 = vld [vmem:[%s10 + $0x58] sm:$0xff]
        %v1873 = vld [vmem:[%s10 + $0x60] sm:$0xff]
        %v1874 = vld [vmem:[%s10 + $0x68] sm:$0xff]
        %v1875 = vld [vmem:[%s10 + $0x70] sm:$0xff]
        %v1876 = vld [vmem:[%s10 + $0x78] sm:$0xff]
        %v1877 = vld [vmem:[%s11] sm:$0x3]
        %v1879 = vperm.slane %v1877, 0
        %v1880 = vperm.slane %v1877, 1
        %v1899 = vunpack.c.l.b16 %v1861
        %v1900 = vunpack.c.h.b16 %v1861
        %v1901 = vunpack.c.l.b16 %v1862
        %v1902 = vunpack.c.h.b16 %v1862
        %v1903 = vunpack.c.l.b16 %v1863
        %v1904 = vunpack.c.h.b16 %v1863
        %v1905 = vunpack.c.l.b16 %v1864
        %v1906 = vunpack.c.h.b16 %v1864
        %v1907 = vunpack.c.l.b16 %v1865
        %v1908 = vunpack.c.h.b16 %v1865
        %v1909 = vunpack.c.l.b16 %v1866
        %v1910 = vunpack.c.h.b16 %v1866
        %v1911 = vunpack.c.l.b16 %v1867
        %v1912 = vunpack.c.h.b16 %v1867
        %v1913 = vunpack.c.l.b16 %v1868
        %v1914 = vunpack.c.h.b16 %v1868
        %v1915 = vunpack.c.l.b16 %v1869
        %v1916 = vunpack.c.h.b16 %v1869
        %v1917 = vunpack.c.l.b16 %v1870
        %v1918 = vunpack.c.h.b16 %v1870
        %v1919 = vunpack.c.l.b16 %v1871
        %v1920 = vunpack.c.h.b16 %v1871
        %v1921 = vunpack.c.l.b16 %v1872
        %v1922 = vunpack.c.h.b16 %v1872
        %v1923 = vunpack.c.l.b16 %v1873
        %v1924 = vunpack.c.h.b16 %v1873
        %v1925 = vunpack.c.l.b16 %v1874
        %v1926 = vunpack.c.h.b16 %v1874
        %v1927 = vunpack.c.l.b16 %v1875
        %v1928 = vunpack.c.h.b16 %v1875
        %v1929 = vunpack.c.l.b16 %v1876
        %v1930 = vunpack.c.h.b16 %v1876
        %v1931 = vpack.c.b16 %v1901, %v1899
        %v1932 = vpack.c.b16 %v1902, %v1900
        %v1933 = vpack.c.b16 %v1905, %v1903
        %v1934 = vpack.c.b16 %v1906, %v1904
        %v1935 = vpack.c.b16 %v1909, %v1907
        %v1936 = vpack.c.b16 %v1910, %v1908
        %v1937 = vpack.c.b16 %v1913, %v1911
        %v1938 = vpack.c.b16 %v1914, %v1912
        %v1939 = vpack.c.b16 %v1917, %v1915
        %v1940 = vpack.c.b16 %v1918, %v1916
        %v1941 = vpack.c.b16 %v1921, %v1919
        %v1942 = vpack.c.b16 %v1922, %v1920
        %v1943 = vpack.c.b16 %v1925, %v1923
        %v1944 = vpack.c.b16 %v1926, %v1924
        %v1945 = vpack.c.b16 %v1929, %v1927
        %v1946 = vpack.c.b16 %v1930, %v1928
        %1963 = vmatpush.bf16.msra.mxu0 %v1945
        %1964 = vmatpush.bf16.msra.mxu0 %v1943
        %1965 = vmatpush.bf16.msra.mxu0 %v1941
        %1966 = vmatpush.bf16.msra.mxu0 %v1939
        %1967 = vmatpush.bf16.msra.mxu0 %v1937
        %1968 = vmatpush.bf16.msra.mxu0 %v1935
        %1969 = vmatpush.bf16.msra.mxu0 %v1933
        %1970 = vmatpush.bf16.msra.mxu0 %v1931
        %1971 = vmatmul.bf16.gmra.mxu0 %v1860
        %v1972 = vpop.f32.mrf.mxu0
        %v1973 = vadd.f32 %v1879, %v1972
        %v1974 = vpop.f32.mrf.mxu0
        %1975 = vdwg.mxu0
        %1976 = vmatpush.bf16.msra.mxu0 %v1946
        %1977 = vmatpush.bf16.msra.mxu0 %v1944
        %1978 = vmatpush.bf16.msra.mxu0 %v1942
        %1979 = vmatpush.bf16.msra.mxu0 %v1940
        %1980 = vmatpush.bf16.msra.mxu0 %v1938
        %1981 = vmatpush.bf16.msra.mxu0 %v1936
        %1982 = vmatpush.bf16.msra.mxu0 %v1934
        %1983 = vmatpush.bf16.msra.mxu0 %v1932
        %1984 = vmatmul.bf16.gmra.mxu0 %v1860
        %v1985 = vpop.f32.mrf.mxu0
        %v1986 = vadd.f32 %v1880, %v1985
        %v1987 = vpop.f32.mrf.mxu0
        %1988 = vdwg.mxu0
        %v1990 = vrot.slane %v1973, 7
        %1991 = vrot.lane.b32.xlu0 %v1990, 112
        %v1992 = vpop.permute.xlu0 %1991
        %v1994 = vrot.slane %v1973, 6
        %1995 = vrot.lane.b32.xlu0 %v1994, 96
        %v1996 = vpop.permute.xlu0 %1995
        %v1998 = vrot.slane %v1973, 5
        %1999 = vrot.lane.b32.xlu0 %v1998, 80
        %v2000 = vpop.permute.xlu0 %1999
        %v2002 = vrot.slane %v1973, 4
        %2003 = vrot.lane.b32.xlu0 %v2002, 64
        %v2004 = vpop.permute.xlu0 %2003
        %v2006 = vrot.slane %v1973, 3
        %2007 = vrot.lane.b32.xlu0 %v2006, 48
        %v2008 = vpop.permute.xlu0 %2007
        %v2010 = vrot.slane %v1973, 2
        %2011 = vrot.lane.b32.xlu0 %v2010, 32
        %v2012 = vpop.permute.xlu0 %2011
        %v2014 = vrot.slane %v1973, 1
        %2015 = vrot.lane.b32.xlu0 %v2014, 16
        %v2016 = vpop.permute.xlu0 %2015
        %v2019 = vrot.slane %v1986, 7
        %2020 = vrot.lane.b32.xlu0 %v2019, 112
        %v2021 = vpop.permute.xlu0 %2020
        %v2023 = vrot.slane %v1986, 6
        %2024 = vrot.lane.b32.xlu0 %v2023, 96
        %v2025 = vpop.permute.xlu0 %2024
        %v2027 = vrot.slane %v1986, 5
        %2028 = vrot.lane.b32.xlu0 %v2027, 80
        %v2029 = vpop.permute.xlu0 %2028
        %v2031 = vrot.slane %v1986, 4
        %2032 = vrot.lane.b32.xlu0 %v2031, 64
        %v2033 = vpop.permute.xlu0 %2032
        %v2035 = vrot.slane %v1986, 3
        %2036 = vrot.lane.b32.xlu0 %v2035, 48
        %v2037 = vpop.permute.xlu0 %2036
        %v2039 = vrot.slane %v1986, 2
        %2040 = vrot.lane.b32.xlu0 %v2039, 32
        %v2041 = vpop.permute.xlu0 %2040
        %v2043 = vrot.slane %v1986, 1
        %2044 = vrot.lane.b32.xlu0 %v2043, 16
        %v2045 = vpop.permute.xlu0 %2044
        %v2047 = vsel %vm1770, %v1973, %v1992
        %vm2048 = vcmask 1041408
        %v2049 = vsel %vm2048, %v2047, %v1996
        %vm2050 = vcmask 1042432
        %v2051 = vsel %vm2050, %v2049, %v2000
        %v2052 = vsel %vm617, %v2051, %v2004
        %vm2053 = vcmask 1044480
        %v2054 = vsel %vm2053, %v2052, %v2008
        %vm2055 = vcmask 1045504
        %v2056 = vsel %vm2055, %v2054, %v2012
        %vm2057 = vcmask 1046528
        %v2058 = vsel %vm2057, %v2056, %v2016
        %v2059 = vsel %vm1770, %v1986, %v2021
        %v2060 = vsel %vm2048, %v2059, %v2025
        %v2061 = vsel %vm2050, %v2060, %v2029
        %v2062 = vsel %vm617, %v2061, %v2033
        %v2063 = vsel %vm2053, %v2062, %v2037
        %v2064 = vsel %vm2055, %v2063, %v2041
        %v2065 = vsel %vm2057, %v2064, %v2045
        %2067 = vrot.lane.b32.xlu0 %v1973, 112
        %v2068 = vpop.permute.xlu0 %2067
        %2070 = vrot.lane.b32.xlu0 %v1990, 96
        %v2071 = vpop.permute.xlu0 %2070
        %2073 = vrot.lane.b32.xlu0 %v1994, 80
        %v2074 = vpop.permute.xlu0 %2073
        %2076 = vrot.lane.b32.xlu0 %v1998, 64
        %v2077 = vpop.permute.xlu0 %2076
        %2079 = vrot.lane.b32.xlu0 %v2002, 48
        %v2080 = vpop.permute.xlu0 %2079
        %2082 = vrot.lane.b32.xlu0 %v2006, 32
        %v2083 = vpop.permute.xlu0 %2082
        %2085 = vrot.lane.b32.xlu0 %v2010, 16
        %v2086 = vpop.permute.xlu0 %2085
        %2089 = vrot.lane.b32.xlu0 %v1986, 112
        %v2090 = vpop.permute.xlu0 %2089
        %2092 = vrot.lane.b32.xlu0 %v2019, 96
        %v2093 = vpop.permute.xlu0 %2092
        %2095 = vrot.lane.b32.xlu0 %v2023, 80
        %v2096 = vpop.permute.xlu0 %2095
        %2098 = vrot.lane.b32.xlu0 %v2027, 64
        %v2099 = vpop.permute.xlu0 %2098
        %2101 = vrot.lane.b32.xlu0 %v2031, 48
        %v2102 = vpop.permute.xlu0 %2101
        %2104 = vrot.lane.b32.xlu0 %v2035, 32
        %v2105 = vpop.permute.xlu0 %2104
        %2107 = vrot.lane.b32.xlu0 %v2039, 16
        %v2108 = vpop.permute.xlu0 %2107
        %v2110 = vsel %vm1770, %v2014, %v2068
        %v2111 = vsel %vm2048, %v2110, %v2071
        %v2112 = vsel %vm2050, %v2111, %v2074
        %v2113 = vsel %vm617, %v2112, %v2077
        %v2114 = vsel %vm2053, %v2113, %v2080
        %v2115 = vsel %vm2055, %v2114, %v2083
        %v2116 = vsel %vm2057, %v2115, %v2086
        %v2117 = vsel %vm1770, %v2043, %v2090
        %v2118 = vsel %vm2048, %v2117, %v2093
        %v2119 = vsel %vm2050, %v2118, %v2096
        %v2120 = vsel %vm617, %v2119, %v2099
        %v2121 = vsel %vm2053, %v2120, %v2102
        %v2122 = vsel %vm2055, %v2121, %v2105
        %v2123 = vsel %vm2057, %v2122, %v2108
        %v2124 = vpack.c.bf16 %v2065, %v2058
        %v2125 = vpack.c.bf16 %v2123, %v2116
        %v2126 = vld [vmem:[%s4] sm:$0xff]
        %v2127 = vld [vmem:[%s4 + $0x8] sm:$0xff]
        %v2128 = vld [vmem:[%s4 + $0x10] sm:$0xff]
        %v2129 = vld [vmem:[%s4 + $0x18] sm:$0xff]
        %v2130 = vld [vmem:[%s4 + $0x20] sm:$0xff]
        %v2131 = vld [vmem:[%s4 + $0x28] sm:$0xff]
        %v2132 = vld [vmem:[%s4 + $0x30] sm:$0xff]
        %v2133 = vld [vmem:[%s4 + $0x38] sm:$0xff]
        %v2142 = vunpack.c.l.b16 %v2126
        %v2143 = vunpack.c.h.b16 %v2126
        %v2144 = vunpack.c.l.b16 %v2127
        %v2145 = vunpack.c.h.b16 %v2127
        %v2146 = vunpack.c.l.b16 %v2128
        %v2147 = vunpack.c.h.b16 %v2128
        %v2148 = vunpack.c.l.b16 %v2129
        %v2149 = vunpack.c.h.b16 %v2129
        %v2150 = vunpack.c.l.b16 %v2130
        %v2151 = vunpack.c.h.b16 %v2130
        %v2152 = vunpack.c.l.b16 %v2131
        %v2153 = vunpack.c.h.b16 %v2131
        %v2154 = vunpack.c.l.b16 %v2132
        %v2155 = vunpack.c.h.b16 %v2132
        %v2156 = vunpack.c.l.b16 %v2133
        %v2157 = vunpack.c.h.b16 %v2133
        %v2158 = vpack.c.b16 %v2150, %v2142
        %v2159 = vpack.c.b16 %v2151, %v2143
        %v2160 = vpack.c.b16 %v2152, %v2144
        %v2161 = vpack.c.b16 %v2153, %v2145
        %v2162 = vpack.c.b16 %v2154, %v2146
        %v2163 = vpack.c.b16 %v2155, %v2147
        %v2164 = vpack.c.b16 %v2156, %v2148
        %v2165 = vpack.c.b16 %v2157, %v2149
        %v2175 = vsel %vm1535, %v2124, 0
        %v2178 = vsel %vm1535, %v2125, 0
        %2180 = vmatpush.bf16.msra.mxu0 0
        %2181 = vmatpush.bf16.msra.mxu0 0
        %2182 = vmatpush.bf16.msra.mxu0 0
        %2183 = vmatpush.bf16.msra.mxu0 0
        %2184 = vmatpush.bf16.msra.mxu0 0
        %2185 = vmatpush.bf16.msra.mxu0 0
        %2186 = vmatpush.bf16.msra.mxu0 0
        %2187 = vmatpush.bf16.msra.mxu0 %v2158
        %2188 = vmatmul.bf16.gmra.mxu0 %v2175
        %v2189 = vpop.f32.mrf.mxu0
        %v2190 = vadd.f32 0.0, %v2189
        %v2191 = vpop.f32.mrf.mxu0
        %v2192 = vadd.f32 0.0, %v2191
        %2193 = vmatmul.bf16.gmra.mxu0 %v2178
        %v2194 = vpop.f32.mrf.mxu0
        %v2195 = vadd.f32 0.0, %v2194
        %v2196 = vpop.f32.mrf.mxu0
        %v2197 = vadd.f32 0.0, %v2196
        %2198 = vdwg.mxu0
        %2199 = vmatpush.bf16.msra.mxu0 0
        %2200 = vmatpush.bf16.msra.mxu0 0
        %2201 = vmatpush.bf16.msra.mxu0 0
        %2202 = vmatpush.bf16.msra.mxu0 0
        %2203 = vmatpush.bf16.msra.mxu0 0
        %2204 = vmatpush.bf16.msra.mxu0 0
        %2205 = vmatpush.bf16.msra.mxu0 0
        %2206 = vmatpush.bf16.msra.mxu0 %v2159
        %2207 = vmatmul.bf16.gmra.mxu0 %v2175
        %v2208 = vpop.f32.mrf.mxu0
        %v2209 = vadd.f32 0.0, %v2208
        %v2210 = vpop.f32.mrf.mxu0
        %v2211 = vadd.f32 0.0, %v2210
        %2212 = vmatmul.bf16.gmra.mxu0 %v2178
        %v2213 = vpop.f32.mrf.mxu0
        %v2214 = vadd.f32 0.0, %v2213
        %v2215 = vpop.f32.mrf.mxu0
        %v2216 = vadd.f32 0.0, %v2215
        %2217 = vdwg.mxu0
        %2218 = vmatpush.bf16.msra.mxu0 0
        %2219 = vmatpush.bf16.msra.mxu0 0
        %2220 = vmatpush.bf16.msra.mxu0 0
        %2221 = vmatpush.bf16.msra.mxu0 0
        %2222 = vmatpush.bf16.msra.mxu0 0
        %2223 = vmatpush.bf16.msra.mxu0 0
        %2224 = vmatpush.bf16.msra.mxu0 0
        %2225 = vmatpush.bf16.msra.mxu0 %v2160
        %2226 = vmatmul.bf16.gmra.mxu0 %v2175
        %v2227 = vpop.f32.mrf.mxu0
        %v2228 = vadd.f32 0.0, %v2227
        %v2229 = vpop.f32.mrf.mxu0
        %v2230 = vadd.f32 0.0, %v2229
        %2231 = vmatmul.bf16.gmra.mxu0 %v2178
        %v2232 = vpop.f32.mrf.mxu0
        %v2233 = vadd.f32 0.0, %v2232
        %v2234 = vpop.f32.mrf.mxu0
        %v2235 = vadd.f32 0.0, %v2234
        %2236 = vdwg.mxu0
        %2237 = vmatpush.bf16.msra.mxu0 0
        %2238 = vmatpush.bf16.msra.mxu0 0
        %2239 = vmatpush.bf16.msra.mxu0 0
        %2240 = vmatpush.bf16.msra.mxu0 0
        %2241 = vmatpush.bf16.msra.mxu0 0
        %2242 = vmatpush.bf16.msra.mxu0 0
        %2243 = vmatpush.bf16.msra.mxu0 0
        %2244 = vmatpush.bf16.msra.mxu0 %v2161
        %2245 = vmatmul.bf16.gmra.mxu0 %v2175
        %v2246 = vpop.f32.mrf.mxu0
        %v2247 = vadd.f32 0.0, %v2246
        %v2248 = vpop.f32.mrf.mxu0
        %v2249 = vadd.f32 0.0, %v2248
        %2250 = vmatmul.bf16.gmra.mxu0 %v2178
        %v2251 = vpop.f32.mrf.mxu0
        %v2252 = vadd.f32 0.0, %v2251
        %v2253 = vpop.f32.mrf.mxu0
        %v2254 = vadd.f32 0.0, %v2253
        %2255 = vdwg.mxu0
        %2256 = vmatpush.bf16.msra.mxu0 0
        %2257 = vmatpush.bf16.msra.mxu0 0
        %2258 = vmatpush.bf16.msra.mxu0 0
        %2259 = vmatpush.bf16.msra.mxu0 0
        %2260 = vmatpush.bf16.msra.mxu0 0
        %2261 = vmatpush.bf16.msra.mxu0 0
        %2262 = vmatpush.bf16.msra.mxu0 0
        %2263 = vmatpush.bf16.msra.mxu0 %v2162
        %2264 = vmatmul.bf16.gmra.mxu0 %v2175
        %v2265 = vpop.f32.mrf.mxu0
        %v2266 = vadd.f32 0.0, %v2265
        %v2267 = vpop.f32.mrf.mxu0
        %v2268 = vadd.f32 0.0, %v2267
        %2269 = vmatmul.bf16.gmra.mxu0 %v2178
        %v2270 = vpop.f32.mrf.mxu0
        %v2271 = vadd.f32 0.0, %v2270
        %v2272 = vpop.f32.mrf.mxu0
        %v2273 = vadd.f32 0.0, %v2272
        %2274 = vdwg.mxu0
        %2275 = vmatpush.bf16.msra.mxu0 0
        %2276 = vmatpush.bf16.msra.mxu0 0
        %2277 = vmatpush.bf16.msra.mxu0 0
        %2278 = vmatpush.bf16.msra.mxu0 0
        %2279 = vmatpush.bf16.msra.mxu0 0
        %2280 = vmatpush.bf16.msra.mxu0 0
        %2281 = vmatpush.bf16.msra.mxu0 0
        %2282 = vmatpush.bf16.msra.mxu0 %v2163
        %2283 = vmatmul.bf16.gmra.mxu0 %v2175
        %v2284 = vpop.f32.mrf.mxu0
        %v2285 = vadd.f32 0.0, %v2284
        %v2286 = vpop.f32.mrf.mxu0
        %v2287 = vadd.f32 0.0, %v2286
        %2288 = vmatmul.bf16.gmra.mxu0 %v2178
        %v2289 = vpop.f32.mrf.mxu0
        %v2290 = vadd.f32 0.0, %v2289
        %v2291 = vpop.f32.mrf.mxu0
        %v2292 = vadd.f32 0.0, %v2291
        %2293 = vdwg.mxu0
        %2294 = vmatpush.bf16.msra.mxu0 0
        %2295 = vmatpush.bf16.msra.mxu0 0
        %2296 = vmatpush.bf16.msra.mxu0 0
        %2297 = vmatpush.bf16.msra.mxu0 0
        %2298 = vmatpush.bf16.msra.mxu0 0
        %2299 = vmatpush.bf16.msra.mxu0 0
        %2300 = vmatpush.bf16.msra.mxu0 0
        %2301 = vmatpush.bf16.msra.mxu0 %v2164
        %2302 = vmatmul.bf16.gmra.mxu0 %v2175
        %v2303 = vpop.f32.mrf.mxu0
        %v2304 = vadd.f32 0.0, %v2303
        %v2305 = vpop.f32.mrf.mxu0
        %v2306 = vadd.f32 0.0, %v2305
        %2307 = vmatmul.bf16.gmra.mxu0 %v2178
        %v2308 = vpop.f32.mrf.mxu0
        %v2309 = vadd.f32 0.0, %v2308
        %v2310 = vpop.f32.mrf.mxu0
        %v2311 = vadd.f32 0.0, %v2310
        %2312 = vdwg.mxu0
        %2313 = vmatpush.bf16.msra.mxu0 0
        %2314 = vmatpush.bf16.msra.mxu0 0
        %2315 = vmatpush.bf16.msra.mxu0 0
        %2316 = vmatpush.bf16.msra.mxu0 0
        %2317 = vmatpush.bf16.msra.mxu0 0
        %2318 = vmatpush.bf16.msra.mxu0 0
        %2319 = vmatpush.bf16.msra.mxu0 0
        %2320 = vmatpush.bf16.msra.mxu0 %v2165
        %2321 = vmatmul.bf16.gmra.mxu0 %v2175
        %v2322 = vpop.f32.mrf.mxu0
        %v2323 = vadd.f32 0.0, %v2322
        %v2324 = vpop.f32.mrf.mxu0
        %v2325 = vadd.f32 0.0, %v2324
        %2326 = vmatmul.bf16.gmra.mxu0 %v2178
        %v2327 = vpop.f32.mrf.mxu0
        %v2328 = vadd.f32 0.0, %v2327
        %v2329 = vpop.f32.mrf.mxu0
        %v2330 = vadd.f32 0.0, %v2329
        %2331 = vdwg.mxu0
        %v2332 = vpack.c.bf16 %v2209, %v2190
        %v2333 = vpack.c.bf16 %v2247, %v2228
        %v2334 = vpack.c.bf16 %v2285, %v2266
        %v2335 = vpack.c.bf16 %v2323, %v2304
        %v2336 = vpack.c.bf16 %v2211, %v2192
        %v2337 = vpack.c.bf16 %v2249, %v2230
        %v2338 = vpack.c.bf16 %v2287, %v2268
        %v2339 = vpack.c.bf16 %v2325, %v2306
        %v2340 = vpack.c.bf16 %v2214, %v2195
        %v2341 = vpack.c.bf16 %v2252, %v2233
        %v2342 = vpack.c.bf16 %v2290, %v2271
        %v2343 = vpack.c.bf16 %v2328, %v2309
        %v2344 = vpack.c.bf16 %v2216, %v2197
        %v2345 = vpack.c.bf16 %v2254, %v2235
        %v2346 = vpack.c.bf16 %v2292, %v2273
        %v2347 = vpack.c.bf16 %v2330, %v2311
        %v2352 = vunpack.c.l.b16 %v2332
        %v2353 = vunpack.c.l.b16 %v2336
        %v2354 = vunpack.c.l.b16 %v2340
        %v2355 = vunpack.c.l.b16 %v2344
        %v2356 = vpack.c.b16 %v2353, %v2352
        %v2357 = vpack.c.b16 %v2355, %v2354
        %2360 = vrot.lane.b32.xlu0 %v2356, 64
        %v2361 = vpop.permute.xlu0 %2360
        %2362 = vrot.lane.b32.xlu0 %v2357, 64
        %v2363 = vpop.permute.xlu0 %2362
        %v2366 = vunpack.c.h.b16 %v2332
        %v2367 = vunpack.c.h.b16 %v2336
        %v2368 = vunpack.c.h.b16 %v2340
        %v2369 = vunpack.c.h.b16 %v2344
        %v2370 = vpack.c.b16 %v2367, %v2366
        %v2371 = vpack.c.b16 %v2369, %v2368
        %2374 = vrot.lane.b32.xlu0 %v2370, 64
        %v2375 = vpop.permute.xlu0 %2374
        %2376 = vrot.lane.b32.xlu0 %v2371, 64
        %v2377 = vpop.permute.xlu0 %2376
        %v2384 = vunpack.c.l.b16 %v2333
        %v2385 = vunpack.c.l.b16 %v2337
        %v2386 = vunpack.c.l.b16 %v2341
        %v2387 = vunpack.c.l.b16 %v2345
        %v2388 = vpack.c.b16 %v2385, %v2384
        %v2389 = vpack.c.b16 %v2387, %v2386
        %2392 = vrot.lane.b32.xlu0 %v2388, 64
        %v2393 = vpop.permute.xlu0 %2392
        %2394 = vrot.lane.b32.xlu0 %v2389, 64
        %v2395 = vpop.permute.xlu0 %2394
        %v2398 = vunpack.c.h.b16 %v2333
        %v2399 = vunpack.c.h.b16 %v2337
        %v2400 = vunpack.c.h.b16 %v2341
        %v2401 = vunpack.c.h.b16 %v2345
        %v2402 = vpack.c.b16 %v2399, %v2398
        %v2403 = vpack.c.b16 %v2401, %v2400
        %2406 = vrot.lane.b32.xlu0 %v2402, 64
        %v2407 = vpop.permute.xlu0 %2406
        %2408 = vrot.lane.b32.xlu0 %v2403, 64
        %v2409 = vpop.permute.xlu0 %2408
        %v2416 = vunpack.c.l.b16 %v2334
        %v2417 = vunpack.c.l.b16 %v2338
        %v2418 = vunpack.c.l.b16 %v2342
        %v2419 = vunpack.c.l.b16 %v2346
        %v2420 = vpack.c.b16 %v2417, %v2416
        %v2421 = vpack.c.b16 %v2419, %v2418
        %2424 = vrot.lane.b32.xlu0 %v2420, 64
        %v2425 = vpop.permute.xlu0 %2424
        %2426 = vrot.lane.b32.xlu0 %v2421, 64
        %v2427 = vpop.permute.xlu0 %2426
        %v2430 = vunpack.c.h.b16 %v2334
        %v2431 = vunpack.c.h.b16 %v2338
        %v2432 = vunpack.c.h.b16 %v2342
        %v2433 = vunpack.c.h.b16 %v2346
        %v2434 = vpack.c.b16 %v2431, %v2430
        %v2435 = vpack.c.b16 %v2433, %v2432
        %2438 = vrot.lane.b32.xlu0 %v2434, 64
        %v2439 = vpop.permute.xlu0 %2438
        %2440 = vrot.lane.b32.xlu0 %v2435, 64
        %v2441 = vpop.permute.xlu0 %2440
        %v2448 = vunpack.c.l.b16 %v2335
        %v2449 = vunpack.c.l.b16 %v2339
        %v2450 = vunpack.c.l.b16 %v2343
        %v2451 = vunpack.c.l.b16 %v2347
        %v2452 = vpack.c.b16 %v2449, %v2448
        %v2453 = vpack.c.b16 %v2451, %v2450
        %2456 = vrot.lane.b32.xlu0 %v2452, 64
        %v2457 = vpop.permute.xlu0 %2456
        %2458 = vrot.lane.b32.xlu0 %v2453, 64
        %v2459 = vpop.permute.xlu0 %2458
        %v2462 = vunpack.c.h.b16 %v2335
        %v2463 = vunpack.c.h.b16 %v2339
        %v2464 = vunpack.c.h.b16 %v2343
        %v2465 = vunpack.c.h.b16 %v2347
        %v2466 = vpack.c.b16 %v2463, %v2462
        %v2467 = vpack.c.b16 %v2465, %v2464
        %2470 = vrot.lane.b32.xlu0 %v2466, 64
        %v2471 = vpop.permute.xlu0 %2470
        %2472 = vrot.lane.b32.xlu0 %v2467, 64
        %v2473 = vpop.permute.xlu0 %2472
        %v2476 = vld [vmem:[%s8] sm:$0xff]
        %v2477 = vld [vmem:[%s8 + $0x8] sm:$0xff]
        %v2478 = vld [vmem:[%s8 + $0x10] sm:$0xff]
        %v2479 = vld [vmem:[%s8 + $0x18] sm:$0xff]
        %2480 = vset.pattern.permute.xlu0 7
        %2481 = vperm.xlu0 %2480, %v551
        %v2482 = vpop.permute.xlu0 %2481
        %v2488 = vunpack.c.l.b16 %v2476
        %v2489 = vunpack.c.h.b16 %v2476
        %v2490 = vunpack.c.l.b16 %v2477
        %v2491 = vunpack.c.h.b16 %v2477
        %v2492 = vunpack.c.l.b16 %v2478
        %v2493 = vunpack.c.h.b16 %v2478
        %v2494 = vunpack.c.l.b16 %v2479
        %v2495 = vunpack.c.h.b16 %v2479
        %v2496 = vpack.c.b16 %v2492, %v2488
        %v2497 = vpack.c.b16 %v2493, %v2489
        %v2498 = vpack.c.b16 %v2494, %v2490
        %v2499 = vpack.c.b16 %v2495, %v2491
        %2504 = vmatpush.bf16.msra.mxu0 %v2377
        %2505 = vmatpush.bf16.msra.mxu0 %v2375
        %2506 = vmatpush.bf16.msra.mxu0 %v2371
        %2507 = vmatpush.bf16.msra.mxu0 %v2370
        %2508 = vmatpush.bf16.msra.mxu0 %v2363
        %2509 = vmatpush.bf16.msra.mxu0 %v2361
        %2510 = vmatpush.bf16.msra.mxu0 %v2357
        %2511 = vmatpush.bf16.msra.mxu0 %v2356
        %2512 = vmatmul.bf16.gmra.mxu0 %v2496
        %v2513 = vpop.f32.mrf.mxu0
        %v2514 = vadd.f32 %v2482, %v2513
        %v2515 = vpop.f32.mrf.mxu0
        %v2516 = vadd.f32 %v2482, %v2515
        %2517 = vdwg.mxu0
        %2518 = vmatpush.bf16.msra.mxu0 %v2409
        %2519 = vmatpush.bf16.msra.mxu0 %v2407
        %2520 = vmatpush.bf16.msra.mxu0 %v2403
        %2521 = vmatpush.bf16.msra.mxu0 %v2402
        %2522 = vmatpush.bf16.msra.mxu0 %v2395
        %2523 = vmatpush.bf16.msra.mxu0 %v2393
        %2524 = vmatpush.bf16.msra.mxu0 %v2389
        %2525 = vmatpush.bf16.msra.mxu0 %v2388
        %2526 = vmatmul.bf16.gmra.mxu0 %v2497
        %v2527 = vpop.f32.mrf.mxu0
        %v2528 = vadd.f32 %v2514, %v2527
        %v2529 = vpop.f32.mrf.mxu0
        %v2530 = vadd.f32 %v2516, %v2529
        %2531 = vdwg.mxu0
        %2532 = vmatpush.bf16.msra.mxu0 %v2441
        %2533 = vmatpush.bf16.msra.mxu0 %v2439
        %2534 = vmatpush.bf16.msra.mxu0 %v2435
        %2535 = vmatpush.bf16.msra.mxu0 %v2434
        %2536 = vmatpush.bf16.msra.mxu0 %v2427
        %2537 = vmatpush.bf16.msra.mxu0 %v2425
        %2538 = vmatpush.bf16.msra.mxu0 %v2421
        %2539 = vmatpush.bf16.msra.mxu0 %v2420
        %2540 = vmatmul.bf16.gmra.mxu0 %v2498
        %v2541 = vpop.f32.mrf.mxu0
        %v2542 = vadd.f32 %v2528, %v2541
        %v2543 = vpop.f32.mrf.mxu0
        %v2544 = vadd.f32 %v2530, %v2543
        %2545 = vdwg.mxu0
        %2546 = vmatpush.bf16.msra.mxu0 %v2473
        %2547 = vmatpush.bf16.msra.mxu0 %v2471
        %2548 = vmatpush.bf16.msra.mxu0 %v2467
        %2549 = vmatpush.bf16.msra.mxu0 %v2466
        %2550 = vmatpush.bf16.msra.mxu0 %v2459
        %2551 = vmatpush.bf16.msra.mxu0 %v2457
        %2552 = vmatpush.bf16.msra.mxu0 %v2453
        %2553 = vmatpush.bf16.msra.mxu0 %v2452
        %2554 = vmatmul.bf16.gmra.mxu0 %v2499
        %v2555 = vpop.f32.mrf.mxu0
        %v2556 = vadd.f32 %v2542, %v2555
        %v2557 = vpop.f32.mrf.mxu0
        %v2558 = vadd.f32 %v2544, %v2557
        %2559 = vdwg.mxu0
        %v2560 = vsel %vm1335, %v2556, 0.0
        %2561 = vadd.xlane.f32.xlu0 %v2560
        %v2562 = vpop.xlane.xlu0 %2561
        %v2563 = vsel %vm1335, %v2558, 0.0
        %2564 = vadd.xlane.f32.xlu0 %v2563
        %v2565 = vpop.xlane.xlu0 %2564
        %v2566 = vmul.f32 %v2556, %v2556
        %v2567 = vmul.f32 %v2558, %v2558
        %v2568 = vsel %vm1335, %v2566, 0.0
        %2569 = vadd.xlane.f32.xlu0 %v2568
        %v2570 = vpop.xlane.xlu0 %2569
        %v2571 = vsel %vm1335, %v2567, 0.0
        %2572 = vadd.xlane.f32.xlu0 %v2571
        %v2573 = vpop.xlane.xlu0 %2572
        %v2574 = vadd.f32 %v2562, %v2565
        %v2575 = vadd.f32 %v2570, %v2573
        %v2576 = vmul.f32 %v2574, 0.0078125
        %v2577 = vmul.f32 %v2575, 0.0078125
        %v2578 = vmul.f32 %v2576, %v2576
        %v2579 = vsub.f32 %v2577, %v2578
        %v2580 = vmax.f32 %v2579, 0.0
        %v2581 = vadd.f32 %v2580, 1e-05
        %v2582 = vrsqrt.pop %v2581
        %v2583 = vmul.f32 %v2582, %v2581
        %v2584 = vmul.f32 %v2583, %v2582
        %v2585 = vmul.f32 0.5, %v2584
        %v2586 = vsub.f32 1.5, %v2585
        %v2587 = vmul.f32 %v2582, %v2586
        %vm2588 = vweird.f32 %v2581
        %vm2589 = vweird.f32 %v2582
        %vm2590 = vmor %vm2588, %vm2589
        %v2591 = vsel %vm2590, %v2582, %v2587
        %v2592 = vmul.f32 %v551, %v2591
        %v2593 = vmul.f32 %v2576, %v2592
        %2595 = vrot.lane.b32.xlu0 %v2593, 1
        %v2596 = vpop.permute.xlu0 %2595
        %v2598 = vsub.f32 %v551, %v2596
        %2600 = vset.pattern.permute.xlu0 8
        %2601 = vperm.xlu0 %2600, %v2592
        %v2602 = vpop.permute.xlu0 %2601
        %v2604 = vmul.f32 %v2556, %v2602
        %v2605 = vmul.f32 %v2558, %v2602
        %2607 = vset.pattern.permute.xlu0 9
        %2608 = vperm.xlu0 %2607, %v2598
        %v2609 = vpop.permute.xlu0 %2608
        %v2611 = vadd.f32 %v2604, %v2609
        %v2612 = vadd.f32 %v2605, %v2609
        %v2613 = vmax.f32 %v2611, 0.0
        %v2614 = vmax.f32 %v2612, 0.0
        %v2615 = vpack.c.bf16 %v2614, %v2613
        %v2616 = vld [vmem:[%s5] sm:$0xff]
        %v2617 = vld [vmem:[%s5 + $0x8] sm:$0xff]
        %v2618 = vld [vmem:[%s5 + $0x10] sm:$0xff]
        %v2619 = vld [vmem:[%s5 + $0x18] sm:$0xff]
        %v2620 = vld [vmem:[%s5 + $0x20] sm:$0xff]
        %v2621 = vld [vmem:[%s5 + $0x28] sm:$0xff]
        %v2622 = vld [vmem:[%s5 + $0x30] sm:$0xff]
        %v2623 = vld [vmem:[%s5 + $0x38] sm:$0xff]
        %v2624 = vld [vmem:[%s5 + $0x40] sm:$0xff]
        %v2625 = vld [vmem:[%s5 + $0x48] sm:$0xff]
        %v2626 = vld [vmem:[%s5 + $0x50] sm:$0xff]
        %v2627 = vld [vmem:[%s5 + $0x58] sm:$0xff]
        %v2628 = vld [vmem:[%s5 + $0x60] sm:$0xff]
        %v2629 = vld [vmem:[%s5 + $0x68] sm:$0xff]
        %v2630 = vld [vmem:[%s5 + $0x70] sm:$0xff]
        %v2631 = vld [vmem:[%s5 + $0x78] sm:$0xff]
        %v2632 = vld [vmem:[%s5 + $0x80] sm:$0xff]
        %v2633 = vld [vmem:[%s5 + $0x88] sm:$0xff]
        %v2634 = vld [vmem:[%s5 + $0x90] sm:$0xff]
        %v2635 = vld [vmem:[%s5 + $0x98] sm:$0xff]
        %v2636 = vld [vmem:[%s5 + $0xa0] sm:$0xff]
        %v2637 = vld [vmem:[%s5 + $0xa8] sm:$0xff]
        %v2638 = vld [vmem:[%s5 + $0xb0] sm:$0xff]
        %v2639 = vld [vmem:[%s5 + $0xb8] sm:$0xff]
        %v2640 = vld [vmem:[%s5 + $0xc0] sm:$0xff]
        %v2641 = vld [vmem:[%s5 + $0xc8] sm:$0xff]
        %v2642 = vld [vmem:[%s5 + $0xd0] sm:$0xff]
        %v2643 = vld [vmem:[%s5 + $0xd8] sm:$0xff]
        %v2644 = vld [vmem:[%s5 + $0xe0] sm:$0xff]
        %v2645 = vld [vmem:[%s5 + $0xe8] sm:$0xff]
        %v2646 = vld [vmem:[%s5 + $0xf0] sm:$0xff]
        %v2647 = vld [vmem:[%s5 + $0xf8] sm:$0xff]
        %v2648 = vld [vmem:[%s5 + $0x100] sm:$0xff]
        %v2649 = vld [vmem:[%s5 + $0x108] sm:$0xff]
        %v2650 = vld [vmem:[%s5 + $0x110] sm:$0xff]
        %v2651 = vld [vmem:[%s5 + $0x118] sm:$0xff]
        %v2652 = vld [vmem:[%s5 + $0x120] sm:$0xff]
        %v2653 = vld [vmem:[%s5 + $0x128] sm:$0xff]
        %v2654 = vld [vmem:[%s5 + $0x130] sm:$0xff]
        %v2655 = vld [vmem:[%s5 + $0x138] sm:$0xff]
        %v2656 = vld [vmem:[%s5 + $0x140] sm:$0xff]
        %v2657 = vld [vmem:[%s5 + $0x148] sm:$0xff]
        %v2658 = vld [vmem:[%s5 + $0x150] sm:$0xff]
        %v2659 = vld [vmem:[%s5 + $0x158] sm:$0xff]
        %v2660 = vld [vmem:[%s5 + $0x160] sm:$0xff]
        %v2661 = vld [vmem:[%s5 + $0x168] sm:$0xff]
        %v2662 = vld [vmem:[%s5 + $0x170] sm:$0xff]
        %v2663 = vld [vmem:[%s5 + $0x178] sm:$0xff]
        %v2664 = vld [vmem:[%s5 + $0x180] sm:$0xff]
        %v2665 = vld [vmem:[%s5 + $0x188] sm:$0xff]
        %v2666 = vld [vmem:[%s5 + $0x190] sm:$0xff]
        %v2667 = vld [vmem:[%s5 + $0x198] sm:$0xff]
        %v2668 = vld [vmem:[%s5 + $0x1a0] sm:$0xff]
        %v2669 = vld [vmem:[%s5 + $0x1a8] sm:$0xff]
        %v2670 = vld [vmem:[%s5 + $0x1b0] sm:$0xff]
        %v2671 = vld [vmem:[%s5 + $0x1b8] sm:$0xff]
        %v2672 = vld [vmem:[%s5 + $0x1c0] sm:$0xff]
        %v2673 = vld [vmem:[%s5 + $0x1c8] sm:$0xff]
        %v2674 = vld [vmem:[%s5 + $0x1d0] sm:$0xff]
        %v2675 = vld [vmem:[%s5 + $0x1d8] sm:$0xff]
        %v2676 = vld [vmem:[%s5 + $0x1e0] sm:$0xff]
        %v2677 = vld [vmem:[%s5 + $0x1e8] sm:$0xff]
        %v2678 = vld [vmem:[%s5 + $0x1f0] sm:$0xff]
        %v2679 = vld [vmem:[%s5 + $0x1f8] sm:$0xff]
        %v2680 = vld [vmem:[%s5 + $0x200] sm:$0xff]
        %v2681 = vld [vmem:[%s5 + $0x208] sm:$0xff]
        %v2682 = vld [vmem:[%s5 + $0x210] sm:$0xff]
        %v2683 = vld [vmem:[%s5 + $0x218] sm:$0xff]
        %v2684 = vld [vmem:[%s5 + $0x220] sm:$0xff]
        %v2685 = vld [vmem:[%s5 + $0x228] sm:$0xff]
        %v2686 = vld [vmem:[%s5 + $0x230] sm:$0xff]
        %v2687 = vld [vmem:[%s5 + $0x238] sm:$0xff]
        %v2688 = vld [vmem:[%s5 + $0x240] sm:$0xff]
        %v2689 = vld [vmem:[%s5 + $0x248] sm:$0xff]
        %v2690 = vld [vmem:[%s5 + $0x250] sm:$0xff]
        %v2691 = vld [vmem:[%s5 + $0x258] sm:$0xff]
        %v2692 = vld [vmem:[%s5 + $0x260] sm:$0xff]
        %v2693 = vld [vmem:[%s5 + $0x268] sm:$0xff]
        %v2694 = vld [vmem:[%s5 + $0x270] sm:$0xff]
        %v2695 = vld [vmem:[%s5 + $0x278] sm:$0xff]
        %v2696 = vld [vmem:[%s5 + $0x280] sm:$0xff]
        %v2697 = vld [vmem:[%s5 + $0x288] sm:$0xff]
        %v2698 = vld [vmem:[%s5 + $0x290] sm:$0xff]
        %v2699 = vld [vmem:[%s5 + $0x298] sm:$0xff]
        %v2700 = vld [vmem:[%s5 + $0x2a0] sm:$0xff]
        %v2701 = vld [vmem:[%s5 + $0x2a8] sm:$0xff]
        %v2702 = vld [vmem:[%s5 + $0x2b0] sm:$0xff]
        %v2703 = vld [vmem:[%s5 + $0x2b8] sm:$0xff]
        %v2704 = vld [vmem:[%s5 + $0x2c0] sm:$0xff]
        %v2705 = vld [vmem:[%s5 + $0x2c8] sm:$0xff]
        %v2706 = vld [vmem:[%s5 + $0x2d0] sm:$0xff]
        %v2707 = vld [vmem:[%s5 + $0x2d8] sm:$0xff]
        %v2708 = vld [vmem:[%s5 + $0x2e0] sm:$0xff]
        %v2709 = vld [vmem:[%s5 + $0x2e8] sm:$0xff]
        %v2710 = vld [vmem:[%s5 + $0x2f0] sm:$0xff]
        %v2711 = vld [vmem:[%s5 + $0x2f8] sm:$0xff]
        %v2712 = vld [vmem:[%s5 + $0x300] sm:$0xff]
        %v2713 = vld [vmem:[%s5 + $0x308] sm:$0xff]
        %v2714 = vld [vmem:[%s5 + $0x310] sm:$0xff]
        %v2715 = vld [vmem:[%s5 + $0x318] sm:$0xff]
        %v2716 = vld [vmem:[%s5 + $0x320] sm:$0xff]
        %v2717 = vld [vmem:[%s5 + $0x328] sm:$0xff]
        %v2718 = vld [vmem:[%s5 + $0x330] sm:$0xff]
        %v2719 = vld [vmem:[%s5 + $0x338] sm:$0xff]
        %v2720 = vld [vmem:[%s5 + $0x340] sm:$0xff]
        %v2721 = vld [vmem:[%s5 + $0x348] sm:$0xff]
        %v2722 = vld [vmem:[%s5 + $0x350] sm:$0xff]
        %v2723 = vld [vmem:[%s5 + $0x358] sm:$0xff]
        %v2724 = vld [vmem:[%s5 + $0x360] sm:$0xff]
        %v2725 = vld [vmem:[%s5 + $0x368] sm:$0xff]
        %v2726 = vld [vmem:[%s5 + $0x370] sm:$0xff]
        %v2727 = vld [vmem:[%s5 + $0x378] sm:$0xff]
        %v2728 = vld [vmem:[%s5 + $0x380] sm:$0xff]
        %v2729 = vld [vmem:[%s5 + $0x388] sm:$0xff]
        %v2730 = vld [vmem:[%s5 + $0x390] sm:$0xff]
        %v2731 = vld [vmem:[%s5 + $0x398] sm:$0xff]
        %v2732 = vld [vmem:[%s5 + $0x3a0] sm:$0xff]
        %v2733 = vld [vmem:[%s5 + $0x3a8] sm:$0xff]
        %v2734 = vld [vmem:[%s5 + $0x3b0] sm:$0xff]
        %v2735 = vld [vmem:[%s5 + $0x3b8] sm:$0xff]
        %v2736 = vld [vmem:[%s5 + $0x3c0] sm:$0xff]
        %v2737 = vld [vmem:[%s5 + $0x3c8] sm:$0xff]
        %v2738 = vld [vmem:[%s5 + $0x3d0] sm:$0xff]
        %v2739 = vld [vmem:[%s5 + $0x3d8] sm:$0xff]
        %v2740 = vld [vmem:[%s5 + $0x3e0] sm:$0xff]
        %v2741 = vld [vmem:[%s5 + $0x3e8] sm:$0xff]
        %v2742 = vld [vmem:[%s5 + $0x3f0] sm:$0xff]
        %v2743 = vld [vmem:[%s5 + $0x3f8] sm:$0xff]
        %v2872 = vunpack.c.l.b16 %v2616
        %v2873 = vunpack.c.h.b16 %v2616
        %v2874 = vunpack.c.l.b16 %v2617
        %v2875 = vunpack.c.h.b16 %v2617
        %v2876 = vunpack.c.l.b16 %v2618
        %v2877 = vunpack.c.h.b16 %v2618
        %v2878 = vunpack.c.l.b16 %v2619
        %v2879 = vunpack.c.h.b16 %v2619
        %v2880 = vunpack.c.l.b16 %v2620
        %v2881 = vunpack.c.h.b16 %v2620
        %v2882 = vunpack.c.l.b16 %v2621
        %v2883 = vunpack.c.h.b16 %v2621
        %v2884 = vunpack.c.l.b16 %v2622
        %v2885 = vunpack.c.h.b16 %v2622
        %v2886 = vunpack.c.l.b16 %v2623
        %v2887 = vunpack.c.h.b16 %v2623
        %v2888 = vunpack.c.l.b16 %v2624
        %v2889 = vunpack.c.h.b16 %v2624
        %v2890 = vunpack.c.l.b16 %v2625
        %v2891 = vunpack.c.h.b16 %v2625
        %v2892 = vunpack.c.l.b16 %v2626
        %v2893 = vunpack.c.h.b16 %v2626
        %v2894 = vunpack.c.l.b16 %v2627
        %v2895 = vunpack.c.h.b16 %v2627
        %v2896 = vunpack.c.l.b16 %v2628
        %v2897 = vunpack.c.h.b16 %v2628
        %v2898 = vunpack.c.l.b16 %v2629
        %v2899 = vunpack.c.h.b16 %v2629
        %v2900 = vunpack.c.l.b16 %v2630
        %v2901 = vunpack.c.h.b16 %v2630
        %v2902 = vunpack.c.l.b16 %v2631
        %v2903 = vunpack.c.h.b16 %v2631
        %v2904 = vunpack.c.l.b16 %v2632
        %v2905 = vunpack.c.h.b16 %v2632
        %v2906 = vunpack.c.l.b16 %v2633
        %v2907 = vunpack.c.h.b16 %v2633
        %v2908 = vunpack.c.l.b16 %v2634
        %v2909 = vunpack.c.h.b16 %v2634
        %v2910 = vunpack.c.l.b16 %v2635
        %v2911 = vunpack.c.h.b16 %v2635
        %v2912 = vunpack.c.l.b16 %v2636
        %v2913 = vunpack.c.h.b16 %v2636
        %v2914 = vunpack.c.l.b16 %v2637
        %v2915 = vunpack.c.h.b16 %v2637
        %v2916 = vunpack.c.l.b16 %v2638
        %v2917 = vunpack.c.h.b16 %v2638
        %v2918 = vunpack.c.l.b16 %v2639
        %v2919 = vunpack.c.h.b16 %v2639
        %v2920 = vunpack.c.l.b16 %v2640
        %v2921 = vunpack.c.h.b16 %v2640
        %v2922 = vunpack.c.l.b16 %v2641
        %v2923 = vunpack.c.h.b16 %v2641
        %v2924 = vunpack.c.l.b16 %v2642
        %v2925 = vunpack.c.h.b16 %v2642
        %v2926 = vunpack.c.l.b16 %v2643
        %v2927 = vunpack.c.h.b16 %v2643
        %v2928 = vunpack.c.l.b16 %v2644
        %v2929 = vunpack.c.h.b16 %v2644
        %v2930 = vunpack.c.l.b16 %v2645
        %v2931 = vunpack.c.h.b16 %v2645
        %v2932 = vunpack.c.l.b16 %v2646
        %v2933 = vunpack.c.h.b16 %v2646
        %v2934 = vunpack.c.l.b16 %v2647
        %v2935 = vunpack.c.h.b16 %v2647
        %v2936 = vunpack.c.l.b16 %v2648
        %v2937 = vunpack.c.h.b16 %v2648
        %v2938 = vunpack.c.l.b16 %v2649
        %v2939 = vunpack.c.h.b16 %v2649
        %v2940 = vunpack.c.l.b16 %v2650
        %v2941 = vunpack.c.h.b16 %v2650
        %v2942 = vunpack.c.l.b16 %v2651
        %v2943 = vunpack.c.h.b16 %v2651
        %v2944 = vunpack.c.l.b16 %v2652
        %v2945 = vunpack.c.h.b16 %v2652
        %v2946 = vunpack.c.l.b16 %v2653
        %v2947 = vunpack.c.h.b16 %v2653
        %v2948 = vunpack.c.l.b16 %v2654
        %v2949 = vunpack.c.h.b16 %v2654
        %v2950 = vunpack.c.l.b16 %v2655
        %v2951 = vunpack.c.h.b16 %v2655
        %v2952 = vunpack.c.l.b16 %v2656
        %v2953 = vunpack.c.h.b16 %v2656
        %v2954 = vunpack.c.l.b16 %v2657
        %v2955 = vunpack.c.h.b16 %v2657
        %v2956 = vunpack.c.l.b16 %v2658
        %v2957 = vunpack.c.h.b16 %v2658
        %v2958 = vunpack.c.l.b16 %v2659
        %v2959 = vunpack.c.h.b16 %v2659
        %v2960 = vunpack.c.l.b16 %v2660
        %v2961 = vunpack.c.h.b16 %v2660
        %v2962 = vunpack.c.l.b16 %v2661
        %v2963 = vunpack.c.h.b16 %v2661
        %v2964 = vunpack.c.l.b16 %v2662
        %v2965 = vunpack.c.h.b16 %v2662
        %v2966 = vunpack.c.l.b16 %v2663
        %v2967 = vunpack.c.h.b16 %v2663
        %v2968 = vunpack.c.l.b16 %v2664
        %v2969 = vunpack.c.h.b16 %v2664
        %v2970 = vunpack.c.l.b16 %v2665
        %v2971 = vunpack.c.h.b16 %v2665
        %v2972 = vunpack.c.l.b16 %v2666
        %v2973 = vunpack.c.h.b16 %v2666
        %v2974 = vunpack.c.l.b16 %v2667
        %v2975 = vunpack.c.h.b16 %v2667
        %v2976 = vunpack.c.l.b16 %v2668
        %v2977 = vunpack.c.h.b16 %v2668
        %v2978 = vunpack.c.l.b16 %v2669
        %v2979 = vunpack.c.h.b16 %v2669
        %v2980 = vunpack.c.l.b16 %v2670
        %v2981 = vunpack.c.h.b16 %v2670
        %v2982 = vunpack.c.l.b16 %v2671
        %v2983 = vunpack.c.h.b16 %v2671
        %v2984 = vunpack.c.l.b16 %v2672
        %v2985 = vunpack.c.h.b16 %v2672
        %v2986 = vunpack.c.l.b16 %v2673
        %v2987 = vunpack.c.h.b16 %v2673
        %v2988 = vunpack.c.l.b16 %v2674
        %v2989 = vunpack.c.h.b16 %v2674
        %v2990 = vunpack.c.l.b16 %v2675
        %v2991 = vunpack.c.h.b16 %v2675
        %v2992 = vunpack.c.l.b16 %v2676
        %v2993 = vunpack.c.h.b16 %v2676
        %v2994 = vunpack.c.l.b16 %v2677
        %v2995 = vunpack.c.h.b16 %v2677
        %v2996 = vunpack.c.l.b16 %v2678
        %v2997 = vunpack.c.h.b16 %v2678
        %v2998 = vunpack.c.l.b16 %v2679
        %v2999 = vunpack.c.h.b16 %v2679
        %v3000 = vunpack.c.l.b16 %v2680
        %v3001 = vunpack.c.h.b16 %v2680
        %v3002 = vunpack.c.l.b16 %v2681
        %v3003 = vunpack.c.h.b16 %v2681
        %v3004 = vunpack.c.l.b16 %v2682
        %v3005 = vunpack.c.h.b16 %v2682
        %v3006 = vunpack.c.l.b16 %v2683
        %v3007 = vunpack.c.h.b16 %v2683
        %v3008 = vunpack.c.l.b16 %v2684
        %v3009 = vunpack.c.h.b16 %v2684
        %v3010 = vunpack.c.l.b16 %v2685
        %v3011 = vunpack.c.h.b16 %v2685
        %v3012 = vunpack.c.l.b16 %v2686
        %v3013 = vunpack.c.h.b16 %v2686
        %v3014 = vunpack.c.l.b16 %v2687
        %v3015 = vunpack.c.h.b16 %v2687
        %v3016 = vunpack.c.l.b16 %v2688
        %v3017 = vunpack.c.h.b16 %v2688
        %v3018 = vunpack.c.l.b16 %v2689
        %v3019 = vunpack.c.h.b16 %v2689
        %v3020 = vunpack.c.l.b16 %v2690
        %v3021 = vunpack.c.h.b16 %v2690
        %v3022 = vunpack.c.l.b16 %v2691
        %v3023 = vunpack.c.h.b16 %v2691
        %v3024 = vunpack.c.l.b16 %v2692
        %v3025 = vunpack.c.h.b16 %v2692
        %v3026 = vunpack.c.l.b16 %v2693
        %v3027 = vunpack.c.h.b16 %v2693
        %v3028 = vunpack.c.l.b16 %v2694
        %v3029 = vunpack.c.h.b16 %v2694
        %v3030 = vunpack.c.l.b16 %v2695
        %v3031 = vunpack.c.h.b16 %v2695
        %v3032 = vunpack.c.l.b16 %v2696
        %v3033 = vunpack.c.h.b16 %v2696
        %v3034 = vunpack.c.l.b16 %v2697
        %v3035 = vunpack.c.h.b16 %v2697
        %v3036 = vunpack.c.l.b16 %v2698
        %v3037 = vunpack.c.h.b16 %v2698
        %v3038 = vunpack.c.l.b16 %v2699
        %v3039 = vunpack.c.h.b16 %v2699
        %v3040 = vunpack.c.l.b16 %v2700
        %v3041 = vunpack.c.h.b16 %v2700
        %v3042 = vunpack.c.l.b16 %v2701
        %v3043 = vunpack.c.h.b16 %v2701
        %v3044 = vunpack.c.l.b16 %v2702
        %v3045 = vunpack.c.h.b16 %v2702
        %v3046 = vunpack.c.l.b16 %v2703
        %v3047 = vunpack.c.h.b16 %v2703
        %v3048 = vunpack.c.l.b16 %v2704
        %v3049 = vunpack.c.h.b16 %v2704
        %v3050 = vunpack.c.l.b16 %v2705
        %v3051 = vunpack.c.h.b16 %v2705
        %v3052 = vunpack.c.l.b16 %v2706
        %v3053 = vunpack.c.h.b16 %v2706
        %v3054 = vunpack.c.l.b16 %v2707
        %v3055 = vunpack.c.h.b16 %v2707
        %v3056 = vunpack.c.l.b16 %v2708
        %v3057 = vunpack.c.h.b16 %v2708
        %v3058 = vunpack.c.l.b16 %v2709
        %v3059 = vunpack.c.h.b16 %v2709
        %v3060 = vunpack.c.l.b16 %v2710
        %v3061 = vunpack.c.h.b16 %v2710
        %v3062 = vunpack.c.l.b16 %v2711
        %v3063 = vunpack.c.h.b16 %v2711
        %v3064 = vunpack.c.l.b16 %v2712
        %v3065 = vunpack.c.h.b16 %v2712
        %v3066 = vunpack.c.l.b16 %v2713
        %v3067 = vunpack.c.h.b16 %v2713
        %v3068 = vunpack.c.l.b16 %v2714
        %v3069 = vunpack.c.h.b16 %v2714
        %v3070 = vunpack.c.l.b16 %v2715
        %v3071 = vunpack.c.h.b16 %v2715
        %v3072 = vunpack.c.l.b16 %v2716
        %v3073 = vunpack.c.h.b16 %v2716
        %v3074 = vunpack.c.l.b16 %v2717
        %v3075 = vunpack.c.h.b16 %v2717
        %v3076 = vunpack.c.l.b16 %v2718
        %v3077 = vunpack.c.h.b16 %v2718
        %v3078 = vunpack.c.l.b16 %v2719
        %v3079 = vunpack.c.h.b16 %v2719
        %v3080 = vunpack.c.l.b16 %v2720
        %v3081 = vunpack.c.h.b16 %v2720
        %v3082 = vunpack.c.l.b16 %v2721
        %v3083 = vunpack.c.h.b16 %v2721
        %v3084 = vunpack.c.l.b16 %v2722
        %v3085 = vunpack.c.h.b16 %v2722
        %v3086 = vunpack.c.l.b16 %v2723
        %v3087 = vunpack.c.h.b16 %v2723
        %v3088 = vunpack.c.l.b16 %v2724
        %v3089 = vunpack.c.h.b16 %v2724
        %v3090 = vunpack.c.l.b16 %v2725
        %v3091 = vunpack.c.h.b16 %v2725
        %v3092 = vunpack.c.l.b16 %v2726
        %v3093 = vunpack.c.h.b16 %v2726
        %v3094 = vunpack.c.l.b16 %v2727
        %v3095 = vunpack.c.h.b16 %v2727
        %v3096 = vunpack.c.l.b16 %v2728
        %v3097 = vunpack.c.h.b16 %v2728
        %v3098 = vunpack.c.l.b16 %v2729
        %v3099 = vunpack.c.h.b16 %v2729
        %v3100 = vunpack.c.l.b16 %v2730
        %v3101 = vunpack.c.h.b16 %v2730
        %v3102 = vunpack.c.l.b16 %v2731
        %v3103 = vunpack.c.h.b16 %v2731
        %v3104 = vunpack.c.l.b16 %v2732
        %v3105 = vunpack.c.h.b16 %v2732
        %v3106 = vunpack.c.l.b16 %v2733
        %v3107 = vunpack.c.h.b16 %v2733
        %v3108 = vunpack.c.l.b16 %v2734
        %v3109 = vunpack.c.h.b16 %v2734
        %v3110 = vunpack.c.l.b16 %v2735
        %v3111 = vunpack.c.h.b16 %v2735
        %v3112 = vunpack.c.l.b16 %v2736
        %v3113 = vunpack.c.h.b16 %v2736
        %v3114 = vunpack.c.l.b16 %v2737
        %v3115 = vunpack.c.h.b16 %v2737
        %v3116 = vunpack.c.l.b16 %v2738
        %v3117 = vunpack.c.h.b16 %v2738
        %v3118 = vunpack.c.l.b16 %v2739
        %v3119 = vunpack.c.h.b16 %v2739
        %v3120 = vunpack.c.l.b16 %v2740
        %v3121 = vunpack.c.h.b16 %v2740
        %v3122 = vunpack.c.l.b16 %v2741
        %v3123 = vunpack.c.h.b16 %v2741
        %v3124 = vunpack.c.l.b16 %v2742
        %v3125 = vunpack.c.h.b16 %v2742
        %v3126 = vunpack.c.l.b16 %v2743
        %v3127 = vunpack.c.h.b16 %v2743
        %v3128 = vpack.c.b16 %v2904, %v2872
        %v3129 = vpack.c.b16 %v2905, %v2873
        %v3130 = vpack.c.b16 %v2906, %v2874
        %v3131 = vpack.c.b16 %v2907, %v2875
        %v3132 = vpack.c.b16 %v2908, %v2876
        %v3133 = vpack.c.b16 %v2909, %v2877
        %v3134 = vpack.c.b16 %v2910, %v2878
        %v3135 = vpack.c.b16 %v2911, %v2879
        %v3136 = vpack.c.b16 %v2912, %v2880
        %v3137 = vpack.c.b16 %v2913, %v2881
        %v3138 = vpack.c.b16 %v2914, %v2882
        %v3139 = vpack.c.b16 %v2915, %v2883
        %v3140 = vpack.c.b16 %v2916, %v2884
        %v3141 = vpack.c.b16 %v2917, %v2885
        %v3142 = vpack.c.b16 %v2918, %v2886
        %v3143 = vpack.c.b16 %v2919, %v2887
        %v3144 = vpack.c.b16 %v2920, %v2888
        %v3145 = vpack.c.b16 %v2921, %v2889
        %v3146 = vpack.c.b16 %v2922, %v2890
        %v3147 = vpack.c.b16 %v2923, %v2891
        %v3148 = vpack.c.b16 %v2924, %v2892
        %v3149 = vpack.c.b16 %v2925, %v2893
        %v3150 = vpack.c.b16 %v2926, %v2894
        %v3151 = vpack.c.b16 %v2927, %v2895
        %v3152 = vpack.c.b16 %v2928, %v2896
        %v3153 = vpack.c.b16 %v2929, %v2897
        %v3154 = vpack.c.b16 %v2930, %v2898
        %v3155 = vpack.c.b16 %v2931, %v2899
        %v3156 = vpack.c.b16 %v2932, %v2900
        %v3157 = vpack.c.b16 %v2933, %v2901
        %v3158 = vpack.c.b16 %v2934, %v2902
        %v3159 = vpack.c.b16 %v2935, %v2903
        %v3160 = vpack.c.b16 %v2968, %v2936
        %v3161 = vpack.c.b16 %v2969, %v2937
        %v3162 = vpack.c.b16 %v2970, %v2938
        %v3163 = vpack.c.b16 %v2971, %v2939
        %v3164 = vpack.c.b16 %v2972, %v2940
        %v3165 = vpack.c.b16 %v2973, %v2941
        %v3166 = vpack.c.b16 %v2974, %v2942
        %v3167 = vpack.c.b16 %v2975, %v2943
        %v3168 = vpack.c.b16 %v2976, %v2944
        %v3169 = vpack.c.b16 %v2977, %v2945
        %v3170 = vpack.c.b16 %v2978, %v2946
        %v3171 = vpack.c.b16 %v2979, %v2947
        %v3172 = vpack.c.b16 %v2980, %v2948
        %v3173 = vpack.c.b16 %v2981, %v2949
        %v3174 = vpack.c.b16 %v2982, %v2950
        %v3175 = vpack.c.b16 %v2983, %v2951
        %v3176 = vpack.c.b16 %v2984, %v2952
        %v3177 = vpack.c.b16 %v2985, %v2953
        %v3178 = vpack.c.b16 %v2986, %v2954
        %v3179 = vpack.c.b16 %v2987, %v2955
        %v3180 = vpack.c.b16 %v2988, %v2956
        %v3181 = vpack.c.b16 %v2989, %v2957
        %v3182 = vpack.c.b16 %v2990, %v2958
        %v3183 = vpack.c.b16 %v2991, %v2959
        %v3184 = vpack.c.b16 %v2992, %v2960
        %v3185 = vpack.c.b16 %v2993, %v2961
        %v3186 = vpack.c.b16 %v2994, %v2962
        %v3187 = vpack.c.b16 %v2995, %v2963
        %v3188 = vpack.c.b16 %v2996, %v2964
        %v3189 = vpack.c.b16 %v2997, %v2965
        %v3190 = vpack.c.b16 %v2998, %v2966
        %v3191 = vpack.c.b16 %v2999, %v2967
        %v3192 = vpack.c.b16 %v3032, %v3000
        %v3193 = vpack.c.b16 %v3033, %v3001
        %v3194 = vpack.c.b16 %v3034, %v3002
        %v3195 = vpack.c.b16 %v3035, %v3003
        %v3196 = vpack.c.b16 %v3036, %v3004
        %v3197 = vpack.c.b16 %v3037, %v3005
        %v3198 = vpack.c.b16 %v3038, %v3006
        %v3199 = vpack.c.b16 %v3039, %v3007
        %v3200 = vpack.c.b16 %v3040, %v3008
        %v3201 = vpack.c.b16 %v3041, %v3009
        %v3202 = vpack.c.b16 %v3042, %v3010
        %v3203 = vpack.c.b16 %v3043, %v3011
        %v3204 = vpack.c.b16 %v3044, %v3012
        %v3205 = vpack.c.b16 %v3045, %v3013
        %v3206 = vpack.c.b16 %v3046, %v3014
        %v3207 = vpack.c.b16 %v3047, %v3015
        %v3208 = vpack.c.b16 %v3048, %v3016
        %v3209 = vpack.c.b16 %v3049, %v3017
        %v3210 = vpack.c.b16 %v3050, %v3018
        %v3211 = vpack.c.b16 %v3051, %v3019
        %v3212 = vpack.c.b16 %v3052, %v3020
        %v3213 = vpack.c.b16 %v3053, %v3021
        %v3214 = vpack.c.b16 %v3054, %v3022
        %v3215 = vpack.c.b16 %v3055, %v3023
        %v3216 = vpack.c.b16 %v3056, %v3024
        %v3217 = vpack.c.b16 %v3057, %v3025
        %v3218 = vpack.c.b16 %v3058, %v3026
        %v3219 = vpack.c.b16 %v3059, %v3027
        %v3220 = vpack.c.b16 %v3060, %v3028
        %v3221 = vpack.c.b16 %v3061, %v3029
        %v3222 = vpack.c.b16 %v3062, %v3030
        %v3223 = vpack.c.b16 %v3063, %v3031
        %v3224 = vpack.c.b16 %v3096, %v3064
        %v3225 = vpack.c.b16 %v3097, %v3065
        %v3226 = vpack.c.b16 %v3098, %v3066
        %v3227 = vpack.c.b16 %v3099, %v3067
        %v3228 = vpack.c.b16 %v3100, %v3068
        %v3229 = vpack.c.b16 %v3101, %v3069
        %v3230 = vpack.c.b16 %v3102, %v3070
        %v3231 = vpack.c.b16 %v3103, %v3071
        %v3232 = vpack.c.b16 %v3104, %v3072
        %v3233 = vpack.c.b16 %v3105, %v3073
        %v3234 = vpack.c.b16 %v3106, %v3074
        %v3235 = vpack.c.b16 %v3107, %v3075
        %v3236 = vpack.c.b16 %v3108, %v3076
        %v3237 = vpack.c.b16 %v3109, %v3077
        %v3238 = vpack.c.b16 %v3110, %v3078
        %v3239 = vpack.c.b16 %v3111, %v3079
        %v3240 = vpack.c.b16 %v3112, %v3080
        %v3241 = vpack.c.b16 %v3113, %v3081
        %v3242 = vpack.c.b16 %v3114, %v3082
        %v3243 = vpack.c.b16 %v3115, %v3083
        %v3244 = vpack.c.b16 %v3116, %v3084
        %v3245 = vpack.c.b16 %v3117, %v3085
        %v3246 = vpack.c.b16 %v3118, %v3086
        %v3247 = vpack.c.b16 %v3119, %v3087
        %v3248 = vpack.c.b16 %v3120, %v3088
        %v3249 = vpack.c.b16 %v3121, %v3089
        %v3250 = vpack.c.b16 %v3122, %v3090
        %v3251 = vpack.c.b16 %v3123, %v3091
        %v3252 = vpack.c.b16 %v3124, %v3092
        %v3253 = vpack.c.b16 %v3125, %v3093
        %v3254 = vpack.c.b16 %v3126, %v3094
        %v3255 = vpack.c.b16 %v3127, %v3095
        %v3385 = vsel %vm1335, %v2615, 0
        %3387 = vmatpush.bf16.msra.mxu0 0
        %3388 = vmatpush.bf16.msra.mxu0 0
        %3389 = vmatpush.bf16.msra.mxu0 0
        %3390 = vmatpush.bf16.msra.mxu0 0
        %3391 = vmatpush.bf16.msra.mxu0 %v3224
        %3392 = vmatpush.bf16.msra.mxu0 %v3192
        %3393 = vmatpush.bf16.msra.mxu0 %v3160
        %3394 = vmatpush.bf16.msra.mxu0 %v3128
        %3395 = vmatmul.bf16.gmra.mxu0 %v3385
        %v3396 = vpop.f32.mrf.mxu0
        %v3397 = vadd.f32 0.0, %v3396
        %v3398 = vpop.f32.mrf.mxu0
        %v3399 = vadd.f32 0.0, %v3398
        %3400 = vdwg.mxu0
        %3401 = vmatpush.bf16.msra.mxu0 0
        %3402 = vmatpush.bf16.msra.mxu0 0
        %3403 = vmatpush.bf16.msra.mxu0 0
        %3404 = vmatpush.bf16.msra.mxu0 0
        %3405 = vmatpush.bf16.msra.mxu0 %v3225
        %3406 = vmatpush.bf16.msra.mxu0 %v3193
        %3407 = vmatpush.bf16.msra.mxu0 %v3161
        %3408 = vmatpush.bf16.msra.mxu0 %v3129
        %3409 = vmatmul.bf16.gmra.mxu0 %v3385
        %v3410 = vpop.f32.mrf.mxu0
        %v3411 = vadd.f32 0.0, %v3410
        %v3412 = vpop.f32.mrf.mxu0
        %v3413 = vadd.f32 0.0, %v3412
        %3414 = vdwg.mxu0
        %3415 = vmatpush.bf16.msra.mxu0 0
        %3416 = vmatpush.bf16.msra.mxu0 0
        %3417 = vmatpush.bf16.msra.mxu0 0
        %3418 = vmatpush.bf16.msra.mxu0 0
        %3419 = vmatpush.bf16.msra.mxu0 %v3226
        %3420 = vmatpush.bf16.msra.mxu0 %v3194
        %3421 = vmatpush.bf16.msra.mxu0 %v3162
        %3422 = vmatpush.bf16.msra.mxu0 %v3130
        %3423 = vmatmul.bf16.gmra.mxu0 %v3385
        %v3424 = vpop.f32.mrf.mxu0
        %v3425 = vadd.f32 0.0, %v3424
        %v3426 = vpop.f32.mrf.mxu0
        %v3427 = vadd.f32 0.0, %v3426
        %3428 = vdwg.mxu0
        %3429 = vmatpush.bf16.msra.mxu0 0
        %3430 = vmatpush.bf16.msra.mxu0 0
        %3431 = vmatpush.bf16.msra.mxu0 0
        %3432 = vmatpush.bf16.msra.mxu0 0
        %3433 = vmatpush.bf16.msra.mxu0 %v3227
        %3434 = vmatpush.bf16.msra.mxu0 %v3195
        %3435 = vmatpush.bf16.msra.mxu0 %v3163
        %3436 = vmatpush.bf16.msra.mxu0 %v3131
        %3437 = vmatmul.bf16.gmra.mxu0 %v3385
        %v3438 = vpop.f32.mrf.mxu0
        %v3439 = vadd.f32 0.0, %v3438
        %v3440 = vpop.f32.mrf.mxu0
        %v3441 = vadd.f32 0.0, %v3440
        %3442 = vdwg.mxu0
        %3443 = vmatpush.bf16.msra.mxu0 0
        %3444 = vmatpush.bf16.msra.mxu0 0
        %3445 = vmatpush.bf16.msra.mxu0 0
        %3446 = vmatpush.bf16.msra.mxu0 0
        %3447 = vmatpush.bf16.msra.mxu0 %v3228
        %3448 = vmatpush.bf16.msra.mxu0 %v3196
        %3449 = vmatpush.bf16.msra.mxu0 %v3164
        %3450 = vmatpush.bf16.msra.mxu0 %v3132
        %3451 = vmatmul.bf16.gmra.mxu0 %v3385
        %v3452 = vpop.f32.mrf.mxu0
        %v3453 = vadd.f32 0.0, %v3452
        %v3454 = vpop.f32.mrf.mxu0
        %v3455 = vadd.f32 0.0, %v3454
        %3456 = vdwg.mxu0
        %3457 = vmatpush.bf16.msra.mxu0 0
        %3458 = vmatpush.bf16.msra.mxu0 0
        %3459 = vmatpush.bf16.msra.mxu0 0
        %3460 = vmatpush.bf16.msra.mxu0 0
        %3461 = vmatpush.bf16.msra.mxu0 %v3229
        %3462 = vmatpush.bf16.msra.mxu0 %v3197
        %3463 = vmatpush.bf16.msra.mxu0 %v3165
        %3464 = vmatpush.bf16.msra.mxu0 %v3133
        %3465 = vmatmul.bf16.gmra.mxu0 %v3385
        %v3466 = vpop.f32.mrf.mxu0
        %v3467 = vadd.f32 0.0, %v3466
        %v3468 = vpop.f32.mrf.mxu0
        %v3469 = vadd.f32 0.0, %v3468
        %3470 = vdwg.mxu0
        %3471 = vmatpush.bf16.msra.mxu0 0
        %3472 = vmatpush.bf16.msra.mxu0 0
        %3473 = vmatpush.bf16.msra.mxu0 0
        %3474 = vmatpush.bf16.msra.mxu0 0
        %3475 = vmatpush.bf16.msra.mxu0 %v3230
        %3476 = vmatpush.bf16.msra.mxu0 %v3198
        %3477 = vmatpush.bf16.msra.mxu0 %v3166
        %3478 = vmatpush.bf16.msra.mxu0 %v3134
        %3479 = vmatmul.bf16.gmra.mxu0 %v3385
        %v3480 = vpop.f32.mrf.mxu0
        %v3481 = vadd.f32 0.0, %v3480
        %v3482 = vpop.f32.mrf.mxu0
        %v3483 = vadd.f32 0.0, %v3482
        %3484 = vdwg.mxu0
        %3485 = vmatpush.bf16.msra.mxu0 0
        %3486 = vmatpush.bf16.msra.mxu0 0
        %3487 = vmatpush.bf16.msra.mxu0 0
        %3488 = vmatpush.bf16.msra.mxu0 0
        %3489 = vmatpush.bf16.msra.mxu0 %v3231
        %3490 = vmatpush.bf16.msra.mxu0 %v3199
        %3491 = vmatpush.bf16.msra.mxu0 %v3167
        %3492 = vmatpush.bf16.msra.mxu0 %v3135
        %3493 = vmatmul.bf16.gmra.mxu0 %v3385
        %v3494 = vpop.f32.mrf.mxu0
        %v3495 = vadd.f32 0.0, %v3494
        %v3496 = vpop.f32.mrf.mxu0
        %v3497 = vadd.f32 0.0, %v3496
        %3498 = vdwg.mxu0
        %3499 = vmatpush.bf16.msra.mxu0 0
        %3500 = vmatpush.bf16.msra.mxu0 0
        %3501 = vmatpush.bf16.msra.mxu0 0
        %3502 = vmatpush.bf16.msra.mxu0 0
        %3503 = vmatpush.bf16.msra.mxu0 %v3232
        %3504 = vmatpush.bf16.msra.mxu0 %v3200
        %3505 = vmatpush.bf16.msra.mxu0 %v3168
        %3506 = vmatpush.bf16.msra.mxu0 %v3136
        %3507 = vmatmul.bf16.gmra.mxu0 %v3385
        %v3508 = vpop.f32.mrf.mxu0
        %v3509 = vadd.f32 0.0, %v3508
        %v3510 = vpop.f32.mrf.mxu0
        %v3511 = vadd.f32 0.0, %v3510
        %3512 = vdwg.mxu0
        %3513 = vmatpush.bf16.msra.mxu0 0
        %3514 = vmatpush.bf16.msra.mxu0 0
        %3515 = vmatpush.bf16.msra.mxu0 0
        %3516 = vmatpush.bf16.msra.mxu0 0
        %3517 = vmatpush.bf16.msra.mxu0 %v3233
        %3518 = vmatpush.bf16.msra.mxu0 %v3201
        %3519 = vmatpush.bf16.msra.mxu0 %v3169
        %3520 = vmatpush.bf16.msra.mxu0 %v3137
        %3521 = vmatmul.bf16.gmra.mxu0 %v3385
        %v3522 = vpop.f32.mrf.mxu0
        %v3523 = vadd.f32 0.0, %v3522
        %v3524 = vpop.f32.mrf.mxu0
        %v3525 = vadd.f32 0.0, %v3524
        %3526 = vdwg.mxu0
        %3527 = vmatpush.bf16.msra.mxu0 0
        %3528 = vmatpush.bf16.msra.mxu0 0
        %3529 = vmatpush.bf16.msra.mxu0 0
        %3530 = vmatpush.bf16.msra.mxu0 0
        %3531 = vmatpush.bf16.msra.mxu0 %v3234
        %3532 = vmatpush.bf16.msra.mxu0 %v3202
        %3533 = vmatpush.bf16.msra.mxu0 %v3170
        %3534 = vmatpush.bf16.msra.mxu0 %v3138
        %3535 = vmatmul.bf16.gmra.mxu0 %v3385
        %v3536 = vpop.f32.mrf.mxu0
        %v3537 = vadd.f32 0.0, %v3536
        %v3538 = vpop.f32.mrf.mxu0
        %v3539 = vadd.f32 0.0, %v3538
        %3540 = vdwg.mxu0
        %3541 = vmatpush.bf16.msra.mxu0 0
        %3542 = vmatpush.bf16.msra.mxu0 0
        %3543 = vmatpush.bf16.msra.mxu0 0
        %3544 = vmatpush.bf16.msra.mxu0 0
        %3545 = vmatpush.bf16.msra.mxu0 %v3235
        %3546 = vmatpush.bf16.msra.mxu0 %v3203
        %3547 = vmatpush.bf16.msra.mxu0 %v3171
        %3548 = vmatpush.bf16.msra.mxu0 %v3139
        %3549 = vmatmul.bf16.gmra.mxu0 %v3385
        %v3550 = vpop.f32.mrf.mxu0
        %v3551 = vadd.f32 0.0, %v3550
        %v3552 = vpop.f32.mrf.mxu0
        %v3553 = vadd.f32 0.0, %v3552
        %3554 = vdwg.mxu0
        %3555 = vmatpush.bf16.msra.mxu0 0
        %3556 = vmatpush.bf16.msra.mxu0 0
        %3557 = vmatpush.bf16.msra.mxu0 0
        %3558 = vmatpush.bf16.msra.mxu0 0
        %3559 = vmatpush.bf16.msra.mxu0 %v3236
        %3560 = vmatpush.bf16.msra.mxu0 %v3204
        %3561 = vmatpush.bf16.msra.mxu0 %v3172
        %3562 = vmatpush.bf16.msra.mxu0 %v3140
        %3563 = vmatmul.bf16.gmra.mxu0 %v3385
        %v3564 = vpop.f32.mrf.mxu0
        %v3565 = vadd.f32 0.0, %v3564
        %v3566 = vpop.f32.mrf.mxu0
        %v3567 = vadd.f32 0.0, %v3566
        %3568 = vdwg.mxu0
        %3569 = vmatpush.bf16.msra.mxu0 0
        %3570 = vmatpush.bf16.msra.mxu0 0
        %3571 = vmatpush.bf16.msra.mxu0 0
        %3572 = vmatpush.bf16.msra.mxu0 0
        %3573 = vmatpush.bf16.msra.mxu0 %v3237
        %3574 = vmatpush.bf16.msra.mxu0 %v3205
        %3575 = vmatpush.bf16.msra.mxu0 %v3173
        %3576 = vmatpush.bf16.msra.mxu0 %v3141
        %3577 = vmatmul.bf16.gmra.mxu0 %v3385
        %v3578 = vpop.f32.mrf.mxu0
        %v3579 = vadd.f32 0.0, %v3578
        %v3580 = vpop.f32.mrf.mxu0
        %v3581 = vadd.f32 0.0, %v3580
        %3582 = vdwg.mxu0
        %3583 = vmatpush.bf16.msra.mxu0 0
        %3584 = vmatpush.bf16.msra.mxu0 0
        %3585 = vmatpush.bf16.msra.mxu0 0
        %3586 = vmatpush.bf16.msra.mxu0 0
        %3587 = vmatpush.bf16.msra.mxu0 %v3238
        %3588 = vmatpush.bf16.msra.mxu0 %v3206
        %3589 = vmatpush.bf16.msra.mxu0 %v3174
        %3590 = vmatpush.bf16.msra.mxu0 %v3142
        %3591 = vmatmul.bf16.gmra.mxu0 %v3385
        %v3592 = vpop.f32.mrf.mxu0
        %v3593 = vadd.f32 0.0, %v3592
        %v3594 = vpop.f32.mrf.mxu0
        %v3595 = vadd.f32 0.0, %v3594
        %3596 = vdwg.mxu0
        %3597 = vmatpush.bf16.msra.mxu0 0
        %3598 = vmatpush.bf16.msra.mxu0 0
        %3599 = vmatpush.bf16.msra.mxu0 0
        %3600 = vmatpush.bf16.msra.mxu0 0
        %3601 = vmatpush.bf16.msra.mxu0 %v3239
        %3602 = vmatpush.bf16.msra.mxu0 %v3207
        %3603 = vmatpush.bf16.msra.mxu0 %v3175
        %3604 = vmatpush.bf16.msra.mxu0 %v3143
        %3605 = vmatmul.bf16.gmra.mxu0 %v3385
        %v3606 = vpop.f32.mrf.mxu0
        %v3607 = vadd.f32 0.0, %v3606
        %v3608 = vpop.f32.mrf.mxu0
        %v3609 = vadd.f32 0.0, %v3608
        %3610 = vdwg.mxu0
        %3611 = vmatpush.bf16.msra.mxu0 0
        %3612 = vmatpush.bf16.msra.mxu0 0
        %3613 = vmatpush.bf16.msra.mxu0 0
        %3614 = vmatpush.bf16.msra.mxu0 0
        %3615 = vmatpush.bf16.msra.mxu0 %v3240
        %3616 = vmatpush.bf16.msra.mxu0 %v3208
        %3617 = vmatpush.bf16.msra.mxu0 %v3176
        %3618 = vmatpush.bf16.msra.mxu0 %v3144
        %3619 = vmatmul.bf16.gmra.mxu0 %v3385
        %v3620 = vpop.f32.mrf.mxu0
        %v3621 = vadd.f32 0.0, %v3620
        %v3622 = vpop.f32.mrf.mxu0
        %v3623 = vadd.f32 0.0, %v3622
        %3624 = vdwg.mxu0
        %3625 = vmatpush.bf16.msra.mxu0 0
        %3626 = vmatpush.bf16.msra.mxu0 0
        %3627 = vmatpush.bf16.msra.mxu0 0
        %3628 = vmatpush.bf16.msra.mxu0 0
        %3629 = vmatpush.bf16.msra.mxu0 %v3241
        %3630 = vmatpush.bf16.msra.mxu0 %v3209
        %3631 = vmatpush.bf16.msra.mxu0 %v3177
        %3632 = vmatpush.bf16.msra.mxu0 %v3145
        %3633 = vmatmul.bf16.gmra.mxu0 %v3385
        %v3634 = vpop.f32.mrf.mxu0
        %v3635 = vadd.f32 0.0, %v3634
        %v3636 = vpop.f32.mrf.mxu0
        %v3637 = vadd.f32 0.0, %v3636
        %3638 = vdwg.mxu0
        %3639 = vmatpush.bf16.msra.mxu0 0
        %3640 = vmatpush.bf16.msra.mxu0 0
        %3641 = vmatpush.bf16.msra.mxu0 0
        %3642 = vmatpush.bf16.msra.mxu0 0
        %3643 = vmatpush.bf16.msra.mxu0 %v3242
        %3644 = vmatpush.bf16.msra.mxu0 %v3210
        %3645 = vmatpush.bf16.msra.mxu0 %v3178
        %3646 = vmatpush.bf16.msra.mxu0 %v3146
        %3647 = vmatmul.bf16.gmra.mxu0 %v3385
        %v3648 = vpop.f32.mrf.mxu0
        %v3649 = vadd.f32 0.0, %v3648
        %v3650 = vpop.f32.mrf.mxu0
        %v3651 = vadd.f32 0.0, %v3650
        %3652 = vdwg.mxu0
        %3653 = vmatpush.bf16.msra.mxu0 0
        %3654 = vmatpush.bf16.msra.mxu0 0
        %3655 = vmatpush.bf16.msra.mxu0 0
        %3656 = vmatpush.bf16.msra.mxu0 0
        %3657 = vmatpush.bf16.msra.mxu0 %v3243
        %3658 = vmatpush.bf16.msra.mxu0 %v3211
        %3659 = vmatpush.bf16.msra.mxu0 %v3179
        %3660 = vmatpush.bf16.msra.mxu0 %v3147
        %3661 = vmatmul.bf16.gmra.mxu0 %v3385
        %v3662 = vpop.f32.mrf.mxu0
        %v3663 = vadd.f32 0.0, %v3662
        %v3664 = vpop.f32.mrf.mxu0
        %v3665 = vadd.f32 0.0, %v3664
        %3666 = vdwg.mxu0
        %3667 = vmatpush.bf16.msra.mxu0 0
        %3668 = vmatpush.bf16.msra.mxu0 0
        %3669 = vmatpush.bf16.msra.mxu0 0
        %3670 = vmatpush.bf16.msra.mxu0 0
        %3671 = vmatpush.bf16.msra.mxu0 %v3244
        %3672 = vmatpush.bf16.msra.mxu0 %v3212
        %3673 = vmatpush.bf16.msra.mxu0 %v3180
        %3674 = vmatpush.bf16.msra.mxu0 %v3148
        %3675 = vmatmul.bf16.gmra.mxu0 %v3385
        %v3676 = vpop.f32.mrf.mxu0
        %v3677 = vadd.f32 0.0, %v3676
        %v3678 = vpop.f32.mrf.mxu0
        %v3679 = vadd.f32 0.0, %v3678
        %3680 = vdwg.mxu0
        %3681 = vmatpush.bf16.msra.mxu0 0
        %3682 = vmatpush.bf16.msra.mxu0 0
        %3683 = vmatpush.bf16.msra.mxu0 0
        %3684 = vmatpush.bf16.msra.mxu0 0
        %3685 = vmatpush.bf16.msra.mxu0 %v3245
        %3686 = vmatpush.bf16.msra.mxu0 %v3213
        %3687 = vmatpush.bf16.msra.mxu0 %v3181
        %3688 = vmatpush.bf16.msra.mxu0 %v3149
        %3689 = vmatmul.bf16.gmra.mxu0 %v3385
        %v3690 = vpop.f32.mrf.mxu0
        %v3691 = vadd.f32 0.0, %v3690
        %v3692 = vpop.f32.mrf.mxu0
        %v3693 = vadd.f32 0.0, %v3692
        %3694 = vdwg.mxu0
        %3695 = vmatpush.bf16.msra.mxu0 0
        %3696 = vmatpush.bf16.msra.mxu0 0
        %3697 = vmatpush.bf16.msra.mxu0 0
        %3698 = vmatpush.bf16.msra.mxu0 0
        %3699 = vmatpush.bf16.msra.mxu0 %v3246
        %3700 = vmatpush.bf16.msra.mxu0 %v3214
        %3701 = vmatpush.bf16.msra.mxu0 %v3182
        %3702 = vmatpush.bf16.msra.mxu0 %v3150
        %3703 = vmatmul.bf16.gmra.mxu0 %v3385
        %v3704 = vpop.f32.mrf.mxu0
        %v3705 = vadd.f32 0.0, %v3704
        %v3706 = vpop.f32.mrf.mxu0
        %v3707 = vadd.f32 0.0, %v3706
        %3708 = vdwg.mxu0
        %3709 = vmatpush.bf16.msra.mxu0 0
        %3710 = vmatpush.bf16.msra.mxu0 0
        %3711 = vmatpush.bf16.msra.mxu0 0
        %3712 = vmatpush.bf16.msra.mxu0 0
        %3713 = vmatpush.bf16.msra.mxu0 %v3247
        %3714 = vmatpush.bf16.msra.mxu0 %v3215
        %3715 = vmatpush.bf16.msra.mxu0 %v3183
        %3716 = vmatpush.bf16.msra.mxu0 %v3151
        %3717 = vmatmul.bf16.gmra.mxu0 %v3385
        %v3718 = vpop.f32.mrf.mxu0
        %v3719 = vadd.f32 0.0, %v3718
        %v3720 = vpop.f32.mrf.mxu0
        %v3721 = vadd.f32 0.0, %v3720
        %3722 = vdwg.mxu0
        %3723 = vmatpush.bf16.msra.mxu0 0
        %3724 = vmatpush.bf16.msra.mxu0 0
        %3725 = vmatpush.bf16.msra.mxu0 0
        %3726 = vmatpush.bf16.msra.mxu0 0
        %3727 = vmatpush.bf16.msra.mxu0 %v3248
        %3728 = vmatpush.bf16.msra.mxu0 %v3216
        %3729 = vmatpush.bf16.msra.mxu0 %v3184
        %3730 = vmatpush.bf16.msra.mxu0 %v3152
        %3731 = vmatmul.bf16.gmra.mxu0 %v3385
        %v3732 = vpop.f32.mrf.mxu0
        %v3733 = vadd.f32 0.0, %v3732
        %v3734 = vpop.f32.mrf.mxu0
        %v3735 = vadd.f32 0.0, %v3734
        %3736 = vdwg.mxu0
        %3737 = vmatpush.bf16.msra.mxu0 0
        %3738 = vmatpush.bf16.msra.mxu0 0
        %3739 = vmatpush.bf16.msra.mxu0 0
        %3740 = vmatpush.bf16.msra.mxu0 0
        %3741 = vmatpush.bf16.msra.mxu0 %v3249
        %3742 = vmatpush.bf16.msra.mxu0 %v3217
        %3743 = vmatpush.bf16.msra.mxu0 %v3185
        %3744 = vmatpush.bf16.msra.mxu0 %v3153
        %3745 = vmatmul.bf16.gmra.mxu0 %v3385
        %v3746 = vpop.f32.mrf.mxu0
        %v3747 = vadd.f32 0.0, %v3746
        %v3748 = vpop.f32.mrf.mxu0
        %v3749 = vadd.f32 0.0, %v3748
        %3750 = vdwg.mxu0
        %3751 = vmatpush.bf16.msra.mxu0 0
        %3752 = vmatpush.bf16.msra.mxu0 0
        %3753 = vmatpush.bf16.msra.mxu0 0
        %3754 = vmatpush.bf16.msra.mxu0 0
        %3755 = vmatpush.bf16.msra.mxu0 %v3250
        %3756 = vmatpush.bf16.msra.mxu0 %v3218
        %3757 = vmatpush.bf16.msra.mxu0 %v3186
        %3758 = vmatpush.bf16.msra.mxu0 %v3154
        %3759 = vmatmul.bf16.gmra.mxu0 %v3385
        %v3760 = vpop.f32.mrf.mxu0
        %v3761 = vadd.f32 0.0, %v3760
        %v3762 = vpop.f32.mrf.mxu0
        %v3763 = vadd.f32 0.0, %v3762
        %3764 = vdwg.mxu0
        %3765 = vmatpush.bf16.msra.mxu0 0
        %3766 = vmatpush.bf16.msra.mxu0 0
        %3767 = vmatpush.bf16.msra.mxu0 0
        %3768 = vmatpush.bf16.msra.mxu0 0
        %3769 = vmatpush.bf16.msra.mxu0 %v3251
        %3770 = vmatpush.bf16.msra.mxu0 %v3219
        %3771 = vmatpush.bf16.msra.mxu0 %v3187
        %3772 = vmatpush.bf16.msra.mxu0 %v3155
        %3773 = vmatmul.bf16.gmra.mxu0 %v3385
        %v3774 = vpop.f32.mrf.mxu0
        %v3775 = vadd.f32 0.0, %v3774
        %v3776 = vpop.f32.mrf.mxu0
        %v3777 = vadd.f32 0.0, %v3776
        %3778 = vdwg.mxu0
        %3779 = vmatpush.bf16.msra.mxu0 0
        %3780 = vmatpush.bf16.msra.mxu0 0
        %3781 = vmatpush.bf16.msra.mxu0 0
        %3782 = vmatpush.bf16.msra.mxu0 0
        %3783 = vmatpush.bf16.msra.mxu0 %v3252
        %3784 = vmatpush.bf16.msra.mxu0 %v3220
        %3785 = vmatpush.bf16.msra.mxu0 %v3188
        %3786 = vmatpush.bf16.msra.mxu0 %v3156
        %3787 = vmatmul.bf16.gmra.mxu0 %v3385
        %v3788 = vpop.f32.mrf.mxu0
        %v3789 = vadd.f32 0.0, %v3788
        %v3790 = vpop.f32.mrf.mxu0
        %v3791 = vadd.f32 0.0, %v3790
        %3792 = vdwg.mxu0
        %3793 = vmatpush.bf16.msra.mxu0 0
        %3794 = vmatpush.bf16.msra.mxu0 0
        %3795 = vmatpush.bf16.msra.mxu0 0
        %3796 = vmatpush.bf16.msra.mxu0 0
        %3797 = vmatpush.bf16.msra.mxu0 %v3253
        %3798 = vmatpush.bf16.msra.mxu0 %v3221
        %3799 = vmatpush.bf16.msra.mxu0 %v3189
        %3800 = vmatpush.bf16.msra.mxu0 %v3157
        %3801 = vmatmul.bf16.gmra.mxu0 %v3385
        %v3802 = vpop.f32.mrf.mxu0
        %v3803 = vadd.f32 0.0, %v3802
        %v3804 = vpop.f32.mrf.mxu0
        %v3805 = vadd.f32 0.0, %v3804
        %3806 = vdwg.mxu0
        %3807 = vmatpush.bf16.msra.mxu0 0
        %3808 = vmatpush.bf16.msra.mxu0 0
        %3809 = vmatpush.bf16.msra.mxu0 0
        %3810 = vmatpush.bf16.msra.mxu0 0
        %3811 = vmatpush.bf16.msra.mxu0 %v3254
        %3812 = vmatpush.bf16.msra.mxu0 %v3222
        %3813 = vmatpush.bf16.msra.mxu0 %v3190
        %3814 = vmatpush.bf16.msra.mxu0 %v3158
        %3815 = vmatmul.bf16.gmra.mxu0 %v3385
        %v3816 = vpop.f32.mrf.mxu0
        %v3817 = vadd.f32 0.0, %v3816
        %v3818 = vpop.f32.mrf.mxu0
        %v3819 = vadd.f32 0.0, %v3818
        %3820 = vdwg.mxu0
        %3821 = vmatpush.bf16.msra.mxu0 0
        %3822 = vmatpush.bf16.msra.mxu0 0
        %3823 = vmatpush.bf16.msra.mxu0 0
        %3824 = vmatpush.bf16.msra.mxu0 0
        %3825 = vmatpush.bf16.msra.mxu0 %v3255
        %3826 = vmatpush.bf16.msra.mxu0 %v3223
        %3827 = vmatpush.bf16.msra.mxu0 %v3191
        %3828 = vmatpush.bf16.msra.mxu0 %v3159
        %3829 = vmatmul.bf16.gmra.mxu0 %v3385
        %v3830 = vpop.f32.mrf.mxu0
        %v3831 = vadd.f32 0.0, %v3830
        %v3832 = vpop.f32.mrf.mxu0
        %v3833 = vadd.f32 0.0, %v3832
        %3834 = vdwg.mxu0
        %v3835 = vpack.c.bf16 %v3411, %v3397
        %v3836 = vpack.c.bf16 %v3439, %v3425
        %v3837 = vpack.c.bf16 %v3467, %v3453
        %v3838 = vpack.c.bf16 %v3495, %v3481
        %v3839 = vpack.c.bf16 %v3523, %v3509
        %v3840 = vpack.c.bf16 %v3551, %v3537
        %v3841 = vpack.c.bf16 %v3579, %v3565
        %v3842 = vpack.c.bf16 %v3607, %v3593
        %v3843 = vpack.c.bf16 %v3635, %v3621
        %v3844 = vpack.c.bf16 %v3663, %v3649
        %v3845 = vpack.c.bf16 %v3691, %v3677
        %v3846 = vpack.c.bf16 %v3719, %v3705
        %v3847 = vpack.c.bf16 %v3747, %v3733
        %v3848 = vpack.c.bf16 %v3775, %v3761
        %v3849 = vpack.c.bf16 %v3803, %v3789
        %v3850 = vpack.c.bf16 %v3831, %v3817
        %v3851 = vpack.c.bf16 %v3413, %v3399
        %v3852 = vpack.c.bf16 %v3441, %v3427
        %v3853 = vpack.c.bf16 %v3469, %v3455
        %v3854 = vpack.c.bf16 %v3497, %v3483
        %v3855 = vpack.c.bf16 %v3525, %v3511
        %v3856 = vpack.c.bf16 %v3553, %v3539
        %v3857 = vpack.c.bf16 %v3581, %v3567
        %v3858 = vpack.c.bf16 %v3609, %v3595
        %v3859 = vpack.c.bf16 %v3637, %v3623
        %v3860 = vpack.c.bf16 %v3665, %v3651
        %v3861 = vpack.c.bf16 %v3693, %v3679
        %v3862 = vpack.c.bf16 %v3721, %v3707
        %v3863 = vpack.c.bf16 %v3749, %v3735
        %v3864 = vpack.c.bf16 %v3777, %v3763
        %v3865 = vpack.c.bf16 %v3805, %v3791
        %v3866 = vpack.c.bf16 %v3833, %v3819
        %v3869 = vunpack.c.l.b16 %v3835
        %v3870 = vunpack.c.h.b16 %v3835
        %v3871 = vunpack.c.l.b16 %v3851
        %v3872 = vunpack.c.h.b16 %v3851
        %v3873 = vpack.c.b16 %v3871, %v3869
        %v3874 = vpack.c.b16 %v3872, %v3870
        %v3879 = vunpack.c.l.b16 %v3836
        %v3880 = vunpack.c.h.b16 %v3836
        %v3881 = vunpack.c.l.b16 %v3852
        %v3882 = vunpack.c.h.b16 %v3852
        %v3883 = vpack.c.b16 %v3881, %v3879
        %v3884 = vpack.c.b16 %v3882, %v3880
        %v3889 = vunpack.c.l.b16 %v3837
        %v3890 = vunpack.c.h.b16 %v3837
        %v3891 = vunpack.c.l.b16 %v3853
        %v3892 = vunpack.c.h.b16 %v3853
        %v3893 = vpack.c.b16 %v3891, %v3889
        %v3894 = vpack.c.b16 %v3892, %v3890
        %v3899 = vunpack.c.l.b16 %v3838
        %v3900 = vunpack.c.h.b16 %v3838
        %v3901 = vunpack.c.l.b16 %v3854
        %v3902 = vunpack.c.h.b16 %v3854
        %v3903 = vpack.c.b16 %v3901, %v3899
        %v3904 = vpack.c.b16 %v3902, %v3900
        %v3909 = vunpack.c.l.b16 %v3839
        %v3910 = vunpack.c.h.b16 %v3839
        %v3911 = vunpack.c.l.b16 %v3855
        %v3912 = vunpack.c.h.b16 %v3855
        %v3913 = vpack.c.b16 %v3911, %v3909
        %v3914 = vpack.c.b16 %v3912, %v3910
        %v3919 = vunpack.c.l.b16 %v3840
        %v3920 = vunpack.c.h.b16 %v3840
        %v3921 = vunpack.c.l.b16 %v3856
        %v3922 = vunpack.c.h.b16 %v3856
        %v3923 = vpack.c.b16 %v3921, %v3919
        %v3924 = vpack.c.b16 %v3922, %v3920
        %v3929 = vunpack.c.l.b16 %v3841
        %v3930 = vunpack.c.h.b16 %v3841
        %v3931 = vunpack.c.l.b16 %v3857
        %v3932 = vunpack.c.h.b16 %v3857
        %v3933 = vpack.c.b16 %v3931, %v3929
        %v3934 = vpack.c.b16 %v3932, %v3930
        %v3939 = vunpack.c.l.b16 %v3842
        %v3940 = vunpack.c.h.b16 %v3842
        %v3941 = vunpack.c.l.b16 %v3858
        %v3942 = vunpack.c.h.b16 %v3858
        %v3943 = vpack.c.b16 %v3941, %v3939
        %v3944 = vpack.c.b16 %v3942, %v3940
        %v3949 = vunpack.c.l.b16 %v3843
        %v3950 = vunpack.c.h.b16 %v3843
        %v3951 = vunpack.c.l.b16 %v3859
        %v3952 = vunpack.c.h.b16 %v3859
        %v3953 = vpack.c.b16 %v3951, %v3949
        %v3954 = vpack.c.b16 %v3952, %v3950
        %v3959 = vunpack.c.l.b16 %v3844
        %v3960 = vunpack.c.h.b16 %v3844
        %v3961 = vunpack.c.l.b16 %v3860
        %v3962 = vunpack.c.h.b16 %v3860
        %v3963 = vpack.c.b16 %v3961, %v3959
        %v3964 = vpack.c.b16 %v3962, %v3960
        %v3969 = vunpack.c.l.b16 %v3845
        %v3970 = vunpack.c.h.b16 %v3845
        %v3971 = vunpack.c.l.b16 %v3861
        %v3972 = vunpack.c.h.b16 %v3861
        %v3973 = vpack.c.b16 %v3971, %v3969
        %v3974 = vpack.c.b16 %v3972, %v3970
        %v3979 = vunpack.c.l.b16 %v3846
        %v3980 = vunpack.c.h.b16 %v3846
        %v3981 = vunpack.c.l.b16 %v3862
        %v3982 = vunpack.c.h.b16 %v3862
        %v3983 = vpack.c.b16 %v3981, %v3979
        %v3984 = vpack.c.b16 %v3982, %v3980
        %v3989 = vunpack.c.l.b16 %v3847
        %v3990 = vunpack.c.h.b16 %v3847
        %v3991 = vunpack.c.l.b16 %v3863
        %v3992 = vunpack.c.h.b16 %v3863
        %v3993 = vpack.c.b16 %v3991, %v3989
        %v3994 = vpack.c.b16 %v3992, %v3990
        %v3999 = vunpack.c.l.b16 %v3848
        %v4000 = vunpack.c.h.b16 %v3848
        %v4001 = vunpack.c.l.b16 %v3864
        %v4002 = vunpack.c.h.b16 %v3864
        %v4003 = vpack.c.b16 %v4001, %v3999
        %v4004 = vpack.c.b16 %v4002, %v4000
        %v4009 = vunpack.c.l.b16 %v3849
        %v4010 = vunpack.c.h.b16 %v3849
        %v4011 = vunpack.c.l.b16 %v3865
        %v4012 = vunpack.c.h.b16 %v3865
        %v4013 = vpack.c.b16 %v4011, %v4009
        %v4014 = vpack.c.b16 %v4012, %v4010
        %v4019 = vunpack.c.l.b16 %v3850
        %v4020 = vunpack.c.h.b16 %v3850
        %v4021 = vunpack.c.l.b16 %v3866
        %v4022 = vunpack.c.h.b16 %v3866
        %v4023 = vpack.c.b16 %v4021, %v4019
        %v4024 = vpack.c.b16 %v4022, %v4020
        %v4027 = vld [vmem:[%s9] sm:$0xff]
        %v4028 = vrot.slane %v551, 4
        %v4030 = vsel %vm617, %v551, %v4028
        %4032 = vset.pattern.permute.xlu0 10
        %4033 = vperm.xlu0 %4032, %v4030
        %v4034 = vpop.permute.xlu0 %4033
        %v4037 = vunpack.c.l.b16 %v4027
        %v4038 = vunpack.c.h.b16 %v4027
        %v4039 = vpack.c.b16 %v4037, %v4037
        %v4040 = vpack.c.b16 %v4038, %v4038
        %4043 = vmatpush.bf16.msra.mxu0 %v3943
        %4044 = vmatpush.bf16.msra.mxu0 %v3933
        %4045 = vmatpush.bf16.msra.mxu0 %v3923
        %4046 = vmatpush.bf16.msra.mxu0 %v3913
        %4047 = vmatpush.bf16.msra.mxu0 %v3903
        %4048 = vmatpush.bf16.msra.mxu0 %v3893
        %4049 = vmatpush.bf16.msra.mxu0 %v3883
        %4050 = vmatpush.bf16.msra.mxu0 %v3873
        %4051 = vmatmul.bf16.gmra.mxu0 %v4039
        %v4052 = vpop.f32.mrf.mxu0
        %v4053 = vadd.f32 %v4034, %v4052
        %v4054 = vpop.f32.mrf.mxu0
        %4055 = vdwg.mxu0
        %4056 = vmatpush.bf16.msra.mxu0 %v4023
        %4057 = vmatpush.bf16.msra.mxu0 %v4013
        %4058 = vmatpush.bf16.msra.mxu0 %v4003
        %4059 = vmatpush.bf16.msra.mxu0 %v3993
        %4060 = vmatpush.bf16.msra.mxu0 %v3983
        %4061 = vmatpush.bf16.msra.mxu0 %v3973
        %4062 = vmatpush.bf16.msra.mxu0 %v3963
        %4063 = vmatpush.bf16.msra.mxu0 %v3953
        %4064 = vmatmul.bf16.gmra.mxu0 %v4040
        %v4065 = vpop.f32.mrf.mxu0
        %v4066 = vadd.f32 %v4053, %v4065
        %v4067 = vpop.f32.mrf.mxu0
        %4068 = vdwg.mxu0
        %4069 = vmatpush.bf16.msra.mxu0 %v3944
        %4070 = vmatpush.bf16.msra.mxu0 %v3934
        %4071 = vmatpush.bf16.msra.mxu0 %v3924
        %4072 = vmatpush.bf16.msra.mxu0 %v3914
        %4073 = vmatpush.bf16.msra.mxu0 %v3904
        %4074 = vmatpush.bf16.msra.mxu0 %v3894
        %4075 = vmatpush.bf16.msra.mxu0 %v3884
        %4076 = vmatpush.bf16.msra.mxu0 %v3874
        %4077 = vmatmul.bf16.gmra.mxu0 %v4039
        %v4078 = vpop.f32.mrf.mxu0
        %v4079 = vadd.f32 %v4034, %v4078
        %v4080 = vpop.f32.mrf.mxu0
        %4081 = vdwg.mxu0
        %4082 = vmatpush.bf16.msra.mxu0 %v4024
        %4083 = vmatpush.bf16.msra.mxu0 %v4014
        %4084 = vmatpush.bf16.msra.mxu0 %v4004
        %4085 = vmatpush.bf16.msra.mxu0 %v3994
        %4086 = vmatpush.bf16.msra.mxu0 %v3984
        %4087 = vmatpush.bf16.msra.mxu0 %v3974
        %4088 = vmatpush.bf16.msra.mxu0 %v3964
        %4089 = vmatpush.bf16.msra.mxu0 %v3954
        %4090 = vmatmul.bf16.gmra.mxu0 %v4040
        %v4091 = vpop.f32.mrf.mxu0
        %v4092 = vadd.f32 %v4079, %v4091
        %v4093 = vpop.f32.mrf.mxu0
        %4094 = vdwg.mxu0
        %v4095 = vadd.f32 %v4066, %v4092
        %4096 = vadd.xlane.f32.xlu0 %v4095
        %v4097 = vpop.xlane.xlu0 %4096
        %v4098 = vmul.f32 %v4066, %v4066
        %v4099 = vmul.f32 %v4092, %v4092
        %v4100 = vadd.f32 %v4098, %v4099
        %4101 = vadd.xlane.f32.xlu0 %v4100
        %v4102 = vpop.xlane.xlu0 %4101
        %v4104 = vrot.slane %v4097, 4
        %v4106 = vadd.f32 %v4097, %v4104
        %v4108 = vrot.slane %v4102, 4
        %v4110 = vadd.f32 %v4102, %v4108
        %v4111 = vmul.f32 %v4106, 0.001953125
        %v4112 = vmul.f32 %v4110, 0.001953125
        %v4113 = vmul.f32 %v4111, %v4111
        %v4114 = vsub.f32 %v4112, %v4113
        %v4115 = vmax.f32 %v4114, 0.0
        %v4116 = vadd.f32 %v4115, 1e-05
        %v4117 = vrsqrt.pop %v4116
        %v4118 = vmul.f32 %v4117, %v4116
        %v4119 = vmul.f32 %v4118, %v4117
        %v4120 = vmul.f32 0.5, %v4119
        %v4121 = vsub.f32 1.5, %v4120
        %v4122 = vmul.f32 %v4117, %v4121
        %vm4123 = vweird.f32 %v4116
        %vm4124 = vweird.f32 %v4117
        %vm4125 = vmor %vm4123, %vm4124
        %v4126 = vsel %vm4125, %v4117, %v4122
        %4128 = vrot.lane.b32.xlu0 %v4126, 11
        %v4129 = vpop.permute.xlu0 %4128
        %v4131 = vmul.f32 %v551, %v4129
        %4133 = vrot.lane.b32.xlu0 %v4131, 117
        %v4134 = vpop.permute.xlu0 %4133
        %v4136 = vmul.f32 %v4111, %v4134
        %4138 = vrot.lane.b32.xlu0 %v4136, 12
        %v4139 = vpop.permute.xlu0 %4138
        %v4141 = vsub.f32 %v551, %v4139
        %v4142 = vrot.slane %v4131, 4
        %v4144 = vsel %vm617, %v4131, %v4142
        %4146 = vset.pattern.permute.xlu0 11
        %4147 = vperm.xlu0 %4146, %v4144
        %v4148 = vpop.permute.xlu0 %4147
        %v4150 = vmul.f32 %v4066, %v4148
        %v4151 = vmul.f32 %v4092, %v4148
        %v4153 = vrot.slane %v4141, 4
        %v4155 = vsel %vm617, %v4141, %v4153
        %4157 = vset.pattern.permute.xlu0 12
        %4158 = vperm.xlu0 %4157, %v4155
        %v4159 = vpop.permute.xlu0 %4158
        %v4161 = vadd.f32 %v4150, %v4159
        %v4162 = vadd.f32 %v4151, %v4159
        %v4163 = vmax.f32 %v4161, 0.0
        %v4164 = vmax.f32 %v4162, 0.0
        %v4165 = vld [vmem:[%s13] sm:$0x7]
        %4167 = vset.pattern.permute.xlu0 0
        %4168 = vperm.xlu0 %4167, %v4165
        %v4169 = vpop.permute.xlu0 %4168
        %v4171 = vperm.slane %v4163, 0
        %v4172 = vperm.slane %v4164, 0
        %v4173 = vmul.f32 %v4169, %v4171
        %v4174 = vmul.f32 %v4169, %v4172
        %4175 = vset.pattern.permute.xlu0 1
        %4176 = vperm.xlu0 %4175, %v4165
        %v4177 = vpop.permute.xlu0 %4176
        %v4179 = vperm.slane %v4163, 1
        %v4180 = vperm.slane %v4164, 1
        %v4181 = vmul.f32 %v4177, %v4179
        %v4182 = vmul.f32 %v4177, %v4180
        %v4183 = vadd.f32 %v4173, %v4181
        %v4184 = vadd.f32 %v4174, %v4182
        %4185 = vset.pattern.permute.xlu0 2
        %4186 = vperm.xlu0 %4185, %v4165
        %v4187 = vpop.permute.xlu0 %4186
        %v4189 = vperm.slane %v4163, 2
        %v4190 = vperm.slane %v4164, 2
        %v4191 = vmul.f32 %v4187, %v4189
        %v4192 = vmul.f32 %v4187, %v4190
        %v4193 = vadd.f32 %v4183, %v4191
        %v4194 = vadd.f32 %v4184, %v4192
        %4195 = vset.pattern.permute.xlu0 3
        %4196 = vperm.xlu0 %4195, %v4165
        %v4197 = vpop.permute.xlu0 %4196
        %v4199 = vperm.slane %v4163, 3
        %v4200 = vperm.slane %v4164, 3
        %v4201 = vmul.f32 %v4197, %v4199
        %v4202 = vmul.f32 %v4197, %v4200
        %v4203 = vadd.f32 %v4193, %v4201
        %v4204 = vadd.f32 %v4194, %v4202
        %4205 = vset.pattern.permute.xlu0 13
        %4206 = vperm.xlu0 %4205, %v551
        %v4207 = vpop.permute.xlu0 %4206
        %v4209 = vadd.f32 %v4203, %v4207
        %v4210 = vadd.f32 %v4204, %v4207
        %v4211 = vperm.slane %v4163, 4
        %v4212 = vperm.slane %v4164, 4
        %v4213 = vmul.f32 %v4169, %v4211
        %v4214 = vmul.f32 %v4169, %v4212
        %v4215 = vperm.slane %v4163, 5
        %v4216 = vperm.slane %v4164, 5
        %v4217 = vmul.f32 %v4177, %v4215
        %v4218 = vmul.f32 %v4177, %v4216
        %v4219 = vadd.f32 %v4213, %v4217
        %v4220 = vadd.f32 %v4214, %v4218
        %v4221 = vperm.slane %v4163, 6
        %v4222 = vperm.slane %v4164, 6
        %v4223 = vmul.f32 %v4187, %v4221
        %v4224 = vmul.f32 %v4187, %v4222
        %v4225 = vadd.f32 %v4219, %v4223
        %v4226 = vadd.f32 %v4220, %v4224
        %v4227 = vperm.slane %v4163, 7
        %v4228 = vperm.slane %v4164, 7
        %v4229 = vmul.f32 %v4197, %v4227
        %v4230 = vmul.f32 %v4197, %v4228
        %v4231 = vadd.f32 %v4225, %v4229
        %v4232 = vadd.f32 %v4226, %v4230
        %v4233 = vadd.f32 %v4231, %v4207
        %v4234 = vadd.f32 %v4232, %v4207
        %v4237 = vrot.slane %v4233, 5
        %v4238 = vrot.slane %v4234, 5
        %v4241 = vsel %vm2050, %v4209, %v4237
        %v4242 = vsel %vm2050, %v4210, %v4238
        %v4243 = vtanh.pop %v4241
        %v4244 = vtanh.pop %v4242
        %4245 = vst [vmem:[%s549] sm:$0x3f] %v4243
        %4246 = vst [vmem:[%s549 + $0x8] sm:$0x3f] %v4244
        %p4247 = scmp.lt.s32.totalorder %s31, 3
        %s4248 = scalar_select %p4247, %s31, 3
        %s4249 = smul.addr %s4248, 2
        %s4250 = smul.addr %s4249, 8
        %s4251 = scalar_lea.vmem %s15, %s4250
        %s4252 = sand.u32 %s390, 1
        %s4253 = scalar_lea.sflag [#allocation3], %s4252
        %s4254 = sand.u32 %s390, 1
        %s4255 = smul.addr %s4254, 2
        %s4256 = scalar_lea.vmem [#allocation2], %s4255
        // Predicated region
        $region81: #{vae_forward.1} parent=79 // pred_check
          %p4257 = pneg %p374
        $region82: #{vae_forward.1} parent=79 // pred_check_branch
          %4259 = sbr.rel (%p4257) target = $region84
        $region83: #{vae_forward.1} parent=79 // pred_region
          _
        $region84: #{vae_forward.1} parent=79 // pred_fallthru
          _
        // Predicated region
        $region85: #{vae_forward.1} parent=79 // pred_check
          %p4260 = pneg %p400
        $region86: #{vae_forward.1} parent=79 // pred_check_branch
          %4262 = sbr.rel (%p4260) target = $region88
        $region87: #{vae_forward.1} parent=79 // pred_region
          %4264 = vsyncadd %s4253, 0
          %s4265 = smul.addr %s31, 2
          %s4266 = scalar_lea.hbm %s16, %s4265
          %s4268 = sshll.u32 %s4256, 4
          %s4269 = int_to_ptr.vmem [resolvable:$true] %s4268
          %s4270 = sshll.u32 %s4266, 4
          %s4271 = int_to_ptr.hbm [resolvable:$true] %s4270
          %4273 = dma.vmem_to_hbm [thread:$0]  %s4269, 32, %s4271, %s4253
        $region88: #{vae_forward.1} parent=79 // pred_fallthru
          _
      $region80: #{vae_forward.1} parent=5 // pred_fallthru
        _
      %p4274 = scmp.le.s32.totalorder 2, %s26
      // Predicated region
      $region89: #{vae_forward.1} parent=5 // pred_check
        %p4275 = pneg %p4274
      $region90: #{vae_forward.1} parent=5 // pred_check_branch
        %4277 = sbr.rel (%p4275) target = $region92
      $region91: #{vae_forward.1} parent=5 // pred_region
        %s4278 = ssub.s32 %s26, 2
        // Predicated region
        $region93: #{vae_forward.1} parent=91 // pred_check
          %p4279 = pneg %p380
        $region94: #{vae_forward.1} parent=91 // pred_check_branch
          %4281 = sbr.rel (%p4279) target = $region96
        $region95: #{vae_forward.1} parent=91 // pred_region
          %p4282 = scmp.lt.s32.totalorder %s32, 3
          %s4283 = scalar_select %p4282, %s32, 3
          %s4284 = smul.addr %s4283, 2
          %s4285 = smul.addr %s4284, 8
          %s4286 = scalar_lea.vmem %s15, %s4285
        $region96: #{vae_forward.1} parent=91 // pred_fallthru
          _
        // Predicated region
        $region97: #{vae_forward.1} parent=91 // pred_check
          %p4287 = pneg %p406
        $region98: #{vae_forward.1} parent=91 // pred_check_branch
          %4289 = sbr.rel (%p4287) target = $region100
        $region99: #{vae_forward.1} parent=91 // pred_region
          %s4290 = sand.u32 %s391, 1
          %s4291 = scalar_lea.sflag [#allocation3], %s4290
          %s4292 = sand.u32 %s391, 1
          %s4293 = smul.addr %s4292, 2
          %s4294 = scalar_lea.vmem [#allocation2], %s4293
          %4296 = dma.done %s4291, 32
        $region100: #{vae_forward.1} parent=91 // pred_fallthru
          _
      $region92: #{vae_forward.1} parent=5 // pred_fallthru
        _
    $region6: #{vae_forward.1} parent=1 // loop_footer
      %s30 = sadd.s32 1, %s26
    $region7: #{vae_forward.1} parent=1 // loop_footer_branch
      %25 = sbr.rel target = $region3
    $region8: #{vae_forward.1} parent=1 // loop_exit
      _
    %4297 = vsyncpa [#allocation3], 1
    %s4298 = scalar_lea.sflag [#allocation3], 1
    %4299 = vsyncpa %s4298, 1

</llo_original>
